<compile_context>
chip_gen: v7x
topology: tpu7x:2x2x1
jax: 0.10.0
libtpu: 0.0.40
codegen_flags: <defaults>
</compile_context>

<pallas_src>
import jax
import jax.numpy as jnp
from jax import lax
from jax.experimental import pallas as pl
from jax.experimental.pallas import tpu as pltpu


def _round_up(x, m):
    return (x + m - 1) // m * m


def _make_attn_decoder_kernel(T, H, V, L, P):
    """Build the fused T-step decode kernel (all sizes static)."""

    def kernel(emb_ref,            # (T, H)   pre-gathered embedding rows (weight dtype)
               h0_ref, c0_ref,     # (1, H)   initial hidden / cell state (f32)
               wih_ref,            # (H, 4H)  W_ih^T (gate order i,f,g,o)
               whh_ref,            # (H, 4H)  W_hh^T
               b_ref,              # (1, 4H)  b_ih + b_hh folded (f32)
               encT_ref,           # (H, L)   encoder_outputs^T (scores matmul)
               enc_ref,            # (L, H)   encoder_outputs   (context matmul)
               woutc_ref,          # (H, V)   W_out^T rows for the context half
               wouth_ref,          # (H, V)   W_out^T rows for the hidden half
               bout_ref,           # (1, V)   b_out (f32)
               out_ref):           # (T, P)   packed [log_probs | h | c | attn | pad]
        # ---- hoist every weight out of the time loop (loaded once) ----
        w_ih = wih_ref[...]
        w_hh = whh_ref[...]
        b = b_ref[...].astype(jnp.float32)
        encT = encT_ref[...]
        enc = enc_ref[...]
        w_out_c = woutc_ref[...]
        w_out_h = wouth_ref[...]
        b_out = bout_ref[...].astype(jnp.float32)
        mm_dtype = w_ih.dtype
        used = V + 2 * H + L

        def step(t, carry):
            h_prev, c_prev = carry                                   # (1, H) f32

            # ---- LSTM cell: two dots (no concat on the recurrence path) ----
            x = emb_ref[pl.ds(t, 1), :]                              # (1, H)
            gates = (jnp.dot(x, w_ih, preferred_element_type=jnp.float32)
                     + jnp.dot(h_prev.astype(mm_dtype), w_hh,
                               preferred_element_type=jnp.float32)
                     + b)                                            # (1, 4H)
            i_g = jax.nn.sigmoid(gates[:, 0 * H:1 * H])
            f_g = jax.nn.sigmoid(gates[:, 1 * H:2 * H])
            g_g = jnp.tanh(gates[:, 2 * H:3 * H])
            o_g = jax.nn.sigmoid(gates[:, 3 * H:4 * H])
            c_new = f_g * c_prev + i_g * g_g                         # (1, H)
            h_new = o_g * jnp.tanh(c_new)                            # (1, H) == lstm_output

            # ---- attention: softmax(h @ enc^T) ----
            scores = jnp.dot(h_new.astype(mm_dtype), encT,
                             preferred_element_type=jnp.float32)     # (1, L)
            m = jnp.max(scores, axis=-1, keepdims=True)
            e = jnp.exp(scores - m)
            attn = e * pl.reciprocal(jnp.sum(e, axis=-1, keepdims=True),
                                     approx=True)                    # (1, L)

            # ---- context + output projection (two dots) + log_softmax ----
            ctx = jnp.dot(attn.astype(mm_dtype), enc,
                          preferred_element_type=jnp.float32)        # (1, H)
            logits = (jnp.dot(ctx.astype(mm_dtype), w_out_c,
                              preferred_element_type=jnp.float32)
                      + jnp.dot(h_new.astype(mm_dtype), w_out_h,
                                preferred_element_type=jnp.float32)
                      + b_out)                                       # (1, V)
            lmax = jnp.max(logits, axis=-1, keepdims=True)
            shifted = logits - lmax
            lse = jnp.log(jnp.sum(jnp.exp(shifted), axis=-1, keepdims=True))
            logp = shifted - lse                                     # (1, V)

            # ---- pack the step outputs into one lane-dense row ----
            pieces = [logp, h_new, c_new, attn]
            if P > used:
                pieces.append(jnp.zeros((1, P - used), jnp.float32))
            row = jnp.concatenate(pieces, axis=1)                    # (1, P)
            out_ref[pl.ds(t, 1), :] = row.astype(out_ref.dtype)
            return (h_new, c_new)

        h0 = h0_ref[...].astype(jnp.float32)
        c0 = c0_ref[...].astype(jnp.float32)
        lax.fori_loop(0, T, step, (h0, c0), unroll=True)

    return kernel


def _fused_decode_call(T, H, V, L, P):
    """Single pallas_call: no grid, every operand fully VMEM-resident."""
    kernel = _make_attn_decoder_kernel(T, H, V, L, P)
    vmem = pl.BlockSpec(memory_space=pltpu.MemorySpace.VMEM)
    return pl.pallas_call(
        kernel,
        out_shape=jax.ShapeDtypeStruct((T, P), jnp.float32),
        in_specs=[vmem] * 11,
        out_specs=vmem,
    )


def prepare_params(raw, weight_dtype=jnp.float32):
    """Fold PyTorch-layout parameters into the kernel layout (done once, offline).
    weight_dtype=jnp.bfloat16 halves weight DMA/VMEM and runs bf16 MXU passes
    (f32 accumulation); biases and elementwise math stay f32."""
    V, H = raw["embedding"].shape
    w_out_t = raw["W_out"].T                                  # (2H, V)
    return {
        "embedding": raw["embedding"].astype(weight_dtype),   # (Vocab, H)
        "W_ih_T": raw["W_ih"].T.astype(weight_dtype),         # (H, 4H)
        "W_hh_T": raw["W_hh"].T.astype(weight_dtype),         # (H, 4H)
        "b": (raw["b_ih"] + raw["b_hh"]).reshape(1, 4 * H).astype(jnp.float32),
        "W_out_ctx": w_out_t[:H].astype(weight_dtype),        # (H, V)  context half
        "W_out_hid": w_out_t[H:].astype(weight_dtype),        # (H, V)  hidden half
        "b_out": raw["b_out"].reshape(1, V).astype(jnp.float32),
    }


def attn_decoder_decode(params, token_ids, hidden, encoder_outputs):
    """T teacher-forced decode steps (each == AttnDecoderRNN.forward, eval mode)
    fused into a single pallas_call. Returns per-step (log_probs, h, c, attn)."""
    h0, c0 = hidden
    H = h0.shape[-1]
    L = encoder_outputs.shape[0]
    V = params["b_out"].shape[-1]
    T = int(token_ids.shape[0])
    P = _round_up(V + 2 * H + L, 128)
    weight_dtype = params["W_ih_T"].dtype

    # Pre-gather the T embedding rows once in the wrapper (one tiny contiguous copy).
    emb_rows = jnp.take(params["embedding"], token_ids.astype(jnp.int32), axis=0)  # (T, H)
    enc = encoder_outputs.astype(weight_dtype)

    call = _fused_decode_call(T, H, V, L, P)
    slab = call(emb_rows,
                h0.reshape(1, H).astype(jnp.float32),
                c0.reshape(1, H).astype(jnp.float32),
                params["W_ih_T"], params["W_hh_T"], params["b"],
                enc.T, enc,                       # pre-transposed once in the wrapper
                params["W_out_ctx"], params["W_out_hid"], params["b_out"])

    log_probs = slab[:, :V]
    h_seq = slab[:, V:V + H]
    c_seq = slab[:, V + H:V + 2 * H]
    attn = slab[:, V + 2 * H:V + 2 * H + L]
    return log_probs, h_seq, c_seq, attn


def attn_decoder_forward(params, token_id, hidden, encoder_outputs):
    """Exact AttnDecoderRNN.forward signature (single step, eval mode)."""
    H = hidden[0].shape[-1]
    L = encoder_outputs.shape[0]
    token_ids = jnp.reshape(jnp.asarray(token_id, jnp.int32), (1,))
    log_probs, h_seq, c_seq, attn = attn_decoder_decode(
        params, token_ids, hidden, encoder_outputs)
    hidden_out = (h_seq.reshape(1, 1, H), c_seq.reshape(1, 1, H))
    return log_probs, hidden_out, attn.reshape(1, 1, L)


def _reference_step(raw, token_id, h, c, enc):
    """Pure-JAX re-implementation of AttnDecoderRNN.forward (eval mode)."""
    H = h.shape[-1]
    x = raw["embedding"][token_id].reshape(1, H)
    gates = x @ raw["W_ih"].T + h @ raw["W_hh"].T + raw["b_ih"] + raw["b_hh"]
    i = jax.nn.sigmoid(gates[:, 0 * H:1 * H])
    f = jax.nn.sigmoid(gates[:, 1 * H:2 * H])
    g = jnp.tanh(gates[:, 2 * H:3 * H])
    o = jax.nn.sigmoid(gates[:, 3 * H:4 * H])
    c1 = f * c + i * g
    h1 = o * jnp.tanh(c1)
    scores = h1 @ enc.T
    attn = jax.nn.softmax(scores, axis=-1)
    ctx = attn @ enc
    logits = jnp.concatenate([ctx, h1], axis=1) @ raw["W_out"].T + raw["b_out"]
    return jax.nn.log_softmax(logits, axis=-1), h1, c1, attn


if __name__ == "__main__":
    H, V, L, T = 32, 64, 16, 8   # hidden, vocab, encoder length (max_length), decode steps

    key = jax.random.PRNGKey(0)
    ks = jax.random.split(key, 10)
    s = 0.1
    raw = {
        "embedding": s * jax.random.normal(ks[0], (V, H), jnp.float32),
        "W_ih": s * jax.random.normal(ks[1], (4 * H, H), jnp.float32),
        "W_hh": s * jax.random.normal(ks[2], (4 * H, H), jnp.float32),
        "b_ih": s * jax.random.normal(ks[3], (4 * H,), jnp.float32),
        "b_hh": s * jax.random.normal(ks[4], (4 * H,), jnp.float32),
        "W_out": s * jax.random.normal(ks[5], (V, 2 * H), jnp.float32),
        "b_out": s * jax.random.normal(ks[6], (V,), jnp.float32),
    }
    encoder_outputs = s * jax.random.normal(ks[7], (L, H), jnp.float32)
    token_ids = jax.random.randint(ks[8], (T,), 0, V, jnp.int32)

    hidden0 = (jnp.zeros((1, 1, H), jnp.float32), jnp.zeros((1, 1, H), jnp.float32))

    # --- fused T-step decode, f32 weights (tight numerical cross-check) ---
    params_f32 = prepare_params(raw, jnp.float32)
    log_probs, h_seq, c_seq, attn_seq = attn_decoder_decode(
        params_f32, token_ids, hidden0, encoder_outputs)
    jax.block_until_ready((log_probs, h_seq, c_seq, attn_seq))

    tol = 1e-3   # pl.reciprocal(approx=True) in the attention softmax
    h = hidden0[0].reshape(1, H)
    c = hidden0[1].reshape(1, H)
    for t in range(T):
        lp_r, h, c, attn_r = _reference_step(raw, int(token_ids[t]), h, c,
                                             encoder_outputs)
        assert jnp.allclose(log_probs[t:t + 1], lp_r, atol=tol), t
        assert jnp.allclose(h_seq[t:t + 1], h, atol=tol), t
        assert jnp.allclose(c_seq[t:t + 1], c, atol=tol), t
        assert jnp.allclose(attn_seq[t:t + 1], attn_r, atol=tol), t

    # --- single-step wrapper (module-equivalent call signature) ---
    lp1, (h1, c1), aw1 = attn_decoder_forward(params_f32, token_ids[0], hidden0,
                                              encoder_outputs)
    jax.block_until_ready((lp1, h1, c1, aw1))
    lp_r, h_r, c_r, attn_r = _reference_step(raw, int(token_ids[0]),
                                             hidden0[0].reshape(1, H),
                                             hidden0[1].reshape(1, H),
                                             encoder_outputs)
    assert jnp.allclose(lp1, lp_r, atol=tol)
    assert jnp.allclose(h1.reshape(1, H), h_r, atol=tol)
    assert jnp.allclose(c1.reshape(1, H), c_r, atol=tol)
    assert jnp.allclose(aw1.reshape(1, L), attn_r, atol=tol)

    # --- bf16-weight production path (same kernel, looser tolerance) ---
    params_bf16 = prepare_params(raw, jnp.bfloat16)
    lp_b, h_b, c_b, attn_b = attn_decoder_decode(
        params_bf16, token_ids, hidden0, encoder_outputs)
    jax.block_until_ready((lp_b, h_b, c_b, attn_b))
    tol_b = 2e-2
    h = hidden0[0].reshape(1, H)
    c = hidden0[1].reshape(1, H)
    for t in range(T):
        lp_r, h, c, attn_r = _reference_step(raw, int(token_ids[t]), h, c,
                                             encoder_outputs)
        assert jnp.allclose(lp_b[t:t + 1], lp_r, atol=tol_b), t
        assert jnp.allclose(h_b[t:t + 1], h, atol=tol_b), t
        assert jnp.allclose(c_b[t:t + 1], c, atol=tol_b), t
        assert jnp.allclose(attn_b[t:t + 1], attn_r, atol=tol_b), t

    print("KERNEL_OK")
</pallas_src>

<mosaic_0001>
module attributes {stable_mosaic.version = 11 : i64} {
  func.func @kernel(%arg0: memref<8x32xf32, #tpu.memory_space<vmem>>, %arg1: memref<1x32xf32, #tpu.memory_space<vmem>>, %arg2: memref<1x32xf32, #tpu.memory_space<vmem>>, %arg3: memref<32x128xf32, #tpu.memory_space<vmem>>, %arg4: memref<32x128xf32, #tpu.memory_space<vmem>>, %arg5: memref<1x128xf32, #tpu.memory_space<vmem>>, %arg6: memref<32x16xf32, #tpu.memory_space<vmem>>, %arg7: memref<16x32xf32, #tpu.memory_space<vmem>>, %arg8: memref<32x64xf32, #tpu.memory_space<vmem>>, %arg9: memref<32x64xf32, #tpu.memory_space<vmem>>, %arg10: memref<1x64xf32, #tpu.memory_space<vmem>>, %arg11: memref<8x256xf32, #tpu.memory_space<vmem>>) attributes {dimension_semantics = [], scalar_prefetch = 0 : i64, scratch_operands = 0 : i64, tpu.core_type = #tpu.core_type<tc>} {
    %c0 = arith.constant 0 : index
    %c0_0 = arith.constant 0 : index
    %0 = vector.load %arg3[%c0, %c0_0] : memref<32x128xf32, #tpu.memory_space<vmem>>, vector<32x128xf32>
    %c0_1 = arith.constant 0 : index
    %c0_2 = arith.constant 0 : index
    %1 = vector.load %arg4[%c0_1, %c0_2] : memref<32x128xf32, #tpu.memory_space<vmem>>, vector<32x128xf32>
    %c0_3 = arith.constant 0 : index
    %c0_4 = arith.constant 0 : index
    %2 = vector.load %arg5[%c0_3, %c0_4] : memref<1x128xf32, #tpu.memory_space<vmem>>, vector<1x128xf32>
    %c0_5 = arith.constant 0 : index
    %c0_6 = arith.constant 0 : index
    %3 = vector.load %arg6[%c0_5, %c0_6] : memref<32x16xf32, #tpu.memory_space<vmem>>, vector<32x16xf32>
    %c0_7 = arith.constant 0 : index
    %c0_8 = arith.constant 0 : index
    %4 = vector.load %arg7[%c0_7, %c0_8] : memref<16x32xf32, #tpu.memory_space<vmem>>, vector<16x32xf32>
    %c0_9 = arith.constant 0 : index
    %c0_10 = arith.constant 0 : index
    %5 = vector.load %arg8[%c0_9, %c0_10] : memref<32x64xf32, #tpu.memory_space<vmem>>, vector<32x64xf32>
    %c0_11 = arith.constant 0 : index
    %c0_12 = arith.constant 0 : index
    %6 = vector.load %arg9[%c0_11, %c0_12] : memref<32x64xf32, #tpu.memory_space<vmem>>, vector<32x64xf32>
    %c0_13 = arith.constant 0 : index
    %c0_14 = arith.constant 0 : index
    %7 = vector.load %arg10[%c0_13, %c0_14] : memref<1x64xf32, #tpu.memory_space<vmem>>, vector<1x64xf32>
    %c0_15 = arith.constant 0 : index
    %c0_16 = arith.constant 0 : index
    %8 = vector.load %arg1[%c0_15, %c0_16] : memref<1x32xf32, #tpu.memory_space<vmem>>, vector<1x32xf32>
    %c0_17 = arith.constant 0 : index
    %c0_18 = arith.constant 0 : index
    %9 = vector.load %arg2[%c0_17, %c0_18] : memref<1x32xf32, #tpu.memory_space<vmem>>, vector<1x32xf32>
    %c0_i32 = arith.constant 0 : i32
    %10 = arith.index_cast %c0_i32 : i32 to index
    %c0_19 = arith.constant 0 : index
    %11 = vector.load %arg0[%10, %c0_19] : memref<8x32xf32, #tpu.memory_space<vmem>>, vector<1x32xf32>
    %cst = arith.constant dense<0.000000e+00> : vector<1x128xf32>
    %12 = tpu.matmul %11, %0, %cst {dimension_numbers = #tpu.dot_dimension_numbers<[1], [0], [0], [1], [0, 0, 1, 1], [], []>} : vector<1x32xf32>, vector<32x128xf32>, vector<1x128xf32> -> vector<1x128xf32>
    %cst_20 = arith.constant dense<0.000000e+00> : vector<1x128xf32>
    %13 = tpu.matmul %8, %1, %cst_20 {dimension_numbers = #tpu.dot_dimension_numbers<[1], [0], [0], [1], [0, 0, 1, 1], [], []>} : vector<1x32xf32>, vector<32x128xf32>, vector<1x128xf32> -> vector<1x128xf32>
    %14 = arith.addf %12, %13 : vector<1x128xf32>
    %15 = arith.addf %14, %2 : vector<1x128xf32>
    %16 = vector.extract_strided_slice %15 {offsets = [0, 0], sizes = [1, 32], strides = [1, 1]} : vector<1x128xf32> to vector<1x32xf32>
    %17 = arith.negf %16 : vector<1x32xf32>
    %18 = math.exp %17 : vector<1x32xf32>
    %cst_21 = arith.constant 1.000000e+00 : f32
    %19 = vector.broadcast %cst_21 : f32 to vector<1x32xf32>
    %20 = arith.addf %19, %18 : vector<1x32xf32>
    %21 = arith.divf %19, %20 : vector<1x32xf32>
    %22 = vector.extract_strided_slice %15 {offsets = [0, 32], sizes = [1, 32], strides = [1, 1]} : vector<1x128xf32> to vector<1x32xf32>
    %23 = arith.negf %22 : vector<1x32xf32>
    %24 = math.exp %23 : vector<1x32xf32>
    %cst_22 = arith.constant 1.000000e+00 : f32
    %25 = vector.broadcast %cst_22 : f32 to vector<1x32xf32>
    %26 = arith.addf %25, %24 : vector<1x32xf32>
    %27 = arith.divf %25, %26 : vector<1x32xf32>
    %28 = vector.extract_strided_slice %15 {offsets = [0, 64], sizes = [1, 32], strides = [1, 1]} : vector<1x128xf32> to vector<1x32xf32>
    %29 = math.tanh %28 : vector<1x32xf32>
    %30 = vector.extract_strided_slice %15 {offsets = [0, 96], sizes = [1, 32], strides = [1, 1]} : vector<1x128xf32> to vector<1x32xf32>
    %31 = arith.negf %30 : vector<1x32xf32>
    %32 = math.exp %31 : vector<1x32xf32>
    %cst_23 = arith.constant 1.000000e+00 : f32
    %33 = vector.broadcast %cst_23 : f32 to vector<1x32xf32>
    %34 = arith.addf %33, %32 : vector<1x32xf32>
    %35 = arith.divf %33, %34 : vector<1x32xf32>
    %36 = arith.mulf %27, %9 : vector<1x32xf32>
    %37 = arith.mulf %21, %29 : vector<1x32xf32>
    %38 = arith.addf %36, %37 : vector<1x32xf32>
    %39 = math.tanh %38 : vector<1x32xf32>
    %40 = arith.mulf %35, %39 : vector<1x32xf32>
    %cst_24 = arith.constant dense<0.000000e+00> : vector<1x16xf32>
    %41 = tpu.matmul %40, %3, %cst_24 {dimension_numbers = #tpu.dot_dimension_numbers<[1], [0], [0], [1], [0, 0, 1, 1], [], []>} : vector<1x32xf32>, vector<32x16xf32>, vector<1x16xf32> -> vector<1x16xf32>
    %cst_25 = arith.constant dense<0xFF800000> : vector<1xf32>
    %42 = vector.multi_reduction <maximumf>, %41, %cst_25 [1] : vector<1x16xf32> to vector<1xf32>
    %43 = vector.shape_cast %42 : vector<1xf32> to vector<1x1xf32>
    %44 = vector.broadcast %43 : vector<1x1xf32> to vector<1x16xf32>
    %45 = arith.subf %41, %44 : vector<1x16xf32>
    %46 = math.exp %45 : vector<1x16xf32>
    %cst_26 = arith.constant dense<0.000000e+00> : vector<1xf32>
    %47 = vector.multi_reduction <add>, %46, %cst_26 [1] : vector<1x16xf32> to vector<1xf32>
    %48 = vector.shape_cast %47 : vector<1xf32> to vector<1x1xf32>
    %49 = tpu.reciprocal %48 {approx = true} : vector<1x1xf32> -> vector<1x1xf32>
    %50 = vector.broadcast %49 : vector<1x1xf32> to vector<1x16xf32>
    %51 = arith.mulf %46, %50 : vector<1x16xf32>
    %cst_27 = arith.constant dense<0.000000e+00> : vector<1x32xf32>
    %52 = tpu.matmul %51, %4, %cst_27 {dimension_numbers = #tpu.dot_dimension_numbers<[1], [0], [0], [1], [0, 0, 1, 1], [], []>} : vector<1x16xf32>, vector<16x32xf32>, vector<1x32xf32> -> vector<1x32xf32>
    %cst_28 = arith.constant dense<0.000000e+00> : vector<1x64xf32>
    %53 = tpu.matmul %52, %5, %cst_28 {dimension_numbers = #tpu.dot_dimension_numbers<[1], [0], [0], [1], [0, 0, 1, 1], [], []>} : vector<1x32xf32>, vector<32x64xf32>, vector<1x64xf32> -> vector<1x64xf32>
    %cst_29 = arith.constant dense<0.000000e+00> : vector<1x64xf32>
    %54 = tpu.matmul %40, %6, %cst_29 {dimension_numbers = #tpu.dot_dimension_numbers<[1], [0], [0], [1], [0, 0, 1, 1], [], []>} : vector<1x32xf32>, vector<32x64xf32>, vector<1x64xf32> -> vector<1x64xf32>
    %55 = arith.addf %53, %54 : vector<1x64xf32>
    %56 = arith.addf %55, %7 : vector<1x64xf32>
    %cst_30 = arith.constant dense<0xFF800000> : vector<1xf32>
    %57 = vector.multi_reduction <maximumf>, %56, %cst_30 [1] : vector<1x64xf32> to vector<1xf32>
    %58 = vector.shape_cast %57 : vector<1xf32> to vector<1x1xf32>
    %59 = vector.broadcast %58 : vector<1x1xf32> to vector<1x64xf32>
    %60 = arith.subf %56, %59 : vector<1x64xf32>
    %61 = math.exp %60 : vector<1x64xf32>
    %cst_31 = arith.constant dense<0.000000e+00> : vector<1xf32>
    %62 = vector.multi_reduction <add>, %61, %cst_31 [1] : vector<1x64xf32> to vector<1xf32>
    %63 = vector.shape_cast %62 : vector<1xf32> to vector<1x1xf32>
    %64 = math.log %63 : vector<1x1xf32>
    %65 = vector.broadcast %64 : vector<1x1xf32> to vector<1x64xf32>
    %66 = arith.subf %60, %65 : vector<1x64xf32>
    %cst_32 = arith.constant 0.000000e+00 : f32
    %67 = vector.broadcast %cst_32 : f32 to vector<1x112xf32>
    %68 = tpu.concatenate %66, %40, %38, %51, %67 in 1 : vector<1x64xf32>, vector<1x32xf32>, vector<1x32xf32>, vector<1x16xf32>, vector<1x112xf32> -> vector<1x256xf32>
    %69 = arith.index_cast %c0_i32 : i32 to index
    %c0_33 = arith.constant 0 : index
    %70 = vector.load %arg11[%69, %c0_33] : memref<8x256xf32, #tpu.memory_space<vmem>>, vector<1x256xf32>
    tpu.vector_store %arg11[%69, %c0_33], %68 {strides = array<i32>} : memref<8x256xf32, #tpu.memory_space<vmem>>, vector<1x256xf32>,
    %c1_i32 = arith.constant 1 : i32
    %71 = arith.index_cast %c1_i32 : i32 to index
    %c0_34 = arith.constant 0 : index
    %72 = vector.load %arg0[%71, %c0_34] : memref<8x32xf32, #tpu.memory_space<vmem>>, vector<1x32xf32>
    %cst_35 = arith.constant dense<0.000000e+00> : vector<1x128xf32>
    %73 = tpu.matmul %72, %0, %cst_35 {dimension_numbers = #tpu.dot_dimension_numbers<[1], [0], [0], [1], [0, 0, 1, 1], [], []>} : vector<1x32xf32>, vector<32x128xf32>, vector<1x128xf32> -> vector<1x128xf32>
    %cst_36 = arith.constant dense<0.000000e+00> : vector<1x128xf32>
    %74 = tpu.matmul %40, %1, %cst_36 {dimension_numbers = #tpu.dot_dimension_numbers<[1], [0], [0], [1], [0, 0, 1, 1], [], []>} : vector<1x32xf32>, vector<32x128xf32>, vector<1x128xf32> -> vector<1x128xf32>
    %75 = arith.addf %73, %74 : vector<1x128xf32>
    %76 = arith.addf %75, %2 : vector<1x128xf32>
    %77 = vector.extract_strided_slice %76 {offsets = [0, 0], sizes = [1, 32], strides = [1, 1]} : vector<1x128xf32> to vector<1x32xf32>
    %78 = arith.negf %77 : vector<1x32xf32>
    %79 = math.exp %78 : vector<1x32xf32>
    %cst_37 = arith.constant 1.000000e+00 : f32
    %80 = vector.broadcast %cst_37 : f32 to vector<1x32xf32>
    %81 = arith.addf %80, %79 : vector<1x32xf32>
    %82 = arith.divf %80, %81 : vector<1x32xf32>
    %83 = vector.extract_strided_slice %76 {offsets = [0, 32], sizes = [1, 32], strides = [1, 1]} : vector<1x128xf32> to vector<1x32xf32>
    %84 = arith.negf %83 : vector<1x32xf32>
    %85 = math.exp %84 : vector<1x32xf32>
    %cst_38 = arith.constant 1.000000e+00 : f32
    %86 = vector.broadcast %cst_38 : f32 to vector<1x32xf32>
    %87 = arith.addf %86, %85 : vector<1x32xf32>
    %88 = arith.divf %86, %87 : vector<1x32xf32>
    %89 = vector.extract_strided_slice %76 {offsets = [0, 64], sizes = [1, 32], strides = [1, 1]} : vector<1x128xf32> to vector<1x32xf32>
    %90 = math.tanh %89 : vector<1x32xf32>
    %91 = vector.extract_strided_slice %76 {offsets = [0, 96], sizes = [1, 32], strides = [1, 1]} : vector<1x128xf32> to vector<1x32xf32>
    %92 = arith.negf %91 : vector<1x32xf32>
    %93 = math.exp %92 : vector<1x32xf32>
    %cst_39 = arith.constant 1.000000e+00 : f32
    %94 = vector.broadcast %cst_39 : f32 to vector<1x32xf32>
    %95 = arith.addf %94, %93 : vector<1x32xf32>
    %96 = arith.divf %94, %95 : vector<1x32xf32>
    %97 = arith.mulf %88, %38 : vector<1x32xf32>
    %98 = arith.mulf %82, %90 : vector<1x32xf32>
    %99 = arith.addf %97, %98 : vector<1x32xf32>
    %100 = math.tanh %99 : vector<1x32xf32>
    %101 = arith.mulf %96, %100 : vector<1x32xf32>
    %cst_40 = arith.constant dense<0.000000e+00> : vector<1x16xf32>
    %102 = tpu.matmul %101, %3, %cst_40 {dimension_numbers = #tpu.dot_dimension_numbers<[1], [0], [0], [1], [0, 0, 1, 1], [], []>} : vector<1x32xf32>, vector<32x16xf32>, vector<1x16xf32> -> vector<1x16xf32>
    %cst_41 = arith.constant dense<0xFF800000> : vector<1xf32>
    %103 = vector.multi_reduction <maximumf>, %102, %cst_41 [1] : vector<1x16xf32> to vector<1xf32>
    %104 = vector.shape_cast %103 : vector<1xf32> to vector<1x1xf32>
    %105 = vector.broadcast %104 : vector<1x1xf32> to vector<1x16xf32>
    %106 = arith.subf %102, %105 : vector<1x16xf32>
    %107 = math.exp %106 : vector<1x16xf32>
    %cst_42 = arith.constant dense<0.000000e+00> : vector<1xf32>
    %108 = vector.multi_reduction <add>, %107, %cst_42 [1] : vector<1x16xf32> to vector<1xf32>
    %109 = vector.shape_cast %108 : vector<1xf32> to vector<1x1xf32>
    %110 = tpu.reciprocal %109 {approx = true} : vector<1x1xf32> -> vector<1x1xf32>
    %111 = vector.broadcast %110 : vector<1x1xf32> to vector<1x16xf32>
    %112 = arith.mulf %107, %111 : vector<1x16xf32>
    %cst_43 = arith.constant dense<0.000000e+00> : vector<1x32xf32>
    %113 = tpu.matmul %112, %4, %cst_43 {dimension_numbers = #tpu.dot_dimension_numbers<[1], [0], [0], [1], [0, 0, 1, 1], [], []>} : vector<1x16xf32>, vector<16x32xf32>, vector<1x32xf32> -> vector<1x32xf32>
    %cst_44 = arith.constant dense<0.000000e+00> : vector<1x64xf32>
    %114 = tpu.matmul %113, %5, %cst_44 {dimension_numbers = #tpu.dot_dimension_numbers<[1], [0], [0], [1], [0, 0, 1, 1], [], []>} : vector<1x32xf32>, vector<32x64xf32>, vector<1x64xf32> -> vector<1x64xf32>
    %cst_45 = arith.constant dense<0.000000e+00> : vector<1x64xf32>
    %115 = tpu.matmul %101, %6, %cst_45 {dimension_numbers = #tpu.dot_dimension_numbers<[1], [0], [0], [1], [0, 0, 1, 1], [], []>} : vector<1x32xf32>, vector<32x64xf32>, vector<1x64xf32> -> vector<1x64xf32>
    %116 = arith.addf %114, %115 : vector<1x64xf32>
    %117 = arith.addf %116, %7 : vector<1x64xf32>
    %cst_46 = arith.constant dense<0xFF800000> : vector<1xf32>
    %118 = vector.multi_reduction <maximumf>, %117, %cst_46 [1] : vector<1x64xf32> to vector<1xf32>
    %119 = vector.shape_cast %118 : vector<1xf32> to vector<1x1xf32>
    %120 = vector.broadcast %119 : vector<1x1xf32> to vector<1x64xf32>
    %121 = arith.subf %117, %120 : vector<1x64xf32>
    %122 = math.exp %121 : vector<1x64xf32>
    %cst_47 = arith.constant dense<0.000000e+00> : vector<1xf32>
    %123 = vector.multi_reduction <add>, %122, %cst_47 [1] : vector<1x64xf32> to vector<1xf32>
    %124 = vector.shape_cast %123 : vector<1xf32> to vector<1x1xf32>
    %125 = math.log %124 : vector<1x1xf32>
    %126 = vector.broadcast %125 : vector<1x1xf32> to vector<1x64xf32>
    %127 = arith.subf %121, %126 : vector<1x64xf32>
    %cst_48 = arith.constant 0.000000e+00 : f32
    %128 = vector.broadcast %cst_48 : f32 to vector<1x112xf32>
    %129 = tpu.concatenate %127, %101, %99, %112, %128 in 1 : vector<1x64xf32>, vector<1x32xf32>, vector<1x32xf32>, vector<1x16xf32>, vector<1x112xf32> -> vector<1x256xf32>
    %130 = arith.index_cast %c1_i32 : i32 to index
    %c0_49 = arith.constant 0 : index
    %131 = vector.load %arg11[%130, %c0_49] : memref<8x256xf32, #tpu.memory_space<vmem>>, vector<1x256xf32>
    tpu.vector_store %arg11[%130, %c0_49], %129 {strides = array<i32>} : memref<8x256xf32, #tpu.memory_space<vmem>>, vector<1x256xf32>,
    %c2_i32 = arith.constant 2 : i32
    %132 = arith.index_cast %c2_i32 : i32 to index
    %c0_50 = arith.constant 0 : index
    %133 = vector.load %arg0[%132, %c0_50] : memref<8x32xf32, #tpu.memory_space<vmem>>, vector<1x32xf32>
    %cst_51 = arith.constant dense<0.000000e+00> : vector<1x128xf32>
    %134 = tpu.matmul %133, %0, %cst_51 {dimension_numbers = #tpu.dot_dimension_numbers<[1], [0], [0], [1], [0, 0, 1, 1], [], []>} : vector<1x32xf32>, vector<32x128xf32>, vector<1x128xf32> -> vector<1x128xf32>
    %cst_52 = arith.constant dense<0.000000e+00> : vector<1x128xf32>
    %135 = tpu.matmul %101, %1, %cst_52 {dimension_numbers = #tpu.dot_dimension_numbers<[1], [0], [0], [1], [0, 0, 1, 1], [], []>} : vector<1x32xf32>, vector<32x128xf32>, vector<1x128xf32> -> vector<1x128xf32>
    %136 = arith.addf %134, %135 : vector<1x128xf32>
    %137 = arith.addf %136, %2 : vector<1x128xf32>
    %138 = vector.extract_strided_slice %137 {offsets = [0, 0], sizes = [1, 32], strides = [1, 1]} : vector<1x128xf32> to vector<1x32xf32>
    %139 = arith.negf %138 : vector<1x32xf32>
    %140 = math.exp %139 : vector<1x32xf32>
    %cst_53 = arith.constant 1.000000e+00 : f32
    %141 = vector.broadcast %cst_53 : f32 to vector<1x32xf32>
    %142 = arith.addf %141, %140 : vector<1x32xf32>
    %143 = arith.divf %141, %142 : vector<1x32xf32>
    %144 = vector.extract_strided_slice %137 {offsets = [0, 32], sizes = [1, 32], strides = [1, 1]} : vector<1x128xf32> to vector<1x32xf32>
    %145 = arith.negf %144 : vector<1x32xf32>
    %146 = math.exp %145 : vector<1x32xf32>
    %cst_54 = arith.constant 1.000000e+00 : f32
    %147 = vector.broadcast %cst_54 : f32 to vector<1x32xf32>
    %148 = arith.addf %147, %146 : vector<1x32xf32>
    %149 = arith.divf %147, %148 : vector<1x32xf32>
    %150 = vector.extract_strided_slice %137 {offsets = [0, 64], sizes = [1, 32], strides = [1, 1]} : vector<1x128xf32> to vector<1x32xf32>
    %151 = math.tanh %150 : vector<1x32xf32>
    %152 = vector.extract_strided_slice %137 {offsets = [0, 96], sizes = [1, 32], strides = [1, 1]} : vector<1x128xf32> to vector<1x32xf32>
    %153 = arith.negf %152 : vector<1x32xf32>
    %154 = math.exp %153 : vector<1x32xf32>
    %cst_55 = arith.constant 1.000000e+00 : f32
    %155 = vector.broadcast %cst_55 : f32 to vector<1x32xf32>
    %156 = arith.addf %155, %154 : vector<1x32xf32>
    %157 = arith.divf %155, %156 : vector<1x32xf32>
    %158 = arith.mulf %149, %99 : vector<1x32xf32>
    %159 = arith.mulf %143, %151 : vector<1x32xf32>
    %160 = arith.addf %158, %159 : vector<1x32xf32>
    %161 = math.tanh %160 : vector<1x32xf32>
    %162 = arith.mulf %157, %161 : vector<1x32xf32>
    %cst_56 = arith.constant dense<0.000000e+00> : vector<1x16xf32>
    %163 = tpu.matmul %162, %3, %cst_56 {dimension_numbers = #tpu.dot_dimension_numbers<[1], [0], [0], [1], [0, 0, 1, 1], [], []>} : vector<1x32xf32>, vector<32x16xf32>, vector<1x16xf32> -> vector<1x16xf32>
    %cst_57 = arith.constant dense<0xFF800000> : vector<1xf32>
    %164 = vector.multi_reduction <maximumf>, %163, %cst_57 [1] : vector<1x16xf32> to vector<1xf32>
    %165 = vector.shape_cast %164 : vector<1xf32> to vector<1x1xf32>
    %166 = vector.broadcast %165 : vector<1x1xf32> to vector<1x16xf32>
    %167 = arith.subf %163, %166 : vector<1x16xf32>
    %168 = math.exp %167 : vector<1x16xf32>
    %cst_58 = arith.constant dense<0.000000e+00> : vector<1xf32>
    %169 = vector.multi_reduction <add>, %168, %cst_58 [1] : vector<1x16xf32> to vector<1xf32>
    %170 = vector.shape_cast %169 : vector<1xf32> to vector<1x1xf32>
    %171 = tpu.reciprocal %170 {approx = true} : vector<1x1xf32> -> vector<1x1xf32>
    %172 = vector.broadcast %171 : vector<1x1xf32> to vector<1x16xf32>
    %173 = arith.mulf %168, %172 : vector<1x16xf32>
    %cst_59 = arith.constant dense<0.000000e+00> : vector<1x32xf32>
    %174 = tpu.matmul %173, %4, %cst_59 {dimension_numbers = #tpu.dot_dimension_numbers<[1], [0], [0], [1], [0, 0, 1, 1], [], []>} : vector<1x16xf32>, vector<16x32xf32>, vector<1x32xf32> -> vector<1x32xf32>
    %cst_60 = arith.constant dense<0.000000e+00> : vector<1x64xf32>
    %175 = tpu.matmul %174, %5, %cst_60 {dimension_numbers = #tpu.dot_dimension_numbers<[1], [0], [0], [1], [0, 0, 1, 1], [], []>} : vector<1x32xf32>, vector<32x64xf32>, vector<1x64xf32> -> vector<1x64xf32>
    %cst_61 = arith.constant dense<0.000000e+00> : vector<1x64xf32>
    %176 = tpu.matmul %162, %6, %cst_61 {dimension_numbers = #tpu.dot_dimension_numbers<[1], [0], [0], [1], [0, 0, 1, 1], [], []>} : vector<1x32xf32>, vector<32x64xf32>, vector<1x64xf32> -> vector<1x64xf32>
    %177 = arith.addf %175, %176 : vector<1x64xf32>
    %178 = arith.addf %177, %7 : vector<1x64xf32>
    %cst_62 = arith.constant dense<0xFF800000> : vector<1xf32>
    %179 = vector.multi_reduction <maximumf>, %178, %cst_62 [1] : vector<1x64xf32> to vector<1xf32>
    %180 = vector.shape_cast %179 : vector<1xf32> to vector<1x1xf32>
    %181 = vector.broadcast %180 : vector<1x1xf32> to vector<1x64xf32>
    %182 = arith.subf %178, %181 : vector<1x64xf32>
    %183 = math.exp %182 : vector<1x64xf32>
    %cst_63 = arith.constant dense<0.000000e+00> : vector<1xf32>
    %184 = vector.multi_reduction <add>, %183, %cst_63 [1] : vector<1x64xf32> to vector<1xf32>
    %185 = vector.shape_cast %184 : vector<1xf32> to vector<1x1xf32>
    %186 = math.log %185 : vector<1x1xf32>
    %187 = vector.broadcast %186 : vector<1x1xf32> to vector<1x64xf32>
    %188 = arith.subf %182, %187 : vector<1x64xf32>
    %cst_64 = arith.constant 0.000000e+00 : f32
    %189 = vector.broadcast %cst_64 : f32 to vector<1x112xf32>
    %190 = tpu.concatenate %188, %162, %160, %173, %189 in 1 : vector<1x64xf32>, vector<1x32xf32>, vector<1x32xf32>, vector<1x16xf32>, vector<1x112xf32> -> vector<1x256xf32>
    %191 = arith.index_cast %c2_i32 : i32 to index
    %c0_65 = arith.constant 0 : index
    %192 = vector.load %arg11[%191, %c0_65] : memref<8x256xf32, #tpu.memory_space<vmem>>, vector<1x256xf32>
    tpu.vector_store %arg11[%191, %c0_65], %190 {strides = array<i32>} : memref<8x256xf32, #tpu.memory_space<vmem>>, vector<1x256xf32>,
    %c3_i32 = arith.constant 3 : i32
    %193 = arith.index_cast %c3_i32 : i32 to index
    %c0_66 = arith.constant 0 : index
    %194 = vector.load %arg0[%193, %c0_66] : memref<8x32xf32, #tpu.memory_space<vmem>>, vector<1x32xf32>
    %cst_67 = arith.constant dense<0.000000e+00> : vector<1x128xf32>
    %195 = tpu.matmul %194, %0, %cst_67 {dimension_numbers = #tpu.dot_dimension_numbers<[1], [0], [0], [1], [0, 0, 1, 1], [], []>} : vector<1x32xf32>, vector<32x128xf32>, vector<1x128xf32> -> vector<1x128xf32>
    %cst_68 = arith.constant dense<0.000000e+00> : vector<1x128xf32>
    %196 = tpu.matmul %162, %1, %cst_68 {dimension_numbers = #tpu.dot_dimension_numbers<[1], [0], [0], [1], [0, 0, 1, 1], [], []>} : vector<1x32xf32>, vector<32x128xf32>, vector<1x128xf32> -> vector<1x128xf32>
    %197 = arith.addf %195, %196 : vector<1x128xf32>
    %198 = arith.addf %197, %2 : vector<1x128xf32>
    %199 = vector.extract_strided_slice %198 {offsets = [0, 0], sizes = [1, 32], strides = [1, 1]} : vector<1x128xf32> to vector<1x32xf32>
    %200 = arith.negf %199 : vector<1x32xf32>
    %201 = math.exp %200 : vector<1x32xf32>
    %cst_69 = arith.constant 1.000000e+00 : f32
    %202 = vector.broadcast %cst_69 : f32 to vector<1x32xf32>
    %203 = arith.addf %202, %201 : vector<1x32xf32>
    %204 = arith.divf %202, %203 : vector<1x32xf32>
    %205 = vector.extract_strided_slice %198 {offsets = [0, 32], sizes = [1, 32], strides = [1, 1]} : vector<1x128xf32> to vector<1x32xf32>
    %206 = arith.negf %205 : vector<1x32xf32>
    %207 = math.exp %206 : vector<1x32xf32>
    %cst_70 = arith.constant 1.000000e+00 : f32
    %208 = vector.broadcast %cst_70 : f32 to vector<1x32xf32>
    %209 = arith.addf %208, %207 : vector<1x32xf32>
    %210 = arith.divf %208, %209 : vector<1x32xf32>
    %211 = vector.extract_strided_slice %198 {offsets = [0, 64], sizes = [1, 32], strides = [1, 1]} : vector<1x128xf32> to vector<1x32xf32>
    %212 = math.tanh %211 : vector<1x32xf32>
    %213 = vector.extract_strided_slice %198 {offsets = [0, 96], sizes = [1, 32], strides = [1, 1]} : vector<1x128xf32> to vector<1x32xf32>
    %214 = arith.negf %213 : vector<1x32xf32>
    %215 = math.exp %214 : vector<1x32xf32>
    %cst_71 = arith.constant 1.000000e+00 : f32
    %216 = vector.broadcast %cst_71 : f32 to vector<1x32xf32>
    %217 = arith.addf %216, %215 : vector<1x32xf32>
    %218 = arith.divf %216, %217 : vector<1x32xf32>
    %219 = arith.mulf %210, %160 : vector<1x32xf32>
    %220 = arith.mulf %204, %212 : vector<1x32xf32>
    %221 = arith.addf %219, %220 : vector<1x32xf32>
    %222 = math.tanh %221 : vector<1x32xf32>
    %223 = arith.mulf %218, %222 : vector<1x32xf32>
    %cst_72 = arith.constant dense<0.000000e+00> : vector<1x16xf32>
    %224 = tpu.matmul %223, %3, %cst_72 {dimension_numbers = #tpu.dot_dimension_numbers<[1], [0], [0], [1], [0, 0, 1, 1], [], []>} : vector<1x32xf32>, vector<32x16xf32>, vector<1x16xf32> -> vector<1x16xf32>
    %cst_73 = arith.constant dense<0xFF800000> : vector<1xf32>
    %225 = vector.multi_reduction <maximumf>, %224, %cst_73 [1] : vector<1x16xf32> to vector<1xf32>
    %226 = vector.shape_cast %225 : vector<1xf32> to vector<1x1xf32>
    %227 = vector.broadcast %226 : vector<1x1xf32> to vector<1x16xf32>
    %228 = arith.subf %224, %227 : vector<1x16xf32>
    %229 = math.exp %228 : vector<1x16xf32>
    %cst_74 = arith.constant dense<0.000000e+00> : vector<1xf32>
    %230 = vector.multi_reduction <add>, %229, %cst_74 [1] : vector<1x16xf32> to vector<1xf32>
    %231 = vector.shape_cast %230 : vector<1xf32> to vector<1x1xf32>
    %232 = tpu.reciprocal %231 {approx = true} : vector<1x1xf32> -> vector<1x1xf32>
    %233 = vector.broadcast %232 : vector<1x1xf32> to vector<1x16xf32>
    %234 = arith.mulf %229, %233 : vector<1x16xf32>
    %cst_75 = arith.constant dense<0.000000e+00> : vector<1x32xf32>
    %235 = tpu.matmul %234, %4, %cst_75 {dimension_numbers = #tpu.dot_dimension_numbers<[1], [0], [0], [1], [0, 0, 1, 1], [], []>} : vector<1x16xf32>, vector<16x32xf32>, vector<1x32xf32> -> vector<1x32xf32>
    %cst_76 = arith.constant dense<0.000000e+00> : vector<1x64xf32>
    %236 = tpu.matmul %235, %5, %cst_76 {dimension_numbers = #tpu.dot_dimension_numbers<[1], [0], [0], [1], [0, 0, 1, 1], [], []>} : vector<1x32xf32>, vector<32x64xf32>, vector<1x64xf32> -> vector<1x64xf32>
    %cst_77 = arith.constant dense<0.000000e+00> : vector<1x64xf32>
    %237 = tpu.matmul %223, %6, %cst_77 {dimension_numbers = #tpu.dot_dimension_numbers<[1], [0], [0], [1], [0, 0, 1, 1], [], []>} : vector<1x32xf32>, vector<32x64xf32>, vector<1x64xf32> -> vector<1x64xf32>
    %238 = arith.addf %236, %237 : vector<1x64xf32>
    %239 = arith.addf %238, %7 : vector<1x64xf32>
    %cst_78 = arith.constant dense<0xFF800000> : vector<1xf32>
    %240 = vector.multi_reduction <maximumf>, %239, %cst_78 [1] : vector<1x64xf32> to vector<1xf32>
    %241 = vector.shape_cast %240 : vector<1xf32> to vector<1x1xf32>
    %242 = vector.broadcast %241 : vector<1x1xf32> to vector<1x64xf32>
    %243 = arith.subf %239, %242 : vector<1x64xf32>
    %244 = math.exp %243 : vector<1x64xf32>
    %cst_79 = arith.constant dense<0.000000e+00> : vector<1xf32>
    %245 = vector.multi_reduction <add>, %244, %cst_79 [1] : vector<1x64xf32> to vector<1xf32>
    %246 = vector.shape_cast %245 : vector<1xf32> to vector<1x1xf32>
    %247 = math.log %246 : vector<1x1xf32>
    %248 = vector.broadcast %247 : vector<1x1xf32> to vector<1x64xf32>
    %249 = arith.subf %243, %248 : vector<1x64xf32>
    %cst_80 = arith.constant 0.000000e+00 : f32
    %250 = vector.broadcast %cst_80 : f32 to vector<1x112xf32>
    %251 = tpu.concatenate %249, %223, %221, %234, %250 in 1 : vector<1x64xf32>, vector<1x32xf32>, vector<1x32xf32>, vector<1x16xf32>, vector<1x112xf32> -> vector<1x256xf32>
    %252 = arith.index_cast %c3_i32 : i32 to index
    %c0_81 = arith.constant 0 : index
    %253 = vector.load %arg11[%252, %c0_81] : memref<8x256xf32, #tpu.memory_space<vmem>>, vector<1x256xf32>
    tpu.vector_store %arg11[%252, %c0_81], %251 {strides = array<i32>} : memref<8x256xf32, #tpu.memory_space<vmem>>, vector<1x256xf32>,
    %c4_i32 = arith.constant 4 : i32
    %254 = arith.index_cast %c4_i32 : i32 to index
    %c0_82 = arith.constant 0 : index
    %255 = vector.load %arg0[%254, %c0_82] : memref<8x32xf32, #tpu.memory_space<vmem>>, vector<1x32xf32>
    %cst_83 = arith.constant dense<0.000000e+00> : vector<1x128xf32>
    %256 = tpu.matmul %255, %0, %cst_83 {dimension_numbers = #tpu.dot_dimension_numbers<[1], [0], [0], [1], [0, 0, 1, 1], [], []>} : vector<1x32xf32>, vector<32x128xf32>, vector<1x128xf32> -> vector<1x128xf32>
    %cst_84 = arith.constant dense<0.000000e+00> : vector<1x128xf32>
    %257 = tpu.matmul %223, %1, %cst_84 {dimension_numbers = #tpu.dot_dimension_numbers<[1], [0], [0], [1], [0, 0, 1, 1], [], []>} : vector<1x32xf32>, vector<32x128xf32>, vector<1x128xf32> -> vector<1x128xf32>
    %258 = arith.addf %256, %257 : vector<1x128xf32>
    %259 = arith.addf %258, %2 : vector<1x128xf32>
    %260 = vector.extract_strided_slice %259 {offsets = [0, 0], sizes = [1, 32], strides = [1, 1]} : vector<1x128xf32> to vector<1x32xf32>
    %261 = arith.negf %260 : vector<1x32xf32>
    %262 = math.exp %261 : vector<1x32xf32>
    %cst_85 = arith.constant 1.000000e+00 : f32
    %263 = vector.broadcast %cst_85 : f32 to vector<1x32xf32>
    %264 = arith.addf %263, %262 : vector<1x32xf32>
    %265 = arith.divf %263, %264 : vector<1x32xf32>
    %266 = vector.extract_strided_slice %259 {offsets = [0, 32], sizes = [1, 32], strides = [1, 1]} : vector<1x128xf32> to vector<1x32xf32>
    %267 = arith.negf %266 : vector<1x32xf32>
    %268 = math.exp %267 : vector<1x32xf32>
    %cst_86 = arith.constant 1.000000e+00 : f32
    %269 = vector.broadcast %cst_86 : f32 to vector<1x32xf32>
    %270 = arith.addf %269, %268 : vector<1x32xf32>
    %271 = arith.divf %269, %270 : vector<1x32xf32>
    %272 = vector.extract_strided_slice %259 {offsets = [0, 64], sizes = [1, 32], strides = [1, 1]} : vector<1x128xf32> to vector<1x32xf32>
    %273 = math.tanh %272 : vector<1x32xf32>
    %274 = vector.extract_strided_slice %259 {offsets = [0, 96], sizes = [1, 32], strides = [1, 1]} : vector<1x128xf32> to vector<1x32xf32>
    %275 = arith.negf %274 : vector<1x32xf32>
    %276 = math.exp %275 : vector<1x32xf32>
    %cst_87 = arith.constant 1.000000e+00 : f32
    %277 = vector.broadcast %cst_87 : f32 to vector<1x32xf32>
    %278 = arith.addf %277, %276 : vector<1x32xf32>
    %279 = arith.divf %277, %278 : vector<1x32xf32>
    %280 = arith.mulf %271, %221 : vector<1x32xf32>
    %281 = arith.mulf %265, %273 : vector<1x32xf32>
    %282 = arith.addf %280, %281 : vector<1x32xf32>
    %283 = math.tanh %282 : vector<1x32xf32>
    %284 = arith.mulf %279, %283 : vector<1x32xf32>
    %cst_88 = arith.constant dense<0.000000e+00> : vector<1x16xf32>
    %285 = tpu.matmul %284, %3, %cst_88 {dimension_numbers = #tpu.dot_dimension_numbers<[1], [0], [0], [1], [0, 0, 1, 1], [], []>} : vector<1x32xf32>, vector<32x16xf32>, vector<1x16xf32> -> vector<1x16xf32>
    %cst_89 = arith.constant dense<0xFF800000> : vector<1xf32>
    %286 = vector.multi_reduction <maximumf>, %285, %cst_89 [1] : vector<1x16xf32> to vector<1xf32>
    %287 = vector.shape_cast %286 : vector<1xf32> to vector<1x1xf32>
    %288 = vector.broadcast %287 : vector<1x1xf32> to vector<1x16xf32>
    %289 = arith.subf %285, %288 : vector<1x16xf32>
    %290 = math.exp %289 : vector<1x16xf32>
    %cst_90 = arith.constant dense<0.000000e+00> : vector<1xf32>
    %291 = vector.multi_reduction <add>, %290, %cst_90 [1] : vector<1x16xf32> to vector<1xf32>
    %292 = vector.shape_cast %291 : vector<1xf32> to vector<1x1xf32>
    %293 = tpu.reciprocal %292 {approx = true} : vector<1x1xf32> -> vector<1x1xf32>
    %294 = vector.broadcast %293 : vector<1x1xf32> to vector<1x16xf32>
    %295 = arith.mulf %290, %294 : vector<1x16xf32>
    %cst_91 = arith.constant dense<0.000000e+00> : vector<1x32xf32>
    %296 = tpu.matmul %295, %4, %cst_91 {dimension_numbers = #tpu.dot_dimension_numbers<[1], [0], [0], [1], [0, 0, 1, 1], [], []>} : vector<1x16xf32>, vector<16x32xf32>, vector<1x32xf32> -> vector<1x32xf32>
    %cst_92 = arith.constant dense<0.000000e+00> : vector<1x64xf32>
    %297 = tpu.matmul %296, %5, %cst_92 {dimension_numbers = #tpu.dot_dimension_numbers<[1], [0], [0], [1], [0, 0, 1, 1], [], []>} : vector<1x32xf32>, vector<32x64xf32>, vector<1x64xf32> -> vector<1x64xf32>
    %cst_93 = arith.constant dense<0.000000e+00> : vector<1x64xf32>
    %298 = tpu.matmul %284, %6, %cst_93 {dimension_numbers = #tpu.dot_dimension_numbers<[1], [0], [0], [1], [0, 0, 1, 1], [], []>} : vector<1x32xf32>, vector<32x64xf32>, vector<1x64xf32> -> vector<1x64xf32>
    %299 = arith.addf %297, %298 : vector<1x64xf32>
    %300 = arith.addf %299, %7 : vector<1x64xf32>
    %cst_94 = arith.constant dense<0xFF800000> : vector<1xf32>
    %301 = vector.multi_reduction <maximumf>, %300, %cst_94 [1] : vector<1x64xf32> to vector<1xf32>
    %302 = vector.shape_cast %301 : vector<1xf32> to vector<1x1xf32>
    %303 = vector.broadcast %302 : vector<1x1xf32> to vector<1x64xf32>
    %304 = arith.subf %300, %303 : vector<1x64xf32>
    %305 = math.exp %304 : vector<1x64xf32>
    %cst_95 = arith.constant dense<0.000000e+00> : vector<1xf32>
    %306 = vector.multi_reduction <add>, %305, %cst_95 [1] : vector<1x64xf32> to vector<1xf32>
    %307 = vector.shape_cast %306 : vector<1xf32> to vector<1x1xf32>
    %308 = math.log %307 : vector<1x1xf32>
    %309 = vector.broadcast %308 : vector<1x1xf32> to vector<1x64xf32>
    %310 = arith.subf %304, %309 : vector<1x64xf32>
    %cst_96 = arith.constant 0.000000e+00 : f32
    %311 = vector.broadcast %cst_96 : f32 to vector<1x112xf32>
    %312 = tpu.concatenate %310, %284, %282, %295, %311 in 1 : vector<1x64xf32>, vector<1x32xf32>, vector<1x32xf32>, vector<1x16xf32>, vector<1x112xf32> -> vector<1x256xf32>
    %313 = arith.index_cast %c4_i32 : i32 to index
    %c0_97 = arith.constant 0 : index
    %314 = vector.load %arg11[%313, %c0_97] : memref<8x256xf32, #tpu.memory_space<vmem>>, vector<1x256xf32>
    tpu.vector_store %arg11[%313, %c0_97], %312 {strides = array<i32>} : memref<8x256xf32, #tpu.memory_space<vmem>>, vector<1x256xf32>,
    %c5_i32 = arith.constant 5 : i32
    %315 = arith.index_cast %c5_i32 : i32 to index
    %c0_98 = arith.constant 0 : index
    %316 = vector.load %arg0[%315, %c0_98] : memref<8x32xf32, #tpu.memory_space<vmem>>, vector<1x32xf32>
    %cst_99 = arith.constant dense<0.000000e+00> : vector<1x128xf32>
    %317 = tpu.matmul %316, %0, %cst_99 {dimension_numbers = #tpu.dot_dimension_numbers<[1], [0], [0], [1], [0, 0, 1, 1], [], []>} : vector<1x32xf32>, vector<32x128xf32>, vector<1x128xf32> -> vector<1x128xf32>
    %cst_100 = arith.constant dense<0.000000e+00> : vector<1x128xf32>
    %318 = tpu.matmul %284, %1, %cst_100 {dimension_numbers = #tpu.dot_dimension_numbers<[1], [0], [0], [1], [0, 0, 1, 1], [], []>} : vector<1x32xf32>, vector<32x128xf32>, vector<1x128xf32> -> vector<1x128xf32>
    %319 = arith.addf %317, %318 : vector<1x128xf32>
    %320 = arith.addf %319, %2 : vector<1x128xf32>
    %321 = vector.extract_strided_slice %320 {offsets = [0, 0], sizes = [1, 32], strides = [1, 1]} : vector<1x128xf32> to vector<1x32xf32>
    %322 = arith.negf %321 : vector<1x32xf32>
    %323 = math.exp %322 : vector<1x32xf32>
    %cst_101 = arith.constant 1.000000e+00 : f32
    %324 = vector.broadcast %cst_101 : f32 to vector<1x32xf32>
    %325 = arith.addf %324, %323 : vector<1x32xf32>
    %326 = arith.divf %324, %325 : vector<1x32xf32>
    %327 = vector.extract_strided_slice %320 {offsets = [0, 32], sizes = [1, 32], strides = [1, 1]} : vector<1x128xf32> to vector<1x32xf32>
    %328 = arith.negf %327 : vector<1x32xf32>
    %329 = math.exp %328 : vector<1x32xf32>
    %cst_102 = arith.constant 1.000000e+00 : f32
    %330 = vector.broadcast %cst_102 : f32 to vector<1x32xf32>
    %331 = arith.addf %330, %329 : vector<1x32xf32>
    %332 = arith.divf %330, %331 : vector<1x32xf32>
    %333 = vector.extract_strided_slice %320 {offsets = [0, 64], sizes = [1, 32], strides = [1, 1]} : vector<1x128xf32> to vector<1x32xf32>
    %334 = math.tanh %333 : vector<1x32xf32>
    %335 = vector.extract_strided_slice %320 {offsets = [0, 96], sizes = [1, 32], strides = [1, 1]} : vector<1x128xf32> to vector<1x32xf32>
    %336 = arith.negf %335 : vector<1x32xf32>
    %337 = math.exp %336 : vector<1x32xf32>
    %cst_103 = arith.constant 1.000000e+00 : f32
    %338 = vector.broadcast %cst_103 : f32 to vector<1x32xf32>
    %339 = arith.addf %338, %337 : vector<1x32xf32>
    %340 = arith.divf %338, %339 : vector<1x32xf32>
    %341 = arith.mulf %332, %282 : vector<1x32xf32>
    %342 = arith.mulf %326, %334 : vector<1x32xf32>
    %343 = arith.addf %341, %342 : vector<1x32xf32>
    %344 = math.tanh %343 : vector<1x32xf32>
    %345 = arith.mulf %340, %344 : vector<1x32xf32>
    %cst_104 = arith.constant dense<0.000000e+00> : vector<1x16xf32>
    %346 = tpu.matmul %345, %3, %cst_104 {dimension_numbers = #tpu.dot_dimension_numbers<[1], [0], [0], [1], [0, 0, 1, 1], [], []>} : vector<1x32xf32>, vector<32x16xf32>, vector<1x16xf32> -> vector<1x16xf32>
    %cst_105 = arith.constant dense<0xFF800000> : vector<1xf32>
    %347 = vector.multi_reduction <maximumf>, %346, %cst_105 [1] : vector<1x16xf32> to vector<1xf32>
    %348 = vector.shape_cast %347 : vector<1xf32> to vector<1x1xf32>
    %349 = vector.broadcast %348 : vector<1x1xf32> to vector<1x16xf32>
    %350 = arith.subf %346, %349 : vector<1x16xf32>
    %351 = math.exp %350 : vector<1x16xf32>
    %cst_106 = arith.constant dense<0.000000e+00> : vector<1xf32>
    %352 = vector.multi_reduction <add>, %351, %cst_106 [1] : vector<1x16xf32> to vector<1xf32>
    %353 = vector.shape_cast %352 : vector<1xf32> to vector<1x1xf32>
    %354 = tpu.reciprocal %353 {approx = true} : vector<1x1xf32> -> vector<1x1xf32>
    %355 = vector.broadcast %354 : vector<1x1xf32> to vector<1x16xf32>
    %356 = arith.mulf %351, %355 : vector<1x16xf32>
    %cst_107 = arith.constant dense<0.000000e+00> : vector<1x32xf32>
    %357 = tpu.matmul %356, %4, %cst_107 {dimension_numbers = #tpu.dot_dimension_numbers<[1], [0], [0], [1], [0, 0, 1, 1], [], []>} : vector<1x16xf32>, vector<16x32xf32>, vector<1x32xf32> -> vector<1x32xf32>
    %cst_108 = arith.constant dense<0.000000e+00> : vector<1x64xf32>
    %358 = tpu.matmul %357, %5, %cst_108 {dimension_numbers = #tpu.dot_dimension_numbers<[1], [0], [0], [1], [0, 0, 1, 1], [], []>} : vector<1x32xf32>, vector<32x64xf32>, vector<1x64xf32> -> vector<1x64xf32>
    %cst_109 = arith.constant dense<0.000000e+00> : vector<1x64xf32>
    %359 = tpu.matmul %345, %6, %cst_109 {dimension_numbers = #tpu.dot_dimension_numbers<[1], [0], [0], [1], [0, 0, 1, 1], [], []>} : vector<1x32xf32>, vector<32x64xf32>, vector<1x64xf32> -> vector<1x64xf32>
    %360 = arith.addf %358, %359 : vector<1x64xf32>
    %361 = arith.addf %360, %7 : vector<1x64xf32>
    %cst_110 = arith.constant dense<0xFF800000> : vector<1xf32>
    %362 = vector.multi_reduction <maximumf>, %361, %cst_110 [1] : vector<1x64xf32> to vector<1xf32>
    %363 = vector.shape_cast %362 : vector<1xf32> to vector<1x1xf32>
    %364 = vector.broadcast %363 : vector<1x1xf32> to vector<1x64xf32>
    %365 = arith.subf %361, %364 : vector<1x64xf32>
    %366 = math.exp %365 : vector<1x64xf32>
    %cst_111 = arith.constant dense<0.000000e+00> : vector<1xf32>
    %367 = vector.multi_reduction <add>, %366, %cst_111 [1] : vector<1x64xf32> to vector<1xf32>
    %368 = vector.shape_cast %367 : vector<1xf32> to vector<1x1xf32>
    %369 = math.log %368 : vector<1x1xf32>
    %370 = vector.broadcast %369 : vector<1x1xf32> to vector<1x64xf32>
    %371 = arith.subf %365, %370 : vector<1x64xf32>
    %cst_112 = arith.constant 0.000000e+00 : f32
    %372 = vector.broadcast %cst_112 : f32 to vector<1x112xf32>
    %373 = tpu.concatenate %371, %345, %343, %356, %372 in 1 : vector<1x64xf32>, vector<1x32xf32>, vector<1x32xf32>, vector<1x16xf32>, vector<1x112xf32> -> vector<1x256xf32>
    %374 = arith.index_cast %c5_i32 : i32 to index
    %c0_113 = arith.constant 0 : index
    %375 = vector.load %arg11[%374, %c0_113] : memref<8x256xf32, #tpu.memory_space<vmem>>, vector<1x256xf32>
    tpu.vector_store %arg11[%374, %c0_113], %373 {strides = array<i32>} : memref<8x256xf32, #tpu.memory_space<vmem>>, vector<1x256xf32>,
    %c6_i32 = arith.constant 6 : i32
    %376 = arith.index_cast %c6_i32 : i32 to index
    %c0_114 = arith.constant 0 : index
    %377 = vector.load %arg0[%376, %c0_114] : memref<8x32xf32, #tpu.memory_space<vmem>>, vector<1x32xf32>
    %cst_115 = arith.constant dense<0.000000e+00> : vector<1x128xf32>
    %378 = tpu.matmul %377, %0, %cst_115 {dimension_numbers = #tpu.dot_dimension_numbers<[1], [0], [0], [1], [0, 0, 1, 1], [], []>} : vector<1x32xf32>, vector<32x128xf32>, vector<1x128xf32> -> vector<1x128xf32>
    %cst_116 = arith.constant dense<0.000000e+00> : vector<1x128xf32>
    %379 = tpu.matmul %345, %1, %cst_116 {dimension_numbers = #tpu.dot_dimension_numbers<[1], [0], [0], [1], [0, 0, 1, 1], [], []>} : vector<1x32xf32>, vector<32x128xf32>, vector<1x128xf32> -> vector<1x128xf32>
    %380 = arith.addf %378, %379 : vector<1x128xf32>
    %381 = arith.addf %380, %2 : vector<1x128xf32>
    %382 = vector.extract_strided_slice %381 {offsets = [0, 0], sizes = [1, 32], strides = [1, 1]} : vector<1x128xf32> to vector<1x32xf32>
    %383 = arith.negf %382 : vector<1x32xf32>
    %384 = math.exp %383 : vector<1x32xf32>
    %cst_117 = arith.constant 1.000000e+00 : f32
    %385 = vector.broadcast %cst_117 : f32 to vector<1x32xf32>
    %386 = arith.addf %385, %384 : vector<1x32xf32>
    %387 = arith.divf %385, %386 : vector<1x32xf32>
    %388 = vector.extract_strided_slice %381 {offsets = [0, 32], sizes = [1, 32], strides = [1, 1]} : vector<1x128xf32> to vector<1x32xf32>
    %389 = arith.negf %388 : vector<1x32xf32>
    %390 = math.exp %389 : vector<1x32xf32>
    %cst_118 = arith.constant 1.000000e+00 : f32
    %391 = vector.broadcast %cst_118 : f32 to vector<1x32xf32>
    %392 = arith.addf %391, %390 : vector<1x32xf32>
    %393 = arith.divf %391, %392 : vector<1x32xf32>
    %394 = vector.extract_strided_slice %381 {offsets = [0, 64], sizes = [1, 32], strides = [1, 1]} : vector<1x128xf32> to vector<1x32xf32>
    %395 = math.tanh %394 : vector<1x32xf32>
    %396 = vector.extract_strided_slice %381 {offsets = [0, 96], sizes = [1, 32], strides = [1, 1]} : vector<1x128xf32> to vector<1x32xf32>
    %397 = arith.negf %396 : vector<1x32xf32>
    %398 = math.exp %397 : vector<1x32xf32>
    %cst_119 = arith.constant 1.000000e+00 : f32
    %399 = vector.broadcast %cst_119 : f32 to vector<1x32xf32>
    %400 = arith.addf %399, %398 : vector<1x32xf32>
    %401 = arith.divf %399, %400 : vector<1x32xf32>
    %402 = arith.mulf %393, %343 : vector<1x32xf32>
    %403 = arith.mulf %387, %395 : vector<1x32xf32>
    %404 = arith.addf %402, %403 : vector<1x32xf32>
    %405 = math.tanh %404 : vector<1x32xf32>
    %406 = arith.mulf %401, %405 : vector<1x32xf32>
    %cst_120 = arith.constant dense<0.000000e+00> : vector<1x16xf32>
    %407 = tpu.matmul %406, %3, %cst_120 {dimension_numbers = #tpu.dot_dimension_numbers<[1], [0], [0], [1], [0, 0, 1, 1], [], []>} : vector<1x32xf32>, vector<32x16xf32>, vector<1x16xf32> -> vector<1x16xf32>
    %cst_121 = arith.constant dense<0xFF800000> : vector<1xf32>
    %408 = vector.multi_reduction <maximumf>, %407, %cst_121 [1] : vector<1x16xf32> to vector<1xf32>
    %409 = vector.shape_cast %408 : vector<1xf32> to vector<1x1xf32>
    %410 = vector.broadcast %409 : vector<1x1xf32> to vector<1x16xf32>
    %411 = arith.subf %407, %410 : vector<1x16xf32>
    %412 = math.exp %411 : vector<1x16xf32>
    %cst_122 = arith.constant dense<0.000000e+00> : vector<1xf32>
    %413 = vector.multi_reduction <add>, %412, %cst_122 [1] : vector<1x16xf32> to vector<1xf32>
    %414 = vector.shape_cast %413 : vector<1xf32> to vector<1x1xf32>
    %415 = tpu.reciprocal %414 {approx = true} : vector<1x1xf32> -> vector<1x1xf32>
    %416 = vector.broadcast %415 : vector<1x1xf32> to vector<1x16xf32>
    %417 = arith.mulf %412, %416 : vector<1x16xf32>
    %cst_123 = arith.constant dense<0.000000e+00> : vector<1x32xf32>
    %418 = tpu.matmul %417, %4, %cst_123 {dimension_numbers = #tpu.dot_dimension_numbers<[1], [0], [0], [1], [0, 0, 1, 1], [], []>} : vector<1x16xf32>, vector<16x32xf32>, vector<1x32xf32> -> vector<1x32xf32>
    %cst_124 = arith.constant dense<0.000000e+00> : vector<1x64xf32>
    %419 = tpu.matmul %418, %5, %cst_124 {dimension_numbers = #tpu.dot_dimension_numbers<[1], [0], [0], [1], [0, 0, 1, 1], [], []>} : vector<1x32xf32>, vector<32x64xf32>, vector<1x64xf32> -> vector<1x64xf32>
    %cst_125 = arith.constant dense<0.000000e+00> : vector<1x64xf32>
    %420 = tpu.matmul %406, %6, %cst_125 {dimension_numbers = #tpu.dot_dimension_numbers<[1], [0], [0], [1], [0, 0, 1, 1], [], []>} : vector<1x32xf32>, vector<32x64xf32>, vector<1x64xf32> -> vector<1x64xf32>
    %421 = arith.addf %419, %420 : vector<1x64xf32>
    %422 = arith.addf %421, %7 : vector<1x64xf32>
    %cst_126 = arith.constant dense<0xFF800000> : vector<1xf32>
    %423 = vector.multi_reduction <maximumf>, %422, %cst_126 [1] : vector<1x64xf32> to vector<1xf32>
    %424 = vector.shape_cast %423 : vector<1xf32> to vector<1x1xf32>
    %425 = vector.broadcast %424 : vector<1x1xf32> to vector<1x64xf32>
    %426 = arith.subf %422, %425 : vector<1x64xf32>
    %427 = math.exp %426 : vector<1x64xf32>
    %cst_127 = arith.constant dense<0.000000e+00> : vector<1xf32>
    %428 = vector.multi_reduction <add>, %427, %cst_127 [1] : vector<1x64xf32> to vector<1xf32>
    %429 = vector.shape_cast %428 : vector<1xf32> to vector<1x1xf32>
    %430 = math.log %429 : vector<1x1xf32>
    %431 = vector.broadcast %430 : vector<1x1xf32> to vector<1x64xf32>
    %432 = arith.subf %426, %431 : vector<1x64xf32>
    %cst_128 = arith.constant 0.000000e+00 : f32
    %433 = vector.broadcast %cst_128 : f32 to vector<1x112xf32>
    %434 = tpu.concatenate %432, %406, %404, %417, %433 in 1 : vector<1x64xf32>, vector<1x32xf32>, vector<1x32xf32>, vector<1x16xf32>, vector<1x112xf32> -> vector<1x256xf32>
    %435 = arith.index_cast %c6_i32 : i32 to index
    %c0_129 = arith.constant 0 : index
    %436 = vector.load %arg11[%435, %c0_129] : memref<8x256xf32, #tpu.memory_space<vmem>>, vector<1x256xf32>
    tpu.vector_store %arg11[%435, %c0_129], %434 {strides = array<i32>} : memref<8x256xf32, #tpu.memory_space<vmem>>, vector<1x256xf32>,
    %c7_i32 = arith.constant 7 : i32
    %437 = arith.index_cast %c7_i32 : i32 to index
    %c0_130 = arith.constant 0 : index
    %438 = vector.load %arg0[%437, %c0_130] : memref<8x32xf32, #tpu.memory_space<vmem>>, vector<1x32xf32>
    %cst_131 = arith.constant dense<0.000000e+00> : vector<1x128xf32>
    %439 = tpu.matmul %438, %0, %cst_131 {dimension_numbers = #tpu.dot_dimension_numbers<[1], [0], [0], [1], [0, 0, 1, 1], [], []>} : vector<1x32xf32>, vector<32x128xf32>, vector<1x128xf32> -> vector<1x128xf32>
    %cst_132 = arith.constant dense<0.000000e+00> : vector<1x128xf32>
    %440 = tpu.matmul %406, %1, %cst_132 {dimension_numbers = #tpu.dot_dimension_numbers<[1], [0], [0], [1], [0, 0, 1, 1], [], []>} : vector<1x32xf32>, vector<32x128xf32>, vector<1x128xf32> -> vector<1x128xf32>
    %441 = arith.addf %439, %440 : vector<1x128xf32>
    %442 = arith.addf %441, %2 : vector<1x128xf32>
    %443 = vector.extract_strided_slice %442 {offsets = [0, 0], sizes = [1, 32], strides = [1, 1]} : vector<1x128xf32> to vector<1x32xf32>
    %444 = arith.negf %443 : vector<1x32xf32>
    %445 = math.exp %444 : vector<1x32xf32>
    %cst_133 = arith.constant 1.000000e+00 : f32
    %446 = vector.broadcast %cst_133 : f32 to vector<1x32xf32>
    %447 = arith.addf %446, %445 : vector<1x32xf32>
    %448 = arith.divf %446, %447 : vector<1x32xf32>
    %449 = vector.extract_strided_slice %442 {offsets = [0, 32], sizes = [1, 32], strides = [1, 1]} : vector<1x128xf32> to vector<1x32xf32>
    %450 = arith.negf %449 : vector<1x32xf32>
    %451 = math.exp %450 : vector<1x32xf32>
    %cst_134 = arith.constant 1.000000e+00 : f32
    %452 = vector.broadcast %cst_134 : f32 to vector<1x32xf32>
    %453 = arith.addf %452, %451 : vector<1x32xf32>
    %454 = arith.divf %452, %453 : vector<1x32xf32>
    %455 = vector.extract_strided_slice %442 {offsets = [0, 64], sizes = [1, 32], strides = [1, 1]} : vector<1x128xf32> to vector<1x32xf32>
    %456 = math.tanh %455 : vector<1x32xf32>
    %457 = vector.extract_strided_slice %442 {offsets = [0, 96], sizes = [1, 32], strides = [1, 1]} : vector<1x128xf32> to vector<1x32xf32>
    %458 = arith.negf %457 : vector<1x32xf32>
    %459 = math.exp %458 : vector<1x32xf32>
    %cst_135 = arith.constant 1.000000e+00 : f32
    %460 = vector.broadcast %cst_135 : f32 to vector<1x32xf32>
    %461 = arith.addf %460, %459 : vector<1x32xf32>
    %462 = arith.divf %460, %461 : vector<1x32xf32>
    %463 = arith.mulf %454, %404 : vector<1x32xf32>
    %464 = arith.mulf %448, %456 : vector<1x32xf32>
    %465 = arith.addf %463, %464 : vector<1x32xf32>
    %466 = math.tanh %465 : vector<1x32xf32>
    %467 = arith.mulf %462, %466 : vector<1x32xf32>
    %cst_136 = arith.constant dense<0.000000e+00> : vector<1x16xf32>
    %468 = tpu.matmul %467, %3, %cst_136 {dimension_numbers = #tpu.dot_dimension_numbers<[1], [0], [0], [1], [0, 0, 1, 1], [], []>} : vector<1x32xf32>, vector<32x16xf32>, vector<1x16xf32> -> vector<1x16xf32>
    %cst_137 = arith.constant dense<0xFF800000> : vector<1xf32>
    %469 = vector.multi_reduction <maximumf>, %468, %cst_137 [1] : vector<1x16xf32> to vector<1xf32>
    %470 = vector.shape_cast %469 : vector<1xf32> to vector<1x1xf32>
    %471 = vector.broadcast %470 : vector<1x1xf32> to vector<1x16xf32>
    %472 = arith.subf %468, %471 : vector<1x16xf32>
    %473 = math.exp %472 : vector<1x16xf32>
    %cst_138 = arith.constant dense<0.000000e+00> : vector<1xf32>
    %474 = vector.multi_reduction <add>, %473, %cst_138 [1] : vector<1x16xf32> to vector<1xf32>
    %475 = vector.shape_cast %474 : vector<1xf32> to vector<1x1xf32>
    %476 = tpu.reciprocal %475 {approx = true} : vector<1x1xf32> -> vector<1x1xf32>
    %477 = vector.broadcast %476 : vector<1x1xf32> to vector<1x16xf32>
    %478 = arith.mulf %473, %477 : vector<1x16xf32>
    %cst_139 = arith.constant dense<0.000000e+00> : vector<1x32xf32>
    %479 = tpu.matmul %478, %4, %cst_139 {dimension_numbers = #tpu.dot_dimension_numbers<[1], [0], [0], [1], [0, 0, 1, 1], [], []>} : vector<1x16xf32>, vector<16x32xf32>, vector<1x32xf32> -> vector<1x32xf32>
    %cst_140 = arith.constant dense<0.000000e+00> : vector<1x64xf32>
    %480 = tpu.matmul %479, %5, %cst_140 {dimension_numbers = #tpu.dot_dimension_numbers<[1], [0], [0], [1], [0, 0, 1, 1], [], []>} : vector<1x32xf32>, vector<32x64xf32>, vector<1x64xf32> -> vector<1x64xf32>
    %cst_141 = arith.constant dense<0.000000e+00> : vector<1x64xf32>
    %481 = tpu.matmul %467, %6, %cst_141 {dimension_numbers = #tpu.dot_dimension_numbers<[1], [0], [0], [1], [0, 0, 1, 1], [], []>} : vector<1x32xf32>, vector<32x64xf32>, vector<1x64xf32> -> vector<1x64xf32>
    %482 = arith.addf %480, %481 : vector<1x64xf32>
    %483 = arith.addf %482, %7 : vector<1x64xf32>
    %cst_142 = arith.constant dense<0xFF800000> : vector<1xf32>
    %484 = vector.multi_reduction <maximumf>, %483, %cst_142 [1] : vector<1x64xf32> to vector<1xf32>
    %485 = vector.shape_cast %484 : vector<1xf32> to vector<1x1xf32>
    %486 = vector.broadcast %485 : vector<1x1xf32> to vector<1x64xf32>
    %487 = arith.subf %483, %486 : vector<1x64xf32>
    %488 = math.exp %487 : vector<1x64xf32>
    %cst_143 = arith.constant dense<0.000000e+00> : vector<1xf32>
    %489 = vector.multi_reduction <add>, %488, %cst_143 [1] : vector<1x64xf32> to vector<1xf32>
    %490 = vector.shape_cast %489 : vector<1xf32> to vector<1x1xf32>
    %491 = math.log %490 : vector<1x1xf32>
    %492 = vector.broadcast %491 : vector<1x1xf32> to vector<1x64xf32>
    %493 = arith.subf %487, %492 : vector<1x64xf32>
    %cst_144 = arith.constant 0.000000e+00 : f32
    %494 = vector.broadcast %cst_144 : f32 to vector<1x112xf32>
    %495 = tpu.concatenate %493, %467, %465, %478, %494 in 1 : vector<1x64xf32>, vector<1x32xf32>, vector<1x32xf32>, vector<1x16xf32>, vector<1x112xf32> -> vector<1x256xf32>
    %496 = arith.index_cast %c7_i32 : i32 to index
    %c0_145 = arith.constant 0 : index
    %497 = vector.load %arg11[%496, %c0_145] : memref<8x256xf32, #tpu.memory_space<vmem>>, vector<1x256xf32>
    tpu.vector_store %arg11[%496, %c0_145], %495 {strides = array<i32>} : memref<8x256xf32, #tpu.memory_space<vmem>>, vector<1x256xf32>,
    %c8_i32 = arith.constant 8 : i32
    return
  }
}

</mosaic_0001>

<llo_original>
// kernel: tpu_custom_call.1
$region0: #{tpu_custom_call.1}
  #allocation0 [shape = 'u32[]', space=smem, size = 0x4, offset = 0x4, fixed_abs, tag = 'smem constant byte address 0x4 - core index']
  #allocation1 [shape = 'u32[144,128]{1,0:T(1,128)}', space=vmem, size = 0x12000, scoped, tag = 'internal scratch']
  %s0 = inlined_call_operand.hbm [shape: f32[8,32], index: 0, kind: input, shape index: {}]
  %s1 = inlined_call_operand.vmem [shape: f32[1,32], index: 1, kind: input, shape index: {}]
  %s2 = inlined_call_operand.vmem [shape: f32[1,32], index: 2, kind: input, shape index: {}]
  %s3 = inlined_call_operand.vmem [shape: f32[32,128], index: 3, kind: input, shape index: {}]
  %s4 = inlined_call_operand.hbm [shape: f32[32,128], index: 4, kind: input, shape index: {}]
  %s5 = inlined_call_operand.hbm [shape: f32[1,128], index: 5, kind: input, shape index: {}]
  %s6 = inlined_call_operand.vmem [shape: f32[32,16], index: 6, kind: input, shape index: {}]
  %s7 = inlined_call_operand.hbm [shape: f32[16,32], index: 7, kind: input, shape index: {}]
  %s8 = inlined_call_operand.vmem [shape: f32[32,64], index: 8, kind: input, shape index: {}]
  %s9 = inlined_call_operand.hbm [shape: f32[32,64], index: 9, kind: input, shape index: {}]
  %s10 = inlined_call_operand.vmem [shape: f32[1,64], index: 10, kind: input, shape index: {}]
  %s11 = inlined_call_operand.hbm [shape: f32[8,256], index: 11, kind: output, shape index: {}]
  %s12 = sld [smem:[#allocation0]]
  $region74: #{tpu_custom_call.1} parent=0
    _
  %s14 = ssub.s32 1, %s12
  %s15 = scalar_select 0, %s14, %s12
  $region1: #{tpu_custom_call.1} parent=0
    #allocation2 [shape = 'u8[4096]{0}', space=vmem, size = 0x1000, scoped, tag = 'input window, operand 0, single buffered']
    #allocation3 [shape = 's32[1]{0}', space=sflag, size = 0x4, scoped, tag = 'scoped memory for tpu_custom_call.1']
    #allocation4 [shape = 's32[1]{0}', space=sflag, size = 0x4, scoped, tag = 'scoped memory for tpu_custom_call.1']
    #allocation5 [shape = 'u8[16384]{0}', space=vmem, size = 0x4000, scoped, tag = 'input window, operand 4, single buffered']
    #allocation6 [shape = 's32[1]{0}', space=sflag, size = 0x4, scoped, tag = 'scoped memory for tpu_custom_call.1']
    #allocation7 [shape = 'u8[512]{0}', space=vmem, size = 0x400, scoped, tag = 'input window, operand 5, single buffered']
    #allocation8 [shape = 'u8[8192]{0}', space=vmem, size = 0x2000, scoped, tag = 'input window, operand 7, single buffered']
    #allocation9 [shape = 's32[1]{0}', space=sflag, size = 0x4, scoped, tag = 'scoped memory for tpu_custom_call.1']
    #allocation10 [shape = 'u8[16384]{0}', space=vmem, size = 0x4000, scoped, tag = 'input window, operand 9, single buffered']
    #allocation11 [shape = 'u8[8192]{0}', space=vmem, size = 0x2000, scoped, tag = 'output window, operand 0, single buffered']
    %16 = vsyncpa [#allocation3], 0
    %17 = vsyncpa [#allocation6], 0
    %18 = vsyncpa [#allocation9], 0
    %19 = vsyncpa [#allocation4], 0
    // Predicated region
    $region2: #{tpu_custom_call.1} parent=1 // pred_check
      _
    $region3: #{tpu_custom_call.1} parent=1 // pred_check_branch
      %21 = sbr.rel (0) target = $region5
    $region4: #{tpu_custom_call.1} parent=1 // pred_region
      %s23 = ssub.s32 128, 128
      %24 = vsyncadd [#allocation3], %s23
      %s26 = sshll.u32 [#allocation2], 4
      %s27 = int_to_ptr.vmem [resolvable:$true] %s26
      %29 = dma.hbm_to_vmem [thread:$0]  %s0, 128, %s27, [#allocation3]
    $region5: #{tpu_custom_call.1} parent=1 // pred_fallthru
      _
    // Predicated region
    $region6: #{tpu_custom_call.1} parent=1 // pred_check
      _
    $region7: #{tpu_custom_call.1} parent=1 // pred_check_branch
      %31 = sbr.rel (0) target = $region9
    $region8: #{tpu_custom_call.1} parent=1 // pred_region
      _
    $region9: #{tpu_custom_call.1} parent=1 // pred_fallthru
      _
    // Predicated region
    $region10: #{tpu_custom_call.1} parent=1 // pred_check
      _
    $region11: #{tpu_custom_call.1} parent=1 // pred_check_branch
      %33 = sbr.rel (0) target = $region13
    $region12: #{tpu_custom_call.1} parent=1 // pred_region
      _
    $region13: #{tpu_custom_call.1} parent=1 // pred_fallthru
      _
    // Predicated region
    $region14: #{tpu_custom_call.1} parent=1 // pred_check
      _
    $region15: #{tpu_custom_call.1} parent=1 // pred_check_branch
      %35 = sbr.rel (0) target = $region17
    $region16: #{tpu_custom_call.1} parent=1 // pred_region
      _
    $region17: #{tpu_custom_call.1} parent=1 // pred_fallthru
      _
    // Predicated region
    $region18: #{tpu_custom_call.1} parent=1 // pred_check
      _
    $region19: #{tpu_custom_call.1} parent=1 // pred_check_branch
      %37 = sbr.rel (0) target = $region21
    $region20: #{tpu_custom_call.1} parent=1 // pred_region
      %s39 = ssub.s32 512, 512
      %40 = vsyncadd [#allocation6], %s39
      %s41 = sshll.u32 [#allocation5], 4
      %s42 = int_to_ptr.vmem [resolvable:$true] %s41
      %47 = dma.hbm_to_vmem [thread:$0]  %s4, 512, %s42, [#allocation6], 128, 128, 8
    $region21: #{tpu_custom_call.1} parent=1 // pred_fallthru
      _
    // Predicated region
    $region22: #{tpu_custom_call.1} parent=1 // pred_check
      _
    $region23: #{tpu_custom_call.1} parent=1 // pred_check_branch
      %49 = sbr.rel (0) target = $region25
    $region24: #{tpu_custom_call.1} parent=1 // pred_region
      %s51 = ssub.s32 16, 16
      %52 = vsyncadd [#allocation6], %s51
      %s54 = sshll.u32 [#allocation7], 4
      %s55 = int_to_ptr.vmem [resolvable:$true] %s54
      %57 = dma.hbm_to_vmem [thread:$0]  %s5, 16, %s55, [#allocation6]
    $region25: #{tpu_custom_call.1} parent=1 // pred_fallthru
      _
    // Predicated region
    $region26: #{tpu_custom_call.1} parent=1 // pred_check
      _
    $region27: #{tpu_custom_call.1} parent=1 // pred_check_branch
      %59 = sbr.rel (0) target = $region29
    $region28: #{tpu_custom_call.1} parent=1 // pred_region
      _
    $region29: #{tpu_custom_call.1} parent=1 // pred_fallthru
      _
    // Predicated region
    $region30: #{tpu_custom_call.1} parent=1 // pred_check
      _
    $region31: #{tpu_custom_call.1} parent=1 // pred_check_branch
      %61 = sbr.rel (0) target = $region33
    $region32: #{tpu_custom_call.1} parent=1 // pred_region
      %s63 = ssub.s32 256, 256
      %64 = vsyncadd [#allocation9], %s63
      %s65 = sshll.u32 [#allocation8], 4
      %s66 = int_to_ptr.vmem [resolvable:$true] %s65
      %71 = dma.hbm_to_vmem [thread:$0]  %s7, 256, %s66, [#allocation9], 128, 128, 8
    $region33: #{tpu_custom_call.1} parent=1 // pred_fallthru
      _
    // Predicated region
    $region34: #{tpu_custom_call.1} parent=1 // pred_check
      _
    $region35: #{tpu_custom_call.1} parent=1 // pred_check_branch
      %73 = sbr.rel (0) target = $region37
    $region36: #{tpu_custom_call.1} parent=1 // pred_region
      _
    $region37: #{tpu_custom_call.1} parent=1 // pred_fallthru
      _
    // Predicated region
    $region38: #{tpu_custom_call.1} parent=1 // pred_check
      _
    $region39: #{tpu_custom_call.1} parent=1 // pred_check_branch
      %75 = sbr.rel (0) target = $region41
    $region40: #{tpu_custom_call.1} parent=1 // pred_region
      %s77 = ssub.s32 512, 512
      %78 = vsyncadd [#allocation9], %s77
      %s79 = sshll.u32 [#allocation10], 4
      %s80 = int_to_ptr.vmem [resolvable:$true] %s79
      %85 = dma.hbm_to_vmem [thread:$0]  %s9, 512, %s80, [#allocation9], 128, 128, 8
    $region41: #{tpu_custom_call.1} parent=1 // pred_fallthru
      _
    // Predicated region
    $region42: #{tpu_custom_call.1} parent=1 // pred_check
      _
    $region43: #{tpu_custom_call.1} parent=1 // pred_check_branch
      %87 = sbr.rel (0) target = $region45
    $region44: #{tpu_custom_call.1} parent=1 // pred_region
      _
    $region45: #{tpu_custom_call.1} parent=1 // pred_fallthru
      _
    // Predicated region
    $region46: #{tpu_custom_call.1} parent=1 // pred_check
      _
    $region47: #{tpu_custom_call.1} parent=1 // pred_check_branch
      %89 = sbr.rel (0) target = $region49
    $region48: #{tpu_custom_call.1} parent=1 // pred_region
      %90 = dma.done [#allocation3], 128
    $region49: #{tpu_custom_call.1} parent=1 // pred_fallthru
      _
    // Predicated region
    $region50: #{tpu_custom_call.1} parent=1 // pred_check
      _
    $region51: #{tpu_custom_call.1} parent=1 // pred_check_branch
      %92 = sbr.rel (0) target = $region53
    $region52: #{tpu_custom_call.1} parent=1 // pred_region
      %93 = dma.done [#allocation6], 512
    $region53: #{tpu_custom_call.1} parent=1 // pred_fallthru
      _
    // Predicated region
    $region54: #{tpu_custom_call.1} parent=1 // pred_check
      _
    $region55: #{tpu_custom_call.1} parent=1 // pred_check_branch
      %95 = sbr.rel (0) target = $region57
    $region56: #{tpu_custom_call.1} parent=1 // pred_region
      %96 = dma.done [#allocation6], 16
    $region57: #{tpu_custom_call.1} parent=1 // pred_fallthru
      _
    // Predicated region
    $region58: #{tpu_custom_call.1} parent=1 // pred_check
      _
    $region59: #{tpu_custom_call.1} parent=1 // pred_check_branch
      %98 = sbr.rel (0) target = $region61
    $region60: #{tpu_custom_call.1} parent=1 // pred_region
      %99 = dma.done [#allocation9], 256
    $region61: #{tpu_custom_call.1} parent=1 // pred_fallthru
      _
    // Predicated region
    $region62: #{tpu_custom_call.1} parent=1 // pred_check
      _
    $region63: #{tpu_custom_call.1} parent=1 // pred_check_branch
      %101 = sbr.rel (0) target = $region65
    $region64: #{tpu_custom_call.1} parent=1 // pred_region
      %102 = dma.done [#allocation9], 512
    $region65: #{tpu_custom_call.1} parent=1 // pred_fallthru
      _
    %v103 = vld [vmem:[%s3] sm:$0xff]
    %v104 = vld [vmem:[%s3 + $0x8] sm:$0xff]
    %v105 = vld [vmem:[%s3 + $0x10] sm:$0xff]
    %v106 = vld [vmem:[%s3 + $0x18] sm:$0xff]
    %v107 = vld [vmem:[#allocation5] sm:$0xff]
    %v108 = vld [vmem:[#allocation5 + $0x8] sm:$0xff]
    %v109 = vld [vmem:[#allocation5 + $0x10] sm:$0xff]
    %v110 = vld [vmem:[#allocation5 + $0x18] sm:$0xff]
    %v111 = vld [vmem:[#allocation7] sm:$0x1]
    %v112 = vld [vmem:[%s6] sm:$0xff]
    %v113 = vld [vmem:[%s6 + $0x8] sm:$0xff]
    %v114 = vld [vmem:[%s6 + $0x10] sm:$0xff]
    %v115 = vld [vmem:[%s6 + $0x18] sm:$0xff]
    %v116 = vld [vmem:[#allocation8] sm:$0xff]
    %v117 = vld [vmem:[#allocation8 + $0x8] sm:$0xff]
    %v118 = vld [vmem:[%s8] sm:$0xff]
    %v119 = vld [vmem:[%s8 + $0x8] sm:$0xff]
    %v120 = vld [vmem:[%s8 + $0x10] sm:$0xff]
    %v121 = vld [vmem:[%s8 + $0x18] sm:$0xff]
    %v122 = vld [vmem:[#allocation10] sm:$0xff]
    %v123 = vld [vmem:[#allocation10 + $0x8] sm:$0xff]
    %v124 = vld [vmem:[#allocation10 + $0x10] sm:$0xff]
    %v125 = vld [vmem:[#allocation10 + $0x18] sm:$0xff]
    %v126 = vld [vmem:[%s10] sm:$0x1]
    %v127 = vld [vmem:[%s1] sm:$0x1]
    %v128 = vld [vmem:[%s2] sm:$0x1]
    %v129 = vld [vmem:[#allocation2] sm:$0x1]
    %vm130 = vcmask 261120
    %v132 = vsel %vm130, %v127, 0
    %134 = vmatprep.subr.mxu0 0.0
    %135 = vmatpush1.msra.mxu0 %v107
    %136 = vmatprep.subr.mxu0 0.0
    %137 = vmatpush1.msra.mxu0 %v108
    %138 = vmatprep.subr.mxu0 0.0
    %139 = vmatpush1.msra.mxu0 %v109
    %140 = vmatprep.subr.mxu0 0.0
    %141 = vmatpush1.msra.mxu0 %v110
    %142 = vmatprep.subr.mxu0 0.0
    %143 = vmatpush1.msra.mxu0 0.0
    %144 = vmatprep.subr.mxu0 0.0
    %145 = vmatpush1.msra.mxu0 0.0
    %146 = vmatprep.subr.mxu0 0.0
    %147 = vmatpush1.msra.mxu0 0.0
    %148 = vmatprep.subr.mxu0 0.0
    %149 = vmatpush1.msra.mxu0 0.0
    %150 = vmatprep.subr.mxu0 0.0
    %151 = vmatpush1.msra.mxu0 0.0
    %152 = vmatprep.subr.mxu0 0.0
    %153 = vmatpush1.msra.mxu0 0.0
    %154 = vmatprep.subr.mxu0 0.0
    %155 = vmatpush1.msra.mxu0 0.0
    %156 = vmatprep.subr.mxu0 0.0
    %157 = vmatpush1.msra.mxu0 0.0
    %158 = vmatprep.subr.mxu0 0.0
    %159 = vmatpush1.msra.mxu0 0.0
    %160 = vmatprep.subr.mxu0 0.0
    %161 = vmatpush1.msra.mxu0 0.0
    %162 = vmatprep.subr.mxu0 0.0
    %163 = vmatpush1.msra.mxu0 0.0
    %164 = vmatprep.subr.mxu0 0.0
    %165 = vmatpush1.msra.mxu0 0.0
    %166 = vmatprep.subr.mxu0 0.0
    %167 = vmatpush1.msra.mxu0 0.0
    %168 = vmatprep.subr.mxu0 0.0
    %169 = vmatpush1.msra.mxu0 0.0
    %170 = vmatprep.subr.mxu0 0.0
    %171 = vmatpush1.msra.mxu0 0.0
    %172 = vmatprep.subr.mxu0 0.0
    %173 = vmatpush1.msra.mxu0 0.0
    %174 = vmatprep.subr.mxu0 0.0
    %175 = vmatpush1.msra.mxu0 0.0
    %176 = vmatprep.subr.mxu0 0.0
    %177 = vmatpush1.msra.mxu0 0.0
    %178 = vmatprep.subr.mxu0 0.0
    %179 = vmatpush1.msra.mxu0 0.0
    %180 = vmatprep.subr.mxu0 0.0
    %181 = vmatpush1.msra.mxu0 0.0
    %182 = vmatprep.subr.mxu0 0.0
    %183 = vmatpush1.msra.mxu0 0.0
    %184 = vmatprep.subr.mxu0 0.0
    %185 = vmatpush1.msra.mxu0 0.0
    %186 = vmatprep.subr.mxu0 0.0
    %187 = vmatpush1.msra.mxu0 0.0
    %188 = vmatprep.subr.mxu0 0.0
    %189 = vmatpush1.msra.mxu0 0.0
    %190 = vmatprep.subr.mxu0 0.0
    %191 = vmatpush1.msra.mxu0 0.0
    %192 = vmatprep.subr.mxu0 0.0
    %193 = vmatpush1.msra.mxu0 0.0
    %194 = vmatprep.subr.mxu0 0.0
    %195 = vmatpush1.msra.mxu0 0.0
    %196 = vmatprep.subr.mxu0 0.0
    %197 = vmatpush1.msra.mxu0 0.0
    %198 = vmatprep.mubr.f32.mxu0 0.0
    %199 = vmatmul.mubr.f32.gmra.mrb[0].mxu0 %v132
    %v200 = vpop.f32.mrb[0].mxu0
    %v201 = vadd.f32 0.0, %v200
    %v202 = vpop.f32.mrb[0].mxu0
    %203 = vdwg.mxu0
    %v205 = vsel %vm130, %v129, 0
    %207 = vmatprep.subr.mxu0 0.0
    %208 = vmatpush1.msra.mxu0 %v103
    %209 = vmatprep.subr.mxu0 0.0
    %210 = vmatpush1.msra.mxu0 %v104
    %211 = vmatprep.subr.mxu0 0.0
    %212 = vmatpush1.msra.mxu0 %v105
    %213 = vmatprep.subr.mxu0 0.0
    %214 = vmatpush1.msra.mxu0 %v106
    %215 = vmatprep.subr.mxu0 0.0
    %216 = vmatpush1.msra.mxu0 0.0
    %217 = vmatprep.subr.mxu0 0.0
    %218 = vmatpush1.msra.mxu0 0.0
    %219 = vmatprep.subr.mxu0 0.0
    %220 = vmatpush1.msra.mxu0 0.0
    %221 = vmatprep.subr.mxu0 0.0
    %222 = vmatpush1.msra.mxu0 0.0
    %223 = vmatprep.subr.mxu0 0.0
    %224 = vmatpush1.msra.mxu0 0.0
    %225 = vmatprep.subr.mxu0 0.0
    %226 = vmatpush1.msra.mxu0 0.0
    %227 = vmatprep.subr.mxu0 0.0
    %228 = vmatpush1.msra.mxu0 0.0
    %229 = vmatprep.subr.mxu0 0.0
    %230 = vmatpush1.msra.mxu0 0.0
    %231 = vmatprep.subr.mxu0 0.0
    %232 = vmatpush1.msra.mxu0 0.0
    %233 = vmatprep.subr.mxu0 0.0
    %234 = vmatpush1.msra.mxu0 0.0
    %235 = vmatprep.subr.mxu0 0.0
    %236 = vmatpush1.msra.mxu0 0.0
    %237 = vmatprep.subr.mxu0 0.0
    %238 = vmatpush1.msra.mxu0 0.0
    %239 = vmatprep.subr.mxu0 0.0
    %240 = vmatpush1.msra.mxu0 0.0
    %241 = vmatprep.subr.mxu0 0.0
    %242 = vmatpush1.msra.mxu0 0.0
    %243 = vmatprep.subr.mxu0 0.0
    %244 = vmatpush1.msra.mxu0 0.0
    %245 = vmatprep.subr.mxu0 0.0
    %246 = vmatpush1.msra.mxu0 0.0
    %247 = vmatprep.subr.mxu0 0.0
    %248 = vmatpush1.msra.mxu0 0.0
    %249 = vmatprep.subr.mxu0 0.0
    %250 = vmatpush1.msra.mxu0 0.0
    %251 = vmatprep.subr.mxu0 0.0
    %252 = vmatpush1.msra.mxu0 0.0
    %253 = vmatprep.subr.mxu0 0.0
    %254 = vmatpush1.msra.mxu0 0.0
    %255 = vmatprep.subr.mxu0 0.0
    %256 = vmatpush1.msra.mxu0 0.0
    %257 = vmatprep.subr.mxu0 0.0
    %258 = vmatpush1.msra.mxu0 0.0
    %259 = vmatprep.subr.mxu0 0.0
    %260 = vmatpush1.msra.mxu0 0.0
    %261 = vmatprep.subr.mxu0 0.0
    %262 = vmatpush1.msra.mxu0 0.0
    %263 = vmatprep.subr.mxu0 0.0
    %264 = vmatpush1.msra.mxu0 0.0
    %265 = vmatprep.subr.mxu0 0.0
    %266 = vmatpush1.msra.mxu0 0.0
    %267 = vmatprep.subr.mxu0 0.0
    %268 = vmatpush1.msra.mxu0 0.0
    %269 = vmatprep.subr.mxu0 0.0
    %270 = vmatpush1.msra.mxu0 0.0
    %271 = vmatprep.mubr.f32.mxu0 0.0
    %272 = vmatmul.mubr.f32.gmra.mrb[0].mxu0 %v205
    %v273 = vpop.f32.mrb[0].mxu0
    %v274 = vadd.f32 %v201, %v273
    %v275 = vpop.f32.mrb[0].mxu0
    %276 = vdwg.mxu0
    %v277 = vadd.f32 %v274, %v111
    %v278 = vxor.u32 %v277, 2147483648
    %v279 = vmul.f32 %v278, 1.442695
    %v280 = vpow.pop %v279
    %v281 = vadd.f32 %v280, 1.0
    %v282 = vrcp.pop %v281
    %v283 = vmul.f32 1.0, %v282
    %v284 = vtanh.pop %v277
    %v286 = vlaneseq
    %v287 = vshrl.u32 %v286, 7
    %v288 = vsub.s32 0, %v287
    %v289 = vrot.slane %v128, %v288
    %290 = vrot.lane.b32.xlu0 %v289, 32
    %v291 = vpop.permute.xlu0 %290
    %v293 = vmul.f32 %v283, %v291
    %295 = vrot.lane.b32.xlu0 %v284, 64
    %v296 = vpop.permute.xlu0 %295
    %v298 = vmul.f32 %v283, %v296
    %300 = vrot.lane.b32.xlu0 %v298, 32
    %v301 = vpop.permute.xlu0 %300
    %v303 = vadd.f32 %v293, %v301
    %v304 = vtanh.pop %v303
    %306 = vrot.lane.b32.xlu0 %v304, 64
    %v307 = vpop.permute.xlu0 %306
    %v309 = vmul.f32 %v283, %v307
    %311 = vrot.lane.b32.xlu0 %v309, 32
    %v312 = vpop.permute.xlu0 %311
    %v313 = vsel %vm130, %v312, 0
    %315 = vmatprep.subr.mxu0 0.0
    %316 = vmatpush1.msra.mxu0 %v112
    %317 = vmatprep.subr.mxu0 0.0
    %318 = vmatpush1.msra.mxu0 %v113
    %319 = vmatprep.subr.mxu0 0.0
    %320 = vmatpush1.msra.mxu0 %v114
    %321 = vmatprep.subr.mxu0 0.0
    %322 = vmatpush1.msra.mxu0 %v115
    %323 = vmatprep.subr.mxu0 0.0
    %324 = vmatpush1.msra.mxu0 0.0
    %325 = vmatprep.subr.mxu0 0.0
    %326 = vmatpush1.msra.mxu0 0.0
    %327 = vmatprep.subr.mxu0 0.0
    %328 = vmatpush1.msra.mxu0 0.0
    %329 = vmatprep.subr.mxu0 0.0
    %330 = vmatpush1.msra.mxu0 0.0
    %331 = vmatprep.subr.mxu0 0.0
    %332 = vmatpush1.msra.mxu0 0.0
    %333 = vmatprep.subr.mxu0 0.0
    %334 = vmatpush1.msra.mxu0 0.0
    %335 = vmatprep.subr.mxu0 0.0
    %336 = vmatpush1.msra.mxu0 0.0
    %337 = vmatprep.subr.mxu0 0.0
    %338 = vmatpush1.msra.mxu0 0.0
    %339 = vmatprep.subr.mxu0 0.0
    %340 = vmatpush1.msra.mxu0 0.0
    %341 = vmatprep.subr.mxu0 0.0
    %342 = vmatpush1.msra.mxu0 0.0
    %343 = vmatprep.subr.mxu0 0.0
    %344 = vmatpush1.msra.mxu0 0.0
    %345 = vmatprep.subr.mxu0 0.0
    %346 = vmatpush1.msra.mxu0 0.0
    %347 = vmatprep.subr.mxu0 0.0
    %348 = vmatpush1.msra.mxu0 0.0
    %349 = vmatprep.subr.mxu0 0.0
    %350 = vmatpush1.msra.mxu0 0.0
    %351 = vmatprep.subr.mxu0 0.0
    %352 = vmatpush1.msra.mxu0 0.0
    %353 = vmatprep.subr.mxu0 0.0
    %354 = vmatpush1.msra.mxu0 0.0
    %355 = vmatprep.subr.mxu0 0.0
    %356 = vmatpush1.msra.mxu0 0.0
    %357 = vmatprep.subr.mxu0 0.0
    %358 = vmatpush1.msra.mxu0 0.0
    %359 = vmatprep.subr.mxu0 0.0
    %360 = vmatpush1.msra.mxu0 0.0
    %361 = vmatprep.subr.mxu0 0.0
    %362 = vmatpush1.msra.mxu0 0.0
    %363 = vmatprep.subr.mxu0 0.0
    %364 = vmatpush1.msra.mxu0 0.0
    %365 = vmatprep.subr.mxu0 0.0
    %366 = vmatpush1.msra.mxu0 0.0
    %367 = vmatprep.subr.mxu0 0.0
    %368 = vmatpush1.msra.mxu0 0.0
    %369 = vmatprep.subr.mxu0 0.0
    %370 = vmatpush1.msra.mxu0 0.0
    %371 = vmatprep.subr.mxu0 0.0
    %372 = vmatpush1.msra.mxu0 0.0
    %373 = vmatprep.subr.mxu0 0.0
    %374 = vmatpush1.msra.mxu0 0.0
    %375 = vmatprep.subr.mxu0 0.0
    %376 = vmatpush1.msra.mxu0 0.0
    %377 = vmatprep.subr.mxu0 0.0
    %378 = vmatpush1.msra.mxu0 0.0
    %379 = vmatprep.mubr.f32.mxu0 0.0
    %380 = vmatmul.mubr.f32.gmra.mrb[0].mxu0 %v313
    %v381 = vpop.f32.mrb[0].mxu0
    %v382 = vadd.f32 0.0, %v381
    %v383 = vpop.f32.mrb[0].mxu0
    %384 = vdwg.mxu0
    %vm385 = vcmask 122880
    %v386 = vsel %vm385, %v382, -inf
    %387 = vmax.xlane.f32.xlu0 %v386
    %v388 = vpop.xlane.xlu0 %387
    %v389 = vsub.f32 %v382, %v388
    %v390 = vmul.f32 %v389, 1.442695
    %v391 = vpow.pop %v390
    %v392 = vsel %vm385, %v391, 0.0
    %393 = vadd.xlane.f32.xlu0 %v392
    %v394 = vpop.xlane.xlu0 %393
    %v395 = vrcp.pop %v394
    %v396 = vmul.f32 %v391, %v395
    %vm397 = vcmask 130048
    %v399 = vsel %vm397, %v396, 0
    %401 = vmatprep.subr.mxu0 0.0
    %402 = vmatpush1.msra.mxu0 %v116
    %403 = vmatprep.subr.mxu0 0.0
    %404 = vmatpush1.msra.mxu0 %v117
    %405 = vmatprep.subr.mxu0 0.0
    %406 = vmatpush1.msra.mxu0 0.0
    %407 = vmatprep.subr.mxu0 0.0
    %408 = vmatpush1.msra.mxu0 0.0
    %409 = vmatprep.subr.mxu0 0.0
    %410 = vmatpush1.msra.mxu0 0.0
    %411 = vmatprep.subr.mxu0 0.0
    %412 = vmatpush1.msra.mxu0 0.0
    %413 = vmatprep.subr.mxu0 0.0
    %414 = vmatpush1.msra.mxu0 0.0
    %415 = vmatprep.subr.mxu0 0.0
    %416 = vmatpush1.msra.mxu0 0.0
    %417 = vmatprep.subr.mxu0 0.0
    %418 = vmatpush1.msra.mxu0 0.0
    %419 = vmatprep.subr.mxu0 0.0
    %420 = vmatpush1.msra.mxu0 0.0
    %421 = vmatprep.subr.mxu0 0.0
    %422 = vmatpush1.msra.mxu0 0.0
    %423 = vmatprep.subr.mxu0 0.0
    %424 = vmatpush1.msra.mxu0 0.0
    %425 = vmatprep.subr.mxu0 0.0
    %426 = vmatpush1.msra.mxu0 0.0
    %427 = vmatprep.subr.mxu0 0.0
    %428 = vmatpush1.msra.mxu0 0.0
    %429 = vmatprep.subr.mxu0 0.0
    %430 = vmatpush1.msra.mxu0 0.0
    %431 = vmatprep.subr.mxu0 0.0
    %432 = vmatpush1.msra.mxu0 0.0
    %433 = vmatprep.subr.mxu0 0.0
    %434 = vmatpush1.msra.mxu0 0.0
    %435 = vmatprep.subr.mxu0 0.0
    %436 = vmatpush1.msra.mxu0 0.0
    %437 = vmatprep.subr.mxu0 0.0
    %438 = vmatpush1.msra.mxu0 0.0
    %439 = vmatprep.subr.mxu0 0.0
    %440 = vmatpush1.msra.mxu0 0.0
    %441 = vmatprep.subr.mxu0 0.0
    %442 = vmatpush1.msra.mxu0 0.0
    %443 = vmatprep.subr.mxu0 0.0
    %444 = vmatpush1.msra.mxu0 0.0
    %445 = vmatprep.subr.mxu0 0.0
    %446 = vmatpush1.msra.mxu0 0.0
    %447 = vmatprep.subr.mxu0 0.0
    %448 = vmatpush1.msra.mxu0 0.0
    %449 = vmatprep.subr.mxu0 0.0
    %450 = vmatpush1.msra.mxu0 0.0
    %451 = vmatprep.subr.mxu0 0.0
    %452 = vmatpush1.msra.mxu0 0.0
    %453 = vmatprep.subr.mxu0 0.0
    %454 = vmatpush1.msra.mxu0 0.0
    %455 = vmatprep.subr.mxu0 0.0
    %456 = vmatpush1.msra.mxu0 0.0
    %457 = vmatprep.subr.mxu0 0.0
    %458 = vmatpush1.msra.mxu0 0.0
    %459 = vmatprep.subr.mxu0 0.0
    %460 = vmatpush1.msra.mxu0 0.0
    %461 = vmatprep.subr.mxu0 0.0
    %462 = vmatpush1.msra.mxu0 0.0
    %463 = vmatprep.subr.mxu0 0.0
    %464 = vmatpush1.msra.mxu0 0.0
    %465 = vmatprep.mubr.f32.mxu0 0.0
    %466 = vmatmul.mubr.f32.gmra.mrb[0].mxu0 %v399
    %v467 = vpop.f32.mrb[0].mxu0
    %v468 = vadd.f32 0.0, %v467
    %v469 = vpop.f32.mrb[0].mxu0
    %470 = vdwg.mxu0
    %471 = vmatprep.subr.mxu0 0.0
    %472 = vmatpush1.msra.mxu0 %v122
    %473 = vmatprep.subr.mxu0 0.0
    %474 = vmatpush1.msra.mxu0 %v123
    %475 = vmatprep.subr.mxu0 0.0
    %476 = vmatpush1.msra.mxu0 %v124
    %477 = vmatprep.subr.mxu0 0.0
    %478 = vmatpush1.msra.mxu0 %v125
    %479 = vmatprep.subr.mxu0 0.0
    %480 = vmatpush1.msra.mxu0 0.0
    %481 = vmatprep.subr.mxu0 0.0
    %482 = vmatpush1.msra.mxu0 0.0
    %483 = vmatprep.subr.mxu0 0.0
    %484 = vmatpush1.msra.mxu0 0.0
    %485 = vmatprep.subr.mxu0 0.0
    %486 = vmatpush1.msra.mxu0 0.0
    %487 = vmatprep.subr.mxu0 0.0
    %488 = vmatpush1.msra.mxu0 0.0
    %489 = vmatprep.subr.mxu0 0.0
    %490 = vmatpush1.msra.mxu0 0.0
    %491 = vmatprep.subr.mxu0 0.0
    %492 = vmatpush1.msra.mxu0 0.0
    %493 = vmatprep.subr.mxu0 0.0
    %494 = vmatpush1.msra.mxu0 0.0
    %495 = vmatprep.subr.mxu0 0.0
    %496 = vmatpush1.msra.mxu0 0.0
    %497 = vmatprep.subr.mxu0 0.0
    %498 = vmatpush1.msra.mxu0 0.0
    %499 = vmatprep.subr.mxu0 0.0
    %500 = vmatpush1.msra.mxu0 0.0
    %501 = vmatprep.subr.mxu0 0.0
    %502 = vmatpush1.msra.mxu0 0.0
    %503 = vmatprep.subr.mxu0 0.0
    %504 = vmatpush1.msra.mxu0 0.0
    %505 = vmatprep.subr.mxu0 0.0
    %506 = vmatpush1.msra.mxu0 0.0
    %507 = vmatprep.subr.mxu0 0.0
    %508 = vmatpush1.msra.mxu0 0.0
    %509 = vmatprep.subr.mxu0 0.0
    %510 = vmatpush1.msra.mxu0 0.0
    %511 = vmatprep.subr.mxu0 0.0
    %512 = vmatpush1.msra.mxu0 0.0
    %513 = vmatprep.subr.mxu0 0.0
    %514 = vmatpush1.msra.mxu0 0.0
    %515 = vmatprep.subr.mxu0 0.0
    %516 = vmatpush1.msra.mxu0 0.0
    %517 = vmatprep.subr.mxu0 0.0
    %518 = vmatpush1.msra.mxu0 0.0
    %519 = vmatprep.subr.mxu0 0.0
    %520 = vmatpush1.msra.mxu0 0.0
    %521 = vmatprep.subr.mxu0 0.0
    %522 = vmatpush1.msra.mxu0 0.0
    %523 = vmatprep.subr.mxu0 0.0
    %524 = vmatpush1.msra.mxu0 0.0
    %525 = vmatprep.subr.mxu0 0.0
    %526 = vmatpush1.msra.mxu0 0.0
    %527 = vmatprep.subr.mxu0 0.0
    %528 = vmatpush1.msra.mxu0 0.0
    %529 = vmatprep.subr.mxu0 0.0
    %530 = vmatpush1.msra.mxu0 0.0
    %531 = vmatprep.subr.mxu0 0.0
    %532 = vmatpush1.msra.mxu0 0.0
    %533 = vmatprep.subr.mxu0 0.0
    %534 = vmatpush1.msra.mxu0 0.0
    %535 = vmatprep.mubr.f32.mxu0 0.0
    %536 = vmatmul.mubr.f32.gmra.mrb[0].mxu0 %v313
    %v537 = vpop.f32.mrb[0].mxu0
    %v538 = vadd.f32 0.0, %v537
    %v539 = vpop.f32.mrb[0].mxu0
    %540 = vdwg.mxu0
    %v542 = vsel %vm130, %v468, 0
    %544 = vmatprep.subr.mxu0 0.0
    %545 = vmatpush1.msra.mxu0 %v118
    %546 = vmatprep.subr.mxu0 0.0
    %547 = vmatpush1.msra.mxu0 %v119
    %548 = vmatprep.subr.mxu0 0.0
    %549 = vmatpush1.msra.mxu0 %v120
    %550 = vmatprep.subr.mxu0 0.0
    %551 = vmatpush1.msra.mxu0 %v121
    %552 = vmatprep.subr.mxu0 0.0
    %553 = vmatpush1.msra.mxu0 0.0
    %554 = vmatprep.subr.mxu0 0.0
    %555 = vmatpush1.msra.mxu0 0.0
    %556 = vmatprep.subr.mxu0 0.0
    %557 = vmatpush1.msra.mxu0 0.0
    %558 = vmatprep.subr.mxu0 0.0
    %559 = vmatpush1.msra.mxu0 0.0
    %560 = vmatprep.subr.mxu0 0.0
    %561 = vmatpush1.msra.mxu0 0.0
    %562 = vmatprep.subr.mxu0 0.0
    %563 = vmatpush1.msra.mxu0 0.0
    %564 = vmatprep.subr.mxu0 0.0
    %565 = vmatpush1.msra.mxu0 0.0
    %566 = vmatprep.subr.mxu0 0.0
    %567 = vmatpush1.msra.mxu0 0.0
    %568 = vmatprep.subr.mxu0 0.0
    %569 = vmatpush1.msra.mxu0 0.0
    %570 = vmatprep.subr.mxu0 0.0
    %571 = vmatpush1.msra.mxu0 0.0
    %572 = vmatprep.subr.mxu0 0.0
    %573 = vmatpush1.msra.mxu0 0.0
    %574 = vmatprep.subr.mxu0 0.0
    %575 = vmatpush1.msra.mxu0 0.0
    %576 = vmatprep.subr.mxu0 0.0
    %577 = vmatpush1.msra.mxu0 0.0
    %578 = vmatprep.subr.mxu0 0.0
    %579 = vmatpush1.msra.mxu0 0.0
    %580 = vmatprep.subr.mxu0 0.0
    %581 = vmatpush1.msra.mxu0 0.0
    %582 = vmatprep.subr.mxu0 0.0
    %583 = vmatpush1.msra.mxu0 0.0
    %584 = vmatprep.subr.mxu0 0.0
    %585 = vmatpush1.msra.mxu0 0.0
    %586 = vmatprep.subr.mxu0 0.0
    %587 = vmatpush1.msra.mxu0 0.0
    %588 = vmatprep.subr.mxu0 0.0
    %589 = vmatpush1.msra.mxu0 0.0
    %590 = vmatprep.subr.mxu0 0.0
    %591 = vmatpush1.msra.mxu0 0.0
    %592 = vmatprep.subr.mxu0 0.0
    %593 = vmatpush1.msra.mxu0 0.0
    %594 = vmatprep.subr.mxu0 0.0
    %595 = vmatpush1.msra.mxu0 0.0
    %596 = vmatprep.subr.mxu0 0.0
    %597 = vmatpush1.msra.mxu0 0.0
    %598 = vmatprep.subr.mxu0 0.0
    %599 = vmatpush1.msra.mxu0 0.0
    %600 = vmatprep.subr.mxu0 0.0
    %601 = vmatpush1.msra.mxu0 0.0
    %602 = vmatprep.subr.mxu0 0.0
    %603 = vmatpush1.msra.mxu0 0.0
    %604 = vmatprep.subr.mxu0 0.0
    %605 = vmatpush1.msra.mxu0 0.0
    %606 = vmatprep.subr.mxu0 0.0
    %607 = vmatpush1.msra.mxu0 0.0
    %608 = vmatprep.mubr.f32.mxu0 0.0
    %609 = vmatmul.mubr.f32.gmra.mrb[0].mxu0 %v542
    %v610 = vpop.f32.mrb[0].mxu0
    %v611 = vadd.f32 %v538, %v610
    %v612 = vpop.f32.mrb[0].mxu0
    %613 = vdwg.mxu0
    %v614 = vadd.f32 %v611, %v126
    %vm615 = vcmask 516096
    %v616 = vsel %vm615, %v614, -inf
    %617 = vmax.xlane.f32.xlu0 %v616
    %v618 = vpop.xlane.xlu0 %617
    %v619 = vsub.f32 %v614, %v618
    %v620 = vmul.f32 %v619, 1.442695
    %v621 = vpow.pop %v620
    %v622 = vsel %vm615, %v621, 0.0
    %623 = vadd.xlane.f32.xlu0 %v622
    %v624 = vpop.xlane.xlu0 %623
    %v625 = vlog2.pop %v624
    %v626 = vmul.f32 %v625, 0.6931472
    %v627 = vsub.f32 %v619, %v626
    %628 = vrot.lane.b32.xlu0 %v309, 96
    %v629 = vpop.permute.xlu0 %628
    %632 = vrot.lane.b32.xlu0 %v303, 64
    %v633 = vpop.permute.xlu0 %632
    %vm635 = vcmask 523264
    %v636 = vsel %vm635, %v627, %v629
    %vm637 = vcmask 785408
    %v638 = vsel %vm637, %v636, %v633
    %v639 = vsel %vm397, %v396, 0.0
    %v642 = vcombine.low %v638, %v639
    %v644 = vunpack.c.l.s4 1966171168
    %v645 = vunpack.c.0.s8 %v644
    %v646 = vlaneseq
    %v647 = vshrl.u32 %v646, 7
    %v648 = vsub.s32 %v645, %v647
    %v649 = vrot.slane %v642, %v648
    %v651 = vunpack.c.l.s4 1966171168
    %v652 = vunpack.c.0.s8 %v651
    %v653 = vlaneseq
    %v654 = vshrl.u32 %v653, 7
    %v655 = vsub.s32 %v652, %v654
    %v656 = vrot.slane %v649, %v655
    %v658 = vlaneseq
    %vm659 = vcmp.ge.s32.totalorder %v658, 0
    %vm660 = vcmp.lt.s32.totalorder %v658, 256
    %vm661 = vmand %vm659, %vm660
    %662 = vst.msk [vmem:[#allocation11] ss:$8 sm:$0x3] %vm661, %v656
    %663 = vst.msk [vmem:[#allocation11] ss:$8 sm:$0x0] %vm661, %v656
    %v664 = vld [vmem:[#allocation2 + $0x1] sm:$0x1]
    %665 = vmatprep.subr.mxu0 0.0
    %666 = vmatpush1.msra.mxu0 %v107
    %667 = vmatprep.subr.mxu0 0.0
    %668 = vmatpush1.msra.mxu0 %v108
    %669 = vmatprep.subr.mxu0 0.0
    %670 = vmatpush1.msra.mxu0 %v109
    %671 = vmatprep.subr.mxu0 0.0
    %672 = vmatpush1.msra.mxu0 %v110
    %673 = vmatprep.subr.mxu0 0.0
    %674 = vmatpush1.msra.mxu0 0.0
    %675 = vmatprep.subr.mxu0 0.0
    %676 = vmatpush1.msra.mxu0 0.0
    %677 = vmatprep.subr.mxu0 0.0
    %678 = vmatpush1.msra.mxu0 0.0
    %679 = vmatprep.subr.mxu0 0.0
    %680 = vmatpush1.msra.mxu0 0.0
    %681 = vmatprep.subr.mxu0 0.0
    %682 = vmatpush1.msra.mxu0 0.0
    %683 = vmatprep.subr.mxu0 0.0
    %684 = vmatpush1.msra.mxu0 0.0
    %685 = vmatprep.subr.mxu0 0.0
    %686 = vmatpush1.msra.mxu0 0.0
    %687 = vmatprep.subr.mxu0 0.0
    %688 = vmatpush1.msra.mxu0 0.0
    %689 = vmatprep.subr.mxu0 0.0
    %690 = vmatpush1.msra.mxu0 0.0
    %691 = vmatprep.subr.mxu0 0.0
    %692 = vmatpush1.msra.mxu0 0.0
    %693 = vmatprep.subr.mxu0 0.0
    %694 = vmatpush1.msra.mxu0 0.0
    %695 = vmatprep.subr.mxu0 0.0
    %696 = vmatpush1.msra.mxu0 0.0
    %697 = vmatprep.subr.mxu0 0.0
    %698 = vmatpush1.msra.mxu0 0.0
    %699 = vmatprep.subr.mxu0 0.0
    %700 = vmatpush1.msra.mxu0 0.0
    %701 = vmatprep.subr.mxu0 0.0
    %702 = vmatpush1.msra.mxu0 0.0
    %703 = vmatprep.subr.mxu0 0.0
    %704 = vmatpush1.msra.mxu0 0.0
    %705 = vmatprep.subr.mxu0 0.0
    %706 = vmatpush1.msra.mxu0 0.0
    %707 = vmatprep.subr.mxu0 0.0
    %708 = vmatpush1.msra.mxu0 0.0
    %709 = vmatprep.subr.mxu0 0.0
    %710 = vmatpush1.msra.mxu0 0.0
    %711 = vmatprep.subr.mxu0 0.0
    %712 = vmatpush1.msra.mxu0 0.0
    %713 = vmatprep.subr.mxu0 0.0
    %714 = vmatpush1.msra.mxu0 0.0
    %715 = vmatprep.subr.mxu0 0.0
    %716 = vmatpush1.msra.mxu0 0.0
    %717 = vmatprep.subr.mxu0 0.0
    %718 = vmatpush1.msra.mxu0 0.0
    %719 = vmatprep.subr.mxu0 0.0
    %720 = vmatpush1.msra.mxu0 0.0
    %721 = vmatprep.subr.mxu0 0.0
    %722 = vmatpush1.msra.mxu0 0.0
    %723 = vmatprep.subr.mxu0 0.0
    %724 = vmatpush1.msra.mxu0 0.0
    %725 = vmatprep.subr.mxu0 0.0
    %726 = vmatpush1.msra.mxu0 0.0
    %727 = vmatprep.subr.mxu0 0.0
    %728 = vmatpush1.msra.mxu0 0.0
    %729 = vmatprep.mubr.f32.mxu0 0.0
    %730 = vmatmul.mubr.f32.gmra.mrb[0].mxu0 %v313
    %v731 = vpop.f32.mrb[0].mxu0
    %v732 = vadd.f32 0.0, %v731
    %v733 = vpop.f32.mrb[0].mxu0
    %734 = vdwg.mxu0
    %v736 = vsel %vm130, %v664, 0
    %738 = vmatprep.subr.mxu0 0.0
    %739 = vmatpush1.msra.mxu0 %v103
    %740 = vmatprep.subr.mxu0 0.0
    %741 = vmatpush1.msra.mxu0 %v104
    %742 = vmatprep.subr.mxu0 0.0
    %743 = vmatpush1.msra.mxu0 %v105
    %744 = vmatprep.subr.mxu0 0.0
    %745 = vmatpush1.msra.mxu0 %v106
    %746 = vmatprep.subr.mxu0 0.0
    %747 = vmatpush1.msra.mxu0 0.0
    %748 = vmatprep.subr.mxu0 0.0
    %749 = vmatpush1.msra.mxu0 0.0
    %750 = vmatprep.subr.mxu0 0.0
    %751 = vmatpush1.msra.mxu0 0.0
    %752 = vmatprep.subr.mxu0 0.0
    %753 = vmatpush1.msra.mxu0 0.0
    %754 = vmatprep.subr.mxu0 0.0
    %755 = vmatpush1.msra.mxu0 0.0
    %756 = vmatprep.subr.mxu0 0.0
    %757 = vmatpush1.msra.mxu0 0.0
    %758 = vmatprep.subr.mxu0 0.0
    %759 = vmatpush1.msra.mxu0 0.0
    %760 = vmatprep.subr.mxu0 0.0
    %761 = vmatpush1.msra.mxu0 0.0
    %762 = vmatprep.subr.mxu0 0.0
    %763 = vmatpush1.msra.mxu0 0.0
    %764 = vmatprep.subr.mxu0 0.0
    %765 = vmatpush1.msra.mxu0 0.0
    %766 = vmatprep.subr.mxu0 0.0
    %767 = vmatpush1.msra.mxu0 0.0
    %768 = vmatprep.subr.mxu0 0.0
    %769 = vmatpush1.msra.mxu0 0.0
    %770 = vmatprep.subr.mxu0 0.0
    %771 = vmatpush1.msra.mxu0 0.0
    %772 = vmatprep.subr.mxu0 0.0
    %773 = vmatpush1.msra.mxu0 0.0
    %774 = vmatprep.subr.mxu0 0.0
    %775 = vmatpush1.msra.mxu0 0.0
    %776 = vmatprep.subr.mxu0 0.0
    %777 = vmatpush1.msra.mxu0 0.0
    %778 = vmatprep.subr.mxu0 0.0
    %779 = vmatpush1.msra.mxu0 0.0
    %780 = vmatprep.subr.mxu0 0.0
    %781 = vmatpush1.msra.mxu0 0.0
    %782 = vmatprep.subr.mxu0 0.0
    %783 = vmatpush1.msra.mxu0 0.0
    %784 = vmatprep.subr.mxu0 0.0
    %785 = vmatpush1.msra.mxu0 0.0
    %786 = vmatprep.subr.mxu0 0.0
    %787 = vmatpush1.msra.mxu0 0.0
    %788 = vmatprep.subr.mxu0 0.0
    %789 = vmatpush1.msra.mxu0 0.0
    %790 = vmatprep.subr.mxu0 0.0
    %791 = vmatpush1.msra.mxu0 0.0
    %792 = vmatprep.subr.mxu0 0.0
    %793 = vmatpush1.msra.mxu0 0.0
    %794 = vmatprep.subr.mxu0 0.0
    %795 = vmatpush1.msra.mxu0 0.0
    %796 = vmatprep.subr.mxu0 0.0
    %797 = vmatpush1.msra.mxu0 0.0
    %798 = vmatprep.subr.mxu0 0.0
    %799 = vmatpush1.msra.mxu0 0.0
    %800 = vmatprep.subr.mxu0 0.0
    %801 = vmatpush1.msra.mxu0 0.0
    %802 = vmatprep.mubr.f32.mxu0 0.0
    %803 = vmatmul.mubr.f32.gmra.mrb[0].mxu0 %v736
    %v804 = vpop.f32.mrb[0].mxu0
    %v805 = vadd.f32 %v732, %v804
    %v806 = vpop.f32.mrb[0].mxu0
    %807 = vdwg.mxu0
    %v808 = vadd.f32 %v805, %v111
    %v809 = vxor.u32 %v808, 2147483648
    %v810 = vmul.f32 %v809, 1.442695
    %v811 = vpow.pop %v810
    %v812 = vadd.f32 %v811, 1.0
    %v813 = vrcp.pop %v812
    %v814 = vmul.f32 1.0, %v813
    %v815 = vtanh.pop %v808
    %v816 = vmul.f32 %v814, %v303
    %818 = vrot.lane.b32.xlu0 %v815, 64
    %v819 = vpop.permute.xlu0 %818
    %v821 = vmul.f32 %v814, %v819
    %823 = vrot.lane.b32.xlu0 %v821, 32
    %v824 = vpop.permute.xlu0 %823
    %v826 = vadd.f32 %v816, %v824
    %v827 = vtanh.pop %v826
    %829 = vrot.lane.b32.xlu0 %v827, 64
    %v830 = vpop.permute.xlu0 %829
    %v832 = vmul.f32 %v814, %v830
    %834 = vrot.lane.b32.xlu0 %v832, 32
    %v835 = vpop.permute.xlu0 %834
    %v836 = vsel %vm130, %v835, 0
    %838 = vmatprep.subr.mxu0 0.0
    %839 = vmatpush1.msra.mxu0 %v112
    %840 = vmatprep.subr.mxu0 0.0
    %841 = vmatpush1.msra.mxu0 %v113
    %842 = vmatprep.subr.mxu0 0.0
    %843 = vmatpush1.msra.mxu0 %v114
    %844 = vmatprep.subr.mxu0 0.0
    %845 = vmatpush1.msra.mxu0 %v115
    %846 = vmatprep.subr.mxu0 0.0
    %847 = vmatpush1.msra.mxu0 0.0
    %848 = vmatprep.subr.mxu0 0.0
    %849 = vmatpush1.msra.mxu0 0.0
    %850 = vmatprep.subr.mxu0 0.0
    %851 = vmatpush1.msra.mxu0 0.0
    %852 = vmatprep.subr.mxu0 0.0
    %853 = vmatpush1.msra.mxu0 0.0
    %854 = vmatprep.subr.mxu0 0.0
    %855 = vmatpush1.msra.mxu0 0.0
    %856 = vmatprep.subr.mxu0 0.0
    %857 = vmatpush1.msra.mxu0 0.0
    %858 = vmatprep.subr.mxu0 0.0
    %859 = vmatpush1.msra.mxu0 0.0
    %860 = vmatprep.subr.mxu0 0.0
    %861 = vmatpush1.msra.mxu0 0.0
    %862 = vmatprep.subr.mxu0 0.0
    %863 = vmatpush1.msra.mxu0 0.0
    %864 = vmatprep.subr.mxu0 0.0
    %865 = vmatpush1.msra.mxu0 0.0
    %866 = vmatprep.subr.mxu0 0.0
    %867 = vmatpush1.msra.mxu0 0.0
    %868 = vmatprep.subr.mxu0 0.0
    %869 = vmatpush1.msra.mxu0 0.0
    %870 = vmatprep.subr.mxu0 0.0
    %871 = vmatpush1.msra.mxu0 0.0
    %872 = vmatprep.subr.mxu0 0.0
    %873 = vmatpush1.msra.mxu0 0.0
    %874 = vmatprep.subr.mxu0 0.0
    %875 = vmatpush1.msra.mxu0 0.0
    %876 = vmatprep.subr.mxu0 0.0
    %877 = vmatpush1.msra.mxu0 0.0
    %878 = vmatprep.subr.mxu0 0.0
    %879 = vmatpush1.msra.mxu0 0.0
    %880 = vmatprep.subr.mxu0 0.0
    %881 = vmatpush1.msra.mxu0 0.0
    %882 = vmatprep.subr.mxu0 0.0
    %883 = vmatpush1.msra.mxu0 0.0
    %884 = vmatprep.subr.mxu0 0.0
    %885 = vmatpush1.msra.mxu0 0.0
    %886 = vmatprep.subr.mxu0 0.0
    %887 = vmatpush1.msra.mxu0 0.0
    %888 = vmatprep.subr.mxu0 0.0
    %889 = vmatpush1.msra.mxu0 0.0
    %890 = vmatprep.subr.mxu0 0.0
    %891 = vmatpush1.msra.mxu0 0.0
    %892 = vmatprep.subr.mxu0 0.0
    %893 = vmatpush1.msra.mxu0 0.0
    %894 = vmatprep.subr.mxu0 0.0
    %895 = vmatpush1.msra.mxu0 0.0
    %896 = vmatprep.subr.mxu0 0.0
    %897 = vmatpush1.msra.mxu0 0.0
    %898 = vmatprep.subr.mxu0 0.0
    %899 = vmatpush1.msra.mxu0 0.0
    %900 = vmatprep.subr.mxu0 0.0
    %901 = vmatpush1.msra.mxu0 0.0
    %902 = vmatprep.mubr.f32.mxu0 0.0
    %903 = vmatmul.mubr.f32.gmra.mrb[0].mxu0 %v836
    %v904 = vpop.f32.mrb[0].mxu0
    %v905 = vadd.f32 0.0, %v904
    %v906 = vpop.f32.mrb[0].mxu0
    %907 = vdwg.mxu0
    %v908 = vsel %vm385, %v905, -inf
    %909 = vmax.xlane.f32.xlu0 %v908
    %v910 = vpop.xlane.xlu0 %909
    %v911 = vsub.f32 %v905, %v910
    %v912 = vmul.f32 %v911, 1.442695
    %v913 = vpow.pop %v912
    %v914 = vsel %vm385, %v913, 0.0
    %915 = vadd.xlane.f32.xlu0 %v914
    %v916 = vpop.xlane.xlu0 %915
    %v917 = vrcp.pop %v916
    %v918 = vmul.f32 %v913, %v917
    %v920 = vsel %vm397, %v918, 0
    %922 = vmatprep.subr.mxu0 0.0
    %923 = vmatpush1.msra.mxu0 %v116
    %924 = vmatprep.subr.mxu0 0.0
    %925 = vmatpush1.msra.mxu0 %v117
    %926 = vmatprep.subr.mxu0 0.0
    %927 = vmatpush1.msra.mxu0 0.0
    %928 = vmatprep.subr.mxu0 0.0
    %929 = vmatpush1.msra.mxu0 0.0
    %930 = vmatprep.subr.mxu0 0.0
    %931 = vmatpush1.msra.mxu0 0.0
    %932 = vmatprep.subr.mxu0 0.0
    %933 = vmatpush1.msra.mxu0 0.0
    %934 = vmatprep.subr.mxu0 0.0
    %935 = vmatpush1.msra.mxu0 0.0
    %936 = vmatprep.subr.mxu0 0.0
    %937 = vmatpush1.msra.mxu0 0.0
    %938 = vmatprep.subr.mxu0 0.0
    %939 = vmatpush1.msra.mxu0 0.0
    %940 = vmatprep.subr.mxu0 0.0
    %941 = vmatpush1.msra.mxu0 0.0
    %942 = vmatprep.subr.mxu0 0.0
    %943 = vmatpush1.msra.mxu0 0.0
    %944 = vmatprep.subr.mxu0 0.0
    %945 = vmatpush1.msra.mxu0 0.0
    %946 = vmatprep.subr.mxu0 0.0
    %947 = vmatpush1.msra.mxu0 0.0
    %948 = vmatprep.subr.mxu0 0.0
    %949 = vmatpush1.msra.mxu0 0.0
    %950 = vmatprep.subr.mxu0 0.0
    %951 = vmatpush1.msra.mxu0 0.0
    %952 = vmatprep.subr.mxu0 0.0
    %953 = vmatpush1.msra.mxu0 0.0
    %954 = vmatprep.subr.mxu0 0.0
    %955 = vmatpush1.msra.mxu0 0.0
    %956 = vmatprep.subr.mxu0 0.0
    %957 = vmatpush1.msra.mxu0 0.0
    %958 = vmatprep.subr.mxu0 0.0
    %959 = vmatpush1.msra.mxu0 0.0
    %960 = vmatprep.subr.mxu0 0.0
    %961 = vmatpush1.msra.mxu0 0.0
    %962 = vmatprep.subr.mxu0 0.0
    %963 = vmatpush1.msra.mxu0 0.0
    %964 = vmatprep.subr.mxu0 0.0
    %965 = vmatpush1.msra.mxu0 0.0
    %966 = vmatprep.subr.mxu0 0.0
    %967 = vmatpush1.msra.mxu0 0.0
    %968 = vmatprep.subr.mxu0 0.0
    %969 = vmatpush1.msra.mxu0 0.0
    %970 = vmatprep.subr.mxu0 0.0
    %971 = vmatpush1.msra.mxu0 0.0
    %972 = vmatprep.subr.mxu0 0.0
    %973 = vmatpush1.msra.mxu0 0.0
    %974 = vmatprep.subr.mxu0 0.0
    %975 = vmatpush1.msra.mxu0 0.0
    %976 = vmatprep.subr.mxu0 0.0
    %977 = vmatpush1.msra.mxu0 0.0
    %978 = vmatprep.subr.mxu0 0.0
    %979 = vmatpush1.msra.mxu0 0.0
    %980 = vmatprep.subr.mxu0 0.0
    %981 = vmatpush1.msra.mxu0 0.0
    %982 = vmatprep.subr.mxu0 0.0
    %983 = vmatpush1.msra.mxu0 0.0
    %984 = vmatprep.subr.mxu0 0.0
    %985 = vmatpush1.msra.mxu0 0.0
    %986 = vmatprep.mubr.f32.mxu0 0.0
    %987 = vmatmul.mubr.f32.gmra.mrb[0].mxu0 %v920
    %v988 = vpop.f32.mrb[0].mxu0
    %v989 = vadd.f32 0.0, %v988
    %v990 = vpop.f32.mrb[0].mxu0
    %991 = vdwg.mxu0
    %992 = vmatprep.subr.mxu0 0.0
    %993 = vmatpush1.msra.mxu0 %v122
    %994 = vmatprep.subr.mxu0 0.0
    %995 = vmatpush1.msra.mxu0 %v123
    %996 = vmatprep.subr.mxu0 0.0
    %997 = vmatpush1.msra.mxu0 %v124
    %998 = vmatprep.subr.mxu0 0.0
    %999 = vmatpush1.msra.mxu0 %v125
    %1000 = vmatprep.subr.mxu0 0.0
    %1001 = vmatpush1.msra.mxu0 0.0
    %1002 = vmatprep.subr.mxu0 0.0
    %1003 = vmatpush1.msra.mxu0 0.0
    %1004 = vmatprep.subr.mxu0 0.0
    %1005 = vmatpush1.msra.mxu0 0.0
    %1006 = vmatprep.subr.mxu0 0.0
    %1007 = vmatpush1.msra.mxu0 0.0
    %1008 = vmatprep.subr.mxu0 0.0
    %1009 = vmatpush1.msra.mxu0 0.0
    %1010 = vmatprep.subr.mxu0 0.0
    %1011 = vmatpush1.msra.mxu0 0.0
    %1012 = vmatprep.subr.mxu0 0.0
    %1013 = vmatpush1.msra.mxu0 0.0
    %1014 = vmatprep.subr.mxu0 0.0
    %1015 = vmatpush1.msra.mxu0 0.0
    %1016 = vmatprep.subr.mxu0 0.0
    %1017 = vmatpush1.msra.mxu0 0.0
    %1018 = vmatprep.subr.mxu0 0.0
    %1019 = vmatpush1.msra.mxu0 0.0
    %1020 = vmatprep.subr.mxu0 0.0
    %1021 = vmatpush1.msra.mxu0 0.0
    %1022 = vmatprep.subr.mxu0 0.0
    %1023 = vmatpush1.msra.mxu0 0.0
    %1024 = vmatprep.subr.mxu0 0.0
    %1025 = vmatpush1.msra.mxu0 0.0
    %1026 = vmatprep.subr.mxu0 0.0
    %1027 = vmatpush1.msra.mxu0 0.0
    %1028 = vmatprep.subr.mxu0 0.0
    %1029 = vmatpush1.msra.mxu0 0.0
    %1030 = vmatprep.subr.mxu0 0.0
    %1031 = vmatpush1.msra.mxu0 0.0
    %1032 = vmatprep.subr.mxu0 0.0
    %1033 = vmatpush1.msra.mxu0 0.0
    %1034 = vmatprep.subr.mxu0 0.0
    %1035 = vmatpush1.msra.mxu0 0.0
    %1036 = vmatprep.subr.mxu0 0.0
    %1037 = vmatpush1.msra.mxu0 0.0
    %1038 = vmatprep.subr.mxu0 0.0
    %1039 = vmatpush1.msra.mxu0 0.0
    %1040 = vmatprep.subr.mxu0 0.0
    %1041 = vmatpush1.msra.mxu0 0.0
    %1042 = vmatprep.subr.mxu0 0.0
    %1043 = vmatpush1.msra.mxu0 0.0
    %1044 = vmatprep.subr.mxu0 0.0
    %1045 = vmatpush1.msra.mxu0 0.0
    %1046 = vmatprep.subr.mxu0 0.0
    %1047 = vmatpush1.msra.mxu0 0.0
    %1048 = vmatprep.subr.mxu0 0.0
    %1049 = vmatpush1.msra.mxu0 0.0
    %1050 = vmatprep.subr.mxu0 0.0
    %1051 = vmatpush1.msra.mxu0 0.0
    %1052 = vmatprep.subr.mxu0 0.0
    %1053 = vmatpush1.msra.mxu0 0.0
    %1054 = vmatprep.subr.mxu0 0.0
    %1055 = vmatpush1.msra.mxu0 0.0
    %1056 = vmatprep.mubr.f32.mxu0 0.0
    %1057 = vmatmul.mubr.f32.gmra.mrb[0].mxu0 %v836
    %v1058 = vpop.f32.mrb[0].mxu0
    %v1059 = vadd.f32 0.0, %v1058
    %v1060 = vpop.f32.mrb[0].mxu0
    %1061 = vdwg.mxu0
    %v1063 = vsel %vm130, %v989, 0
    %1065 = vmatprep.subr.mxu0 0.0
    %1066 = vmatpush1.msra.mxu0 %v118
    %1067 = vmatprep.subr.mxu0 0.0
    %1068 = vmatpush1.msra.mxu0 %v119
    %1069 = vmatprep.subr.mxu0 0.0
    %1070 = vmatpush1.msra.mxu0 %v120
    %1071 = vmatprep.subr.mxu0 0.0
    %1072 = vmatpush1.msra.mxu0 %v121
    %1073 = vmatprep.subr.mxu0 0.0
    %1074 = vmatpush1.msra.mxu0 0.0
    %1075 = vmatprep.subr.mxu0 0.0
    %1076 = vmatpush1.msra.mxu0 0.0
    %1077 = vmatprep.subr.mxu0 0.0
    %1078 = vmatpush1.msra.mxu0 0.0
    %1079 = vmatprep.subr.mxu0 0.0
    %1080 = vmatpush1.msra.mxu0 0.0
    %1081 = vmatprep.subr.mxu0 0.0
    %1082 = vmatpush1.msra.mxu0 0.0
    %1083 = vmatprep.subr.mxu0 0.0
    %1084 = vmatpush1.msra.mxu0 0.0
    %1085 = vmatprep.subr.mxu0 0.0
    %1086 = vmatpush1.msra.mxu0 0.0
    %1087 = vmatprep.subr.mxu0 0.0
    %1088 = vmatpush1.msra.mxu0 0.0
    %1089 = vmatprep.subr.mxu0 0.0
    %1090 = vmatpush1.msra.mxu0 0.0
    %1091 = vmatprep.subr.mxu0 0.0
    %1092 = vmatpush1.msra.mxu0 0.0
    %1093 = vmatprep.subr.mxu0 0.0
    %1094 = vmatpush1.msra.mxu0 0.0
    %1095 = vmatprep.subr.mxu0 0.0
    %1096 = vmatpush1.msra.mxu0 0.0
    %1097 = vmatprep.subr.mxu0 0.0
    %1098 = vmatpush1.msra.mxu0 0.0
    %1099 = vmatprep.subr.mxu0 0.0
    %1100 = vmatpush1.msra.mxu0 0.0
    %1101 = vmatprep.subr.mxu0 0.0
    %1102 = vmatpush1.msra.mxu0 0.0
    %1103 = vmatprep.subr.mxu0 0.0
    %1104 = vmatpush1.msra.mxu0 0.0
    %1105 = vmatprep.subr.mxu0 0.0
    %1106 = vmatpush1.msra.mxu0 0.0
    %1107 = vmatprep.subr.mxu0 0.0
    %1108 = vmatpush1.msra.mxu0 0.0
    %1109 = vmatprep.subr.mxu0 0.0
    %1110 = vmatpush1.msra.mxu0 0.0
    %1111 = vmatprep.subr.mxu0 0.0
    %1112 = vmatpush1.msra.mxu0 0.0
    %1113 = vmatprep.subr.mxu0 0.0
    %1114 = vmatpush1.msra.mxu0 0.0
    %1115 = vmatprep.subr.mxu0 0.0
    %1116 = vmatpush1.msra.mxu0 0.0
    %1117 = vmatprep.subr.mxu0 0.0
    %1118 = vmatpush1.msra.mxu0 0.0
    %1119 = vmatprep.subr.mxu0 0.0
    %1120 = vmatpush1.msra.mxu0 0.0
    %1121 = vmatprep.subr.mxu0 0.0
    %1122 = vmatpush1.msra.mxu0 0.0
    %1123 = vmatprep.subr.mxu0 0.0
    %1124 = vmatpush1.msra.mxu0 0.0
    %1125 = vmatprep.subr.mxu0 0.0
    %1126 = vmatpush1.msra.mxu0 0.0
    %1127 = vmatprep.subr.mxu0 0.0
    %1128 = vmatpush1.msra.mxu0 0.0
    %1129 = vmatprep.mubr.f32.mxu0 0.0
    %1130 = vmatmul.mubr.f32.gmra.mrb[0].mxu0 %v1063
    %v1131 = vpop.f32.mrb[0].mxu0
    %v1132 = vadd.f32 %v1059, %v1131
    %v1133 = vpop.f32.mrb[0].mxu0
    %1134 = vdwg.mxu0
    %v1135 = vadd.f32 %v1132, %v126
    %v1136 = vsel %vm615, %v1135, -inf
    %1137 = vmax.xlane.f32.xlu0 %v1136
    %v1138 = vpop.xlane.xlu0 %1137
    %v1139 = vsub.f32 %v1135, %v1138
    %v1140 = vmul.f32 %v1139, 1.442695
    %v1141 = vpow.pop %v1140
    %v1142 = vsel %vm615, %v1141, 0.0
    %1143 = vadd.xlane.f32.xlu0 %v1142
    %v1144 = vpop.xlane.xlu0 %1143
    %v1145 = vlog2.pop %v1144
    %v1146 = vmul.f32 %v1145, 0.6931472
    %v1147 = vsub.f32 %v1139, %v1146
    %1148 = vrot.lane.b32.xlu0 %v832, 96
    %v1149 = vpop.permute.xlu0 %1148
    %1152 = vrot.lane.b32.xlu0 %v826, 64
    %v1153 = vpop.permute.xlu0 %1152
    %v1155 = vsel %vm635, %v1147, %v1149
    %v1156 = vsel %vm637, %v1155, %v1153
    %v1157 = vsel %vm397, %v918, 0.0
    %v1160 = vcombine.low %v1156, %v1157
    %v1162 = vunpack.c.l.s4 1966171168
    %v1163 = vunpack.c.0.s8 %v1162
    %v1164 = vlaneseq
    %v1165 = vshrl.u32 %v1164, 7
    %v1166 = vsub.s32 %v1163, %v1165
    %v1167 = vrot.slane %v1160, %v1166
    %v1169 = vunpack.c.l.s4 1966171168
    %v1170 = vunpack.c.0.s8 %v1169
    %v1171 = vlaneseq
    %v1172 = vshrl.u32 %v1171, 7
    %v1173 = vsub.s32 %v1170, %v1172
    %v1174 = vrot.slane %v1167, %v1173
    %s1176 = scalar_lea.vmem [#allocation11], 1
    %1177 = vst.msk [vmem:[%s1176] ss:$8 sm:$0x3] %vm661, %v1174
    %1178 = vst.msk [vmem:[%s1176] ss:$8 sm:$0x0] %vm661, %v1174
    %v1179 = vld [vmem:[#allocation2 + $0x2] sm:$0x1]
    %1180 = vmatprep.subr.mxu0 0.0
    %1181 = vmatpush1.msra.mxu0 %v107
    %1182 = vmatprep.subr.mxu0 0.0
    %1183 = vmatpush1.msra.mxu0 %v108
    %1184 = vmatprep.subr.mxu0 0.0
    %1185 = vmatpush1.msra.mxu0 %v109
    %1186 = vmatprep.subr.mxu0 0.0
    %1187 = vmatpush1.msra.mxu0 %v110
    %1188 = vmatprep.subr.mxu0 0.0
    %1189 = vmatpush1.msra.mxu0 0.0
    %1190 = vmatprep.subr.mxu0 0.0
    %1191 = vmatpush1.msra.mxu0 0.0
    %1192 = vmatprep.subr.mxu0 0.0
    %1193 = vmatpush1.msra.mxu0 0.0
    %1194 = vmatprep.subr.mxu0 0.0
    %1195 = vmatpush1.msra.mxu0 0.0
    %1196 = vmatprep.subr.mxu0 0.0
    %1197 = vmatpush1.msra.mxu0 0.0
    %1198 = vmatprep.subr.mxu0 0.0
    %1199 = vmatpush1.msra.mxu0 0.0
    %1200 = vmatprep.subr.mxu0 0.0
    %1201 = vmatpush1.msra.mxu0 0.0
    %1202 = vmatprep.subr.mxu0 0.0
    %1203 = vmatpush1.msra.mxu0 0.0
    %1204 = vmatprep.subr.mxu0 0.0
    %1205 = vmatpush1.msra.mxu0 0.0
    %1206 = vmatprep.subr.mxu0 0.0
    %1207 = vmatpush1.msra.mxu0 0.0
    %1208 = vmatprep.subr.mxu0 0.0
    %1209 = vmatpush1.msra.mxu0 0.0
    %1210 = vmatprep.subr.mxu0 0.0
    %1211 = vmatpush1.msra.mxu0 0.0
    %1212 = vmatprep.subr.mxu0 0.0
    %1213 = vmatpush1.msra.mxu0 0.0
    %1214 = vmatprep.subr.mxu0 0.0
    %1215 = vmatpush1.msra.mxu0 0.0
    %1216 = vmatprep.subr.mxu0 0.0
    %1217 = vmatpush1.msra.mxu0 0.0
    %1218 = vmatprep.subr.mxu0 0.0
    %1219 = vmatpush1.msra.mxu0 0.0
    %1220 = vmatprep.subr.mxu0 0.0
    %1221 = vmatpush1.msra.mxu0 0.0
    %1222 = vmatprep.subr.mxu0 0.0
    %1223 = vmatpush1.msra.mxu0 0.0
    %1224 = vmatprep.subr.mxu0 0.0
    %1225 = vmatpush1.msra.mxu0 0.0
    %1226 = vmatprep.subr.mxu0 0.0
    %1227 = vmatpush1.msra.mxu0 0.0
    %1228 = vmatprep.subr.mxu0 0.0
    %1229 = vmatpush1.msra.mxu0 0.0
    %1230 = vmatprep.subr.mxu0 0.0
    %1231 = vmatpush1.msra.mxu0 0.0
    %1232 = vmatprep.subr.mxu0 0.0
    %1233 = vmatpush1.msra.mxu0 0.0
    %1234 = vmatprep.subr.mxu0 0.0
    %1235 = vmatpush1.msra.mxu0 0.0
    %1236 = vmatprep.subr.mxu0 0.0
    %1237 = vmatpush1.msra.mxu0 0.0
    %1238 = vmatprep.subr.mxu0 0.0
    %1239 = vmatpush1.msra.mxu0 0.0
    %1240 = vmatprep.subr.mxu0 0.0
    %1241 = vmatpush1.msra.mxu0 0.0
    %1242 = vmatprep.subr.mxu0 0.0
    %1243 = vmatpush1.msra.mxu0 0.0
    %1244 = vmatprep.mubr.f32.mxu0 0.0
    %1245 = vmatmul.mubr.f32.gmra.mrb[0].mxu0 %v836
    %v1246 = vpop.f32.mrb[0].mxu0
    %v1247 = vadd.f32 0.0, %v1246
    %v1248 = vpop.f32.mrb[0].mxu0
    %1249 = vdwg.mxu0
    %v1251 = vsel %vm130, %v1179, 0
    %1253 = vmatprep.subr.mxu0 0.0
    %1254 = vmatpush1.msra.mxu0 %v103
    %1255 = vmatprep.subr.mxu0 0.0
    %1256 = vmatpush1.msra.mxu0 %v104
    %1257 = vmatprep.subr.mxu0 0.0
    %1258 = vmatpush1.msra.mxu0 %v105
    %1259 = vmatprep.subr.mxu0 0.0
    %1260 = vmatpush1.msra.mxu0 %v106
    %1261 = vmatprep.subr.mxu0 0.0
    %1262 = vmatpush1.msra.mxu0 0.0
    %1263 = vmatprep.subr.mxu0 0.0
    %1264 = vmatpush1.msra.mxu0 0.0
    %1265 = vmatprep.subr.mxu0 0.0
    %1266 = vmatpush1.msra.mxu0 0.0
    %1267 = vmatprep.subr.mxu0 0.0
    %1268 = vmatpush1.msra.mxu0 0.0
    %1269 = vmatprep.subr.mxu0 0.0
    %1270 = vmatpush1.msra.mxu0 0.0
    %1271 = vmatprep.subr.mxu0 0.0
    %1272 = vmatpush1.msra.mxu0 0.0
    %1273 = vmatprep.subr.mxu0 0.0
    %1274 = vmatpush1.msra.mxu0 0.0
    %1275 = vmatprep.subr.mxu0 0.0
    %1276 = vmatpush1.msra.mxu0 0.0
    %1277 = vmatprep.subr.mxu0 0.0
    %1278 = vmatpush1.msra.mxu0 0.0
    %1279 = vmatprep.subr.mxu0 0.0
    %1280 = vmatpush1.msra.mxu0 0.0
    %1281 = vmatprep.subr.mxu0 0.0
    %1282 = vmatpush1.msra.mxu0 0.0
    %1283 = vmatprep.subr.mxu0 0.0
    %1284 = vmatpush1.msra.mxu0 0.0
    %1285 = vmatprep.subr.mxu0 0.0
    %1286 = vmatpush1.msra.mxu0 0.0
    %1287 = vmatprep.subr.mxu0 0.0
    %1288 = vmatpush1.msra.mxu0 0.0
    %1289 = vmatprep.subr.mxu0 0.0
    %1290 = vmatpush1.msra.mxu0 0.0
    %1291 = vmatprep.subr.mxu0 0.0
    %1292 = vmatpush1.msra.mxu0 0.0
    %1293 = vmatprep.subr.mxu0 0.0
    %1294 = vmatpush1.msra.mxu0 0.0
    %1295 = vmatprep.subr.mxu0 0.0
    %1296 = vmatpush1.msra.mxu0 0.0
    %1297 = vmatprep.subr.mxu0 0.0
    %1298 = vmatpush1.msra.mxu0 0.0
    %1299 = vmatprep.subr.mxu0 0.0
    %1300 = vmatpush1.msra.mxu0 0.0
    %1301 = vmatprep.subr.mxu0 0.0
    %1302 = vmatpush1.msra.mxu0 0.0
    %1303 = vmatprep.subr.mxu0 0.0
    %1304 = vmatpush1.msra.mxu0 0.0
    %1305 = vmatprep.subr.mxu0 0.0
    %1306 = vmatpush1.msra.mxu0 0.0
    %1307 = vmatprep.subr.mxu0 0.0
    %1308 = vmatpush1.msra.mxu0 0.0
    %1309 = vmatprep.subr.mxu0 0.0
    %1310 = vmatpush1.msra.mxu0 0.0
    %1311 = vmatprep.subr.mxu0 0.0
    %1312 = vmatpush1.msra.mxu0 0.0
    %1313 = vmatprep.subr.mxu0 0.0
    %1314 = vmatpush1.msra.mxu0 0.0
    %1315 = vmatprep.subr.mxu0 0.0
    %1316 = vmatpush1.msra.mxu0 0.0
    %1317 = vmatprep.mubr.f32.mxu0 0.0
    %1318 = vmatmul.mubr.f32.gmra.mrb[0].mxu0 %v1251
    %v1319 = vpop.f32.mrb[0].mxu0
    %v1320 = vadd.f32 %v1247, %v1319
    %v1321 = vpop.f32.mrb[0].mxu0
    %1322 = vdwg.mxu0
    %v1323 = vadd.f32 %v1320, %v111
    %v1324 = vxor.u32 %v1323, 2147483648
    %v1325 = vmul.f32 %v1324, 1.442695
    %v1326 = vpow.pop %v1325
    %v1327 = vadd.f32 %v1326, 1.0
    %v1328 = vrcp.pop %v1327
    %v1329 = vmul.f32 1.0, %v1328
    %v1330 = vtanh.pop %v1323
    %v1331 = vmul.f32 %v1329, %v826
    %1333 = vrot.lane.b32.xlu0 %v1330, 64
    %v1334 = vpop.permute.xlu0 %1333
    %v1336 = vmul.f32 %v1329, %v1334
    %1338 = vrot.lane.b32.xlu0 %v1336, 32
    %v1339 = vpop.permute.xlu0 %1338
    %v1341 = vadd.f32 %v1331, %v1339
    %v1342 = vtanh.pop %v1341
    %1344 = vrot.lane.b32.xlu0 %v1342, 64
    %v1345 = vpop.permute.xlu0 %1344
    %v1347 = vmul.f32 %v1329, %v1345
    %1349 = vrot.lane.b32.xlu0 %v1347, 32
    %v1350 = vpop.permute.xlu0 %1349
    %v1351 = vsel %vm130, %v1350, 0
    %1353 = vmatprep.subr.mxu0 0.0
    %1354 = vmatpush1.msra.mxu0 %v112
    %1355 = vmatprep.subr.mxu0 0.0
    %1356 = vmatpush1.msra.mxu0 %v113
    %1357 = vmatprep.subr.mxu0 0.0
    %1358 = vmatpush1.msra.mxu0 %v114
    %1359 = vmatprep.subr.mxu0 0.0
    %1360 = vmatpush1.msra.mxu0 %v115
    %1361 = vmatprep.subr.mxu0 0.0
    %1362 = vmatpush1.msra.mxu0 0.0
    %1363 = vmatprep.subr.mxu0 0.0
    %1364 = vmatpush1.msra.mxu0 0.0
    %1365 = vmatprep.subr.mxu0 0.0
    %1366 = vmatpush1.msra.mxu0 0.0
    %1367 = vmatprep.subr.mxu0 0.0
    %1368 = vmatpush1.msra.mxu0 0.0
    %1369 = vmatprep.subr.mxu0 0.0
    %1370 = vmatpush1.msra.mxu0 0.0
    %1371 = vmatprep.subr.mxu0 0.0
    %1372 = vmatpush1.msra.mxu0 0.0
    %1373 = vmatprep.subr.mxu0 0.0
    %1374 = vmatpush1.msra.mxu0 0.0
    %1375 = vmatprep.subr.mxu0 0.0
    %1376 = vmatpush1.msra.mxu0 0.0
    %1377 = vmatprep.subr.mxu0 0.0
    %1378 = vmatpush1.msra.mxu0 0.0
    %1379 = vmatprep.subr.mxu0 0.0
    %1380 = vmatpush1.msra.mxu0 0.0
    %1381 = vmatprep.subr.mxu0 0.0
    %1382 = vmatpush1.msra.mxu0 0.0
    %1383 = vmatprep.subr.mxu0 0.0
    %1384 = vmatpush1.msra.mxu0 0.0
    %1385 = vmatprep.subr.mxu0 0.0
    %1386 = vmatpush1.msra.mxu0 0.0
    %1387 = vmatprep.subr.mxu0 0.0
    %1388 = vmatpush1.msra.mxu0 0.0
    %1389 = vmatprep.subr.mxu0 0.0
    %1390 = vmatpush1.msra.mxu0 0.0
    %1391 = vmatprep.subr.mxu0 0.0
    %1392 = vmatpush1.msra.mxu0 0.0
    %1393 = vmatprep.subr.mxu0 0.0
    %1394 = vmatpush1.msra.mxu0 0.0
    %1395 = vmatprep.subr.mxu0 0.0
    %1396 = vmatpush1.msra.mxu0 0.0
    %1397 = vmatprep.subr.mxu0 0.0
    %1398 = vmatpush1.msra.mxu0 0.0
    %1399 = vmatprep.subr.mxu0 0.0
    %1400 = vmatpush1.msra.mxu0 0.0
    %1401 = vmatprep.subr.mxu0 0.0
    %1402 = vmatpush1.msra.mxu0 0.0
    %1403 = vmatprep.subr.mxu0 0.0
    %1404 = vmatpush1.msra.mxu0 0.0
    %1405 = vmatprep.subr.mxu0 0.0
    %1406 = vmatpush1.msra.mxu0 0.0
    %1407 = vmatprep.subr.mxu0 0.0
    %1408 = vmatpush1.msra.mxu0 0.0
    %1409 = vmatprep.subr.mxu0 0.0
    %1410 = vmatpush1.msra.mxu0 0.0
    %1411 = vmatprep.subr.mxu0 0.0
    %1412 = vmatpush1.msra.mxu0 0.0
    %1413 = vmatprep.subr.mxu0 0.0
    %1414 = vmatpush1.msra.mxu0 0.0
    %1415 = vmatprep.subr.mxu0 0.0
    %1416 = vmatpush1.msra.mxu0 0.0
    %1417 = vmatprep.mubr.f32.mxu0 0.0
    %1418 = vmatmul.mubr.f32.gmra.mrb[0].mxu0 %v1351
    %v1419 = vpop.f32.mrb[0].mxu0
    %v1420 = vadd.f32 0.0, %v1419
    %v1421 = vpop.f32.mrb[0].mxu0
    %1422 = vdwg.mxu0
    %v1423 = vsel %vm385, %v1420, -inf
    %1424 = vmax.xlane.f32.xlu0 %v1423
    %v1425 = vpop.xlane.xlu0 %1424
    %v1426 = vsub.f32 %v1420, %v1425
    %v1427 = vmul.f32 %v1426, 1.442695
    %v1428 = vpow.pop %v1427
    %v1429 = vsel %vm385, %v1428, 0.0
    %1430 = vadd.xlane.f32.xlu0 %v1429
    %v1431 = vpop.xlane.xlu0 %1430
    %v1432 = vrcp.pop %v1431
    %v1433 = vmul.f32 %v1428, %v1432
    %v1435 = vsel %vm397, %v1433, 0
    %1437 = vmatprep.subr.mxu0 0.0
    %1438 = vmatpush1.msra.mxu0 %v116
    %1439 = vmatprep.subr.mxu0 0.0
    %1440 = vmatpush1.msra.mxu0 %v117
    %1441 = vmatprep.subr.mxu0 0.0
    %1442 = vmatpush1.msra.mxu0 0.0
    %1443 = vmatprep.subr.mxu0 0.0
    %1444 = vmatpush1.msra.mxu0 0.0
    %1445 = vmatprep.subr.mxu0 0.0
    %1446 = vmatpush1.msra.mxu0 0.0
    %1447 = vmatprep.subr.mxu0 0.0
    %1448 = vmatpush1.msra.mxu0 0.0
    %1449 = vmatprep.subr.mxu0 0.0
    %1450 = vmatpush1.msra.mxu0 0.0
    %1451 = vmatprep.subr.mxu0 0.0
    %1452 = vmatpush1.msra.mxu0 0.0
    %1453 = vmatprep.subr.mxu0 0.0
    %1454 = vmatpush1.msra.mxu0 0.0
    %1455 = vmatprep.subr.mxu0 0.0
    %1456 = vmatpush1.msra.mxu0 0.0
    %1457 = vmatprep.subr.mxu0 0.0
    %1458 = vmatpush1.msra.mxu0 0.0
    %1459 = vmatprep.subr.mxu0 0.0
    %1460 = vmatpush1.msra.mxu0 0.0
    %1461 = vmatprep.subr.mxu0 0.0
    %1462 = vmatpush1.msra.mxu0 0.0
    %1463 = vmatprep.subr.mxu0 0.0
    %1464 = vmatpush1.msra.mxu0 0.0
    %1465 = vmatprep.subr.mxu0 0.0
    %1466 = vmatpush1.msra.mxu0 0.0
    %1467 = vmatprep.subr.mxu0 0.0
    %1468 = vmatpush1.msra.mxu0 0.0
    %1469 = vmatprep.subr.mxu0 0.0
    %1470 = vmatpush1.msra.mxu0 0.0
    %1471 = vmatprep.subr.mxu0 0.0
    %1472 = vmatpush1.msra.mxu0 0.0
    %1473 = vmatprep.subr.mxu0 0.0
    %1474 = vmatpush1.msra.mxu0 0.0
    %1475 = vmatprep.subr.mxu0 0.0
    %1476 = vmatpush1.msra.mxu0 0.0
    %1477 = vmatprep.subr.mxu0 0.0
    %1478 = vmatpush1.msra.mxu0 0.0
    %1479 = vmatprep.subr.mxu0 0.0
    %1480 = vmatpush1.msra.mxu0 0.0
    %1481 = vmatprep.subr.mxu0 0.0
    %1482 = vmatpush1.msra.mxu0 0.0
    %1483 = vmatprep.subr.mxu0 0.0
    %1484 = vmatpush1.msra.mxu0 0.0
    %1485 = vmatprep.subr.mxu0 0.0
    %1486 = vmatpush1.msra.mxu0 0.0
    %1487 = vmatprep.subr.mxu0 0.0
    %1488 = vmatpush1.msra.mxu0 0.0
    %1489 = vmatprep.subr.mxu0 0.0
    %1490 = vmatpush1.msra.mxu0 0.0
    %1491 = vmatprep.subr.mxu0 0.0
    %1492 = vmatpush1.msra.mxu0 0.0
    %1493 = vmatprep.subr.mxu0 0.0
    %1494 = vmatpush1.msra.mxu0 0.0
    %1495 = vmatprep.subr.mxu0 0.0
    %1496 = vmatpush1.msra.mxu0 0.0
    %1497 = vmatprep.subr.mxu0 0.0
    %1498 = vmatpush1.msra.mxu0 0.0
    %1499 = vmatprep.subr.mxu0 0.0
    %1500 = vmatpush1.msra.mxu0 0.0
    %1501 = vmatprep.mubr.f32.mxu0 0.0
    %1502 = vmatmul.mubr.f32.gmra.mrb[0].mxu0 %v1435
    %v1503 = vpop.f32.mrb[0].mxu0
    %v1504 = vadd.f32 0.0, %v1503
    %v1505 = vpop.f32.mrb[0].mxu0
    %1506 = vdwg.mxu0
    %1507 = vmatprep.subr.mxu0 0.0
    %1508 = vmatpush1.msra.mxu0 %v122
    %1509 = vmatprep.subr.mxu0 0.0
    %1510 = vmatpush1.msra.mxu0 %v123
    %1511 = vmatprep.subr.mxu0 0.0
    %1512 = vmatpush1.msra.mxu0 %v124
    %1513 = vmatprep.subr.mxu0 0.0
    %1514 = vmatpush1.msra.mxu0 %v125
    %1515 = vmatprep.subr.mxu0 0.0
    %1516 = vmatpush1.msra.mxu0 0.0
    %1517 = vmatprep.subr.mxu0 0.0
    %1518 = vmatpush1.msra.mxu0 0.0
    %1519 = vmatprep.subr.mxu0 0.0
    %1520 = vmatpush1.msra.mxu0 0.0
    %1521 = vmatprep.subr.mxu0 0.0
    %1522 = vmatpush1.msra.mxu0 0.0
    %1523 = vmatprep.subr.mxu0 0.0
    %1524 = vmatpush1.msra.mxu0 0.0
    %1525 = vmatprep.subr.mxu0 0.0
    %1526 = vmatpush1.msra.mxu0 0.0
    %1527 = vmatprep.subr.mxu0 0.0
    %1528 = vmatpush1.msra.mxu0 0.0
    %1529 = vmatprep.subr.mxu0 0.0
    %1530 = vmatpush1.msra.mxu0 0.0
    %1531 = vmatprep.subr.mxu0 0.0
    %1532 = vmatpush1.msra.mxu0 0.0
    %1533 = vmatprep.subr.mxu0 0.0
    %1534 = vmatpush1.msra.mxu0 0.0
    %1535 = vmatprep.subr.mxu0 0.0
    %1536 = vmatpush1.msra.mxu0 0.0
    %1537 = vmatprep.subr.mxu0 0.0
    %1538 = vmatpush1.msra.mxu0 0.0
    %1539 = vmatprep.subr.mxu0 0.0
    %1540 = vmatpush1.msra.mxu0 0.0
    %1541 = vmatprep.subr.mxu0 0.0
    %1542 = vmatpush1.msra.mxu0 0.0
    %1543 = vmatprep.subr.mxu0 0.0
    %1544 = vmatpush1.msra.mxu0 0.0
    %1545 = vmatprep.subr.mxu0 0.0
    %1546 = vmatpush1.msra.mxu0 0.0
    %1547 = vmatprep.subr.mxu0 0.0
    %1548 = vmatpush1.msra.mxu0 0.0
    %1549 = vmatprep.subr.mxu0 0.0
    %1550 = vmatpush1.msra.mxu0 0.0
    %1551 = vmatprep.subr.mxu0 0.0
    %1552 = vmatpush1.msra.mxu0 0.0
    %1553 = vmatprep.subr.mxu0 0.0
    %1554 = vmatpush1.msra.mxu0 0.0
    %1555 = vmatprep.subr.mxu0 0.0
    %1556 = vmatpush1.msra.mxu0 0.0
    %1557 = vmatprep.subr.mxu0 0.0
    %1558 = vmatpush1.msra.mxu0 0.0
    %1559 = vmatprep.subr.mxu0 0.0
    %1560 = vmatpush1.msra.mxu0 0.0
    %1561 = vmatprep.subr.mxu0 0.0
    %1562 = vmatpush1.msra.mxu0 0.0
    %1563 = vmatprep.subr.mxu0 0.0
    %1564 = vmatpush1.msra.mxu0 0.0
    %1565 = vmatprep.subr.mxu0 0.0
    %1566 = vmatpush1.msra.mxu0 0.0
    %1567 = vmatprep.subr.mxu0 0.0
    %1568 = vmatpush1.msra.mxu0 0.0
    %1569 = vmatprep.subr.mxu0 0.0
    %1570 = vmatpush1.msra.mxu0 0.0
    %1571 = vmatprep.mubr.f32.mxu0 0.0
    %1572 = vmatmul.mubr.f32.gmra.mrb[0].mxu0 %v1351
    %v1573 = vpop.f32.mrb[0].mxu0
    %v1574 = vadd.f32 0.0, %v1573
    %v1575 = vpop.f32.mrb[0].mxu0
    %1576 = vdwg.mxu0
    %v1578 = vsel %vm130, %v1504, 0
    %1580 = vmatprep.subr.mxu0 0.0
    %1581 = vmatpush1.msra.mxu0 %v118
    %1582 = vmatprep.subr.mxu0 0.0
    %1583 = vmatpush1.msra.mxu0 %v119
    %1584 = vmatprep.subr.mxu0 0.0
    %1585 = vmatpush1.msra.mxu0 %v120
    %1586 = vmatprep.subr.mxu0 0.0
    %1587 = vmatpush1.msra.mxu0 %v121
    %1588 = vmatprep.subr.mxu0 0.0
    %1589 = vmatpush1.msra.mxu0 0.0
    %1590 = vmatprep.subr.mxu0 0.0
    %1591 = vmatpush1.msra.mxu0 0.0
    %1592 = vmatprep.subr.mxu0 0.0
    %1593 = vmatpush1.msra.mxu0 0.0
    %1594 = vmatprep.subr.mxu0 0.0
    %1595 = vmatpush1.msra.mxu0 0.0
    %1596 = vmatprep.subr.mxu0 0.0
    %1597 = vmatpush1.msra.mxu0 0.0
    %1598 = vmatprep.subr.mxu0 0.0
    %1599 = vmatpush1.msra.mxu0 0.0
    %1600 = vmatprep.subr.mxu0 0.0
    %1601 = vmatpush1.msra.mxu0 0.0
    %1602 = vmatprep.subr.mxu0 0.0
    %1603 = vmatpush1.msra.mxu0 0.0
    %1604 = vmatprep.subr.mxu0 0.0
    %1605 = vmatpush1.msra.mxu0 0.0
    %1606 = vmatprep.subr.mxu0 0.0
    %1607 = vmatpush1.msra.mxu0 0.0
    %1608 = vmatprep.subr.mxu0 0.0
    %1609 = vmatpush1.msra.mxu0 0.0
    %1610 = vmatprep.subr.mxu0 0.0
    %1611 = vmatpush1.msra.mxu0 0.0
    %1612 = vmatprep.subr.mxu0 0.0
    %1613 = vmatpush1.msra.mxu0 0.0
    %1614 = vmatprep.subr.mxu0 0.0
    %1615 = vmatpush1.msra.mxu0 0.0
    %1616 = vmatprep.subr.mxu0 0.0
    %1617 = vmatpush1.msra.mxu0 0.0
    %1618 = vmatprep.subr.mxu0 0.0
    %1619 = vmatpush1.msra.mxu0 0.0
    %1620 = vmatprep.subr.mxu0 0.0
    %1621 = vmatpush1.msra.mxu0 0.0
    %1622 = vmatprep.subr.mxu0 0.0
    %1623 = vmatpush1.msra.mxu0 0.0
    %1624 = vmatprep.subr.mxu0 0.0
    %1625 = vmatpush1.msra.mxu0 0.0
    %1626 = vmatprep.subr.mxu0 0.0
    %1627 = vmatpush1.msra.mxu0 0.0
    %1628 = vmatprep.subr.mxu0 0.0
    %1629 = vmatpush1.msra.mxu0 0.0
    %1630 = vmatprep.subr.mxu0 0.0
    %1631 = vmatpush1.msra.mxu0 0.0
    %1632 = vmatprep.subr.mxu0 0.0
    %1633 = vmatpush1.msra.mxu0 0.0
    %1634 = vmatprep.subr.mxu0 0.0
    %1635 = vmatpush1.msra.mxu0 0.0
    %1636 = vmatprep.subr.mxu0 0.0
    %1637 = vmatpush1.msra.mxu0 0.0
    %1638 = vmatprep.subr.mxu0 0.0
    %1639 = vmatpush1.msra.mxu0 0.0
    %1640 = vmatprep.subr.mxu0 0.0
    %1641 = vmatpush1.msra.mxu0 0.0
    %1642 = vmatprep.subr.mxu0 0.0
    %1643 = vmatpush1.msra.mxu0 0.0
    %1644 = vmatprep.mubr.f32.mxu0 0.0
    %1645 = vmatmul.mubr.f32.gmra.mrb[0].mxu0 %v1578
    %v1646 = vpop.f32.mrb[0].mxu0
    %v1647 = vadd.f32 %v1574, %v1646
    %v1648 = vpop.f32.mrb[0].mxu0
    %1649 = vdwg.mxu0
    %v1650 = vadd.f32 %v1647, %v126
    %v1651 = vsel %vm615, %v1650, -inf
    %1652 = vmax.xlane.f32.xlu0 %v1651
    %v1653 = vpop.xlane.xlu0 %1652
    %v1654 = vsub.f32 %v1650, %v1653
    %v1655 = vmul.f32 %v1654, 1.442695
    %v1656 = vpow.pop %v1655
    %v1657 = vsel %vm615, %v1656, 0.0
    %1658 = vadd.xlane.f32.xlu0 %v1657
    %v1659 = vpop.xlane.xlu0 %1658
    %v1660 = vlog2.pop %v1659
    %v1661 = vmul.f32 %v1660, 0.6931472
    %v1662 = vsub.f32 %v1654, %v1661
    %1663 = vrot.lane.b32.xlu0 %v1347, 96
    %v1664 = vpop.permute.xlu0 %1663
    %1667 = vrot.lane.b32.xlu0 %v1341, 64
    %v1668 = vpop.permute.xlu0 %1667
    %v1670 = vsel %vm635, %v1662, %v1664
    %v1671 = vsel %vm637, %v1670, %v1668
    %v1672 = vsel %vm397, %v1433, 0.0
    %v1675 = vcombine.low %v1671, %v1672
    %v1677 = vunpack.c.l.s4 1966171168
    %v1678 = vunpack.c.0.s8 %v1677
    %v1679 = vlaneseq
    %v1680 = vshrl.u32 %v1679, 7
    %v1681 = vsub.s32 %v1678, %v1680
    %v1682 = vrot.slane %v1675, %v1681
    %v1684 = vunpack.c.l.s4 1966171168
    %v1685 = vunpack.c.0.s8 %v1684
    %v1686 = vlaneseq
    %v1687 = vshrl.u32 %v1686, 7
    %v1688 = vsub.s32 %v1685, %v1687
    %v1689 = vrot.slane %v1682, %v1688
    %s1691 = scalar_lea.vmem [#allocation11], 2
    %1692 = vst.msk [vmem:[%s1691] ss:$8 sm:$0x3] %vm661, %v1689
    %1693 = vst.msk [vmem:[%s1691] ss:$8 sm:$0x0] %vm661, %v1689
    %v1694 = vld [vmem:[#allocation2 + $0x3] sm:$0x1]
    %1695 = vmatprep.subr.mxu0 0.0
    %1696 = vmatpush1.msra.mxu0 %v107
    %1697 = vmatprep.subr.mxu0 0.0
    %1698 = vmatpush1.msra.mxu0 %v108
    %1699 = vmatprep.subr.mxu0 0.0
    %1700 = vmatpush1.msra.mxu0 %v109
    %1701 = vmatprep.subr.mxu0 0.0
    %1702 = vmatpush1.msra.mxu0 %v110
    %1703 = vmatprep.subr.mxu0 0.0
    %1704 = vmatpush1.msra.mxu0 0.0
    %1705 = vmatprep.subr.mxu0 0.0
    %1706 = vmatpush1.msra.mxu0 0.0
    %1707 = vmatprep.subr.mxu0 0.0
    %1708 = vmatpush1.msra.mxu0 0.0
    %1709 = vmatprep.subr.mxu0 0.0
    %1710 = vmatpush1.msra.mxu0 0.0
    %1711 = vmatprep.subr.mxu0 0.0
    %1712 = vmatpush1.msra.mxu0 0.0
    %1713 = vmatprep.subr.mxu0 0.0
    %1714 = vmatpush1.msra.mxu0 0.0
    %1715 = vmatprep.subr.mxu0 0.0
    %1716 = vmatpush1.msra.mxu0 0.0
    %1717 = vmatprep.subr.mxu0 0.0
    %1718 = vmatpush1.msra.mxu0 0.0
    %1719 = vmatprep.subr.mxu0 0.0
    %1720 = vmatpush1.msra.mxu0 0.0
    %1721 = vmatprep.subr.mxu0 0.0
    %1722 = vmatpush1.msra.mxu0 0.0
    %1723 = vmatprep.subr.mxu0 0.0
    %1724 = vmatpush1.msra.mxu0 0.0
    %1725 = vmatprep.subr.mxu0 0.0
    %1726 = vmatpush1.msra.mxu0 0.0
    %1727 = vmatprep.subr.mxu0 0.0
    %1728 = vmatpush1.msra.mxu0 0.0
    %1729 = vmatprep.subr.mxu0 0.0
    %1730 = vmatpush1.msra.mxu0 0.0
    %1731 = vmatprep.subr.mxu0 0.0
    %1732 = vmatpush1.msra.mxu0 0.0
    %1733 = vmatprep.subr.mxu0 0.0
    %1734 = vmatpush1.msra.mxu0 0.0
    %1735 = vmatprep.subr.mxu0 0.0
    %1736 = vmatpush1.msra.mxu0 0.0
    %1737 = vmatprep.subr.mxu0 0.0
    %1738 = vmatpush1.msra.mxu0 0.0
    %1739 = vmatprep.subr.mxu0 0.0
    %1740 = vmatpush1.msra.mxu0 0.0
    %1741 = vmatprep.subr.mxu0 0.0
    %1742 = vmatpush1.msra.mxu0 0.0
    %1743 = vmatprep.subr.mxu0 0.0
    %1744 = vmatpush1.msra.mxu0 0.0
    %1745 = vmatprep.subr.mxu0 0.0
    %1746 = vmatpush1.msra.mxu0 0.0
    %1747 = vmatprep.subr.mxu0 0.0
    %1748 = vmatpush1.msra.mxu0 0.0
    %1749 = vmatprep.subr.mxu0 0.0
    %1750 = vmatpush1.msra.mxu0 0.0
    %1751 = vmatprep.subr.mxu0 0.0
    %1752 = vmatpush1.msra.mxu0 0.0
    %1753 = vmatprep.subr.mxu0 0.0
    %1754 = vmatpush1.msra.mxu0 0.0
    %1755 = vmatprep.subr.mxu0 0.0
    %1756 = vmatpush1.msra.mxu0 0.0
    %1757 = vmatprep.subr.mxu0 0.0
    %1758 = vmatpush1.msra.mxu0 0.0
    %1759 = vmatprep.mubr.f32.mxu0 0.0
    %1760 = vmatmul.mubr.f32.gmra.mrb[0].mxu0 %v1351
    %v1761 = vpop.f32.mrb[0].mxu0
    %v1762 = vadd.f32 0.0, %v1761
    %v1763 = vpop.f32.mrb[0].mxu0
    %1764 = vdwg.mxu0
    %v1766 = vsel %vm130, %v1694, 0
    %1768 = vmatprep.subr.mxu0 0.0
    %1769 = vmatpush1.msra.mxu0 %v103
    %1770 = vmatprep.subr.mxu0 0.0
    %1771 = vmatpush1.msra.mxu0 %v104
    %1772 = vmatprep.subr.mxu0 0.0
    %1773 = vmatpush1.msra.mxu0 %v105
    %1774 = vmatprep.subr.mxu0 0.0
    %1775 = vmatpush1.msra.mxu0 %v106
    %1776 = vmatprep.subr.mxu0 0.0
    %1777 = vmatpush1.msra.mxu0 0.0
    %1778 = vmatprep.subr.mxu0 0.0
    %1779 = vmatpush1.msra.mxu0 0.0
    %1780 = vmatprep.subr.mxu0 0.0
    %1781 = vmatpush1.msra.mxu0 0.0
    %1782 = vmatprep.subr.mxu0 0.0
    %1783 = vmatpush1.msra.mxu0 0.0
    %1784 = vmatprep.subr.mxu0 0.0
    %1785 = vmatpush1.msra.mxu0 0.0
    %1786 = vmatprep.subr.mxu0 0.0
    %1787 = vmatpush1.msra.mxu0 0.0
    %1788 = vmatprep.subr.mxu0 0.0
    %1789 = vmatpush1.msra.mxu0 0.0
    %1790 = vmatprep.subr.mxu0 0.0
    %1791 = vmatpush1.msra.mxu0 0.0
    %1792 = vmatprep.subr.mxu0 0.0
    %1793 = vmatpush1.msra.mxu0 0.0
    %1794 = vmatprep.subr.mxu0 0.0
    %1795 = vmatpush1.msra.mxu0 0.0
    %1796 = vmatprep.subr.mxu0 0.0
    %1797 = vmatpush1.msra.mxu0 0.0
    %1798 = vmatprep.subr.mxu0 0.0
    %1799 = vmatpush1.msra.mxu0 0.0
    %1800 = vmatprep.subr.mxu0 0.0
    %1801 = vmatpush1.msra.mxu0 0.0
    %1802 = vmatprep.subr.mxu0 0.0
    %1803 = vmatpush1.msra.mxu0 0.0
    %1804 = vmatprep.subr.mxu0 0.0
    %1805 = vmatpush1.msra.mxu0 0.0
    %1806 = vmatprep.subr.mxu0 0.0
    %1807 = vmatpush1.msra.mxu0 0.0
    %1808 = vmatprep.subr.mxu0 0.0
    %1809 = vmatpush1.msra.mxu0 0.0
    %1810 = vmatprep.subr.mxu0 0.0
    %1811 = vmatpush1.msra.mxu0 0.0
    %1812 = vmatprep.subr.mxu0 0.0
    %1813 = vmatpush1.msra.mxu0 0.0
    %1814 = vmatprep.subr.mxu0 0.0
    %1815 = vmatpush1.msra.mxu0 0.0
    %1816 = vmatprep.subr.mxu0 0.0
    %1817 = vmatpush1.msra.mxu0 0.0
    %1818 = vmatprep.subr.mxu0 0.0
    %1819 = vmatpush1.msra.mxu0 0.0
    %1820 = vmatprep.subr.mxu0 0.0
    %1821 = vmatpush1.msra.mxu0 0.0
    %1822 = vmatprep.subr.mxu0 0.0
    %1823 = vmatpush1.msra.mxu0 0.0
    %1824 = vmatprep.subr.mxu0 0.0
    %1825 = vmatpush1.msra.mxu0 0.0
    %1826 = vmatprep.subr.mxu0 0.0
    %1827 = vmatpush1.msra.mxu0 0.0
    %1828 = vmatprep.subr.mxu0 0.0
    %1829 = vmatpush1.msra.mxu0 0.0
    %1830 = vmatprep.subr.mxu0 0.0
    %1831 = vmatpush1.msra.mxu0 0.0
    %1832 = vmatprep.mubr.f32.mxu0 0.0
    %1833 = vmatmul.mubr.f32.gmra.mrb[0].mxu0 %v1766
    %v1834 = vpop.f32.mrb[0].mxu0
    %v1835 = vadd.f32 %v1762, %v1834
    %v1836 = vpop.f32.mrb[0].mxu0
    %1837 = vdwg.mxu0
    %v1838 = vadd.f32 %v1835, %v111
    %v1839 = vxor.u32 %v1838, 2147483648
    %v1840 = vmul.f32 %v1839, 1.442695
    %v1841 = vpow.pop %v1840
    %v1842 = vadd.f32 %v1841, 1.0
    %v1843 = vrcp.pop %v1842
    %v1844 = vmul.f32 1.0, %v1843
    %v1845 = vtanh.pop %v1838
    %v1846 = vmul.f32 %v1844, %v1341
    %1848 = vrot.lane.b32.xlu0 %v1845, 64
    %v1849 = vpop.permute.xlu0 %1848
    %v1851 = vmul.f32 %v1844, %v1849
    %1853 = vrot.lane.b32.xlu0 %v1851, 32
    %v1854 = vpop.permute.xlu0 %1853
    %v1856 = vadd.f32 %v1846, %v1854
    %v1857 = vtanh.pop %v1856
    %1859 = vrot.lane.b32.xlu0 %v1857, 64
    %v1860 = vpop.permute.xlu0 %1859
    %v1862 = vmul.f32 %v1844, %v1860
    %1864 = vrot.lane.b32.xlu0 %v1862, 32
    %v1865 = vpop.permute.xlu0 %1864
    %v1866 = vsel %vm130, %v1865, 0
    %1868 = vmatprep.subr.mxu0 0.0
    %1869 = vmatpush1.msra.mxu0 %v112
    %1870 = vmatprep.subr.mxu0 0.0
    %1871 = vmatpush1.msra.mxu0 %v113
    %1872 = vmatprep.subr.mxu0 0.0
    %1873 = vmatpush1.msra.mxu0 %v114
    %1874 = vmatprep.subr.mxu0 0.0
    %1875 = vmatpush1.msra.mxu0 %v115
    %1876 = vmatprep.subr.mxu0 0.0
    %1877 = vmatpush1.msra.mxu0 0.0
    %1878 = vmatprep.subr.mxu0 0.0
    %1879 = vmatpush1.msra.mxu0 0.0
    %1880 = vmatprep.subr.mxu0 0.0
    %1881 = vmatpush1.msra.mxu0 0.0
    %1882 = vmatprep.subr.mxu0 0.0
    %1883 = vmatpush1.msra.mxu0 0.0
    %1884 = vmatprep.subr.mxu0 0.0
    %1885 = vmatpush1.msra.mxu0 0.0
    %1886 = vmatprep.subr.mxu0 0.0
    %1887 = vmatpush1.msra.mxu0 0.0
    %1888 = vmatprep.subr.mxu0 0.0
    %1889 = vmatpush1.msra.mxu0 0.0
    %1890 = vmatprep.subr.mxu0 0.0
    %1891 = vmatpush1.msra.mxu0 0.0
    %1892 = vmatprep.subr.mxu0 0.0
    %1893 = vmatpush1.msra.mxu0 0.0
    %1894 = vmatprep.subr.mxu0 0.0
    %1895 = vmatpush1.msra.mxu0 0.0
    %1896 = vmatprep.subr.mxu0 0.0
    %1897 = vmatpush1.msra.mxu0 0.0
    %1898 = vmatprep.subr.mxu0 0.0
    %1899 = vmatpush1.msra.mxu0 0.0
    %1900 = vmatprep.subr.mxu0 0.0
    %1901 = vmatpush1.msra.mxu0 0.0
    %1902 = vmatprep.subr.mxu0 0.0
    %1903 = vmatpush1.msra.mxu0 0.0
    %1904 = vmatprep.subr.mxu0 0.0
    %1905 = vmatpush1.msra.mxu0 0.0
    %1906 = vmatprep.subr.mxu0 0.0
    %1907 = vmatpush1.msra.mxu0 0.0
    %1908 = vmatprep.subr.mxu0 0.0
    %1909 = vmatpush1.msra.mxu0 0.0
    %1910 = vmatprep.subr.mxu0 0.0
    %1911 = vmatpush1.msra.mxu0 0.0
    %1912 = vmatprep.subr.mxu0 0.0
    %1913 = vmatpush1.msra.mxu0 0.0
    %1914 = vmatprep.subr.mxu0 0.0
    %1915 = vmatpush1.msra.mxu0 0.0
    %1916 = vmatprep.subr.mxu0 0.0
    %1917 = vmatpush1.msra.mxu0 0.0
    %1918 = vmatprep.subr.mxu0 0.0
    %1919 = vmatpush1.msra.mxu0 0.0
    %1920 = vmatprep.subr.mxu0 0.0
    %1921 = vmatpush1.msra.mxu0 0.0
    %1922 = vmatprep.subr.mxu0 0.0
    %1923 = vmatpush1.msra.mxu0 0.0
    %1924 = vmatprep.subr.mxu0 0.0
    %1925 = vmatpush1.msra.mxu0 0.0
    %1926 = vmatprep.subr.mxu0 0.0
    %1927 = vmatpush1.msra.mxu0 0.0
    %1928 = vmatprep.subr.mxu0 0.0
    %1929 = vmatpush1.msra.mxu0 0.0
    %1930 = vmatprep.subr.mxu0 0.0
    %1931 = vmatpush1.msra.mxu0 0.0
    %1932 = vmatprep.mubr.f32.mxu0 0.0
    %1933 = vmatmul.mubr.f32.gmra.mrb[0].mxu0 %v1866
    %v1934 = vpop.f32.mrb[0].mxu0
    %v1935 = vadd.f32 0.0, %v1934
    %v1936 = vpop.f32.mrb[0].mxu0
    %1937 = vdwg.mxu0
    %v1938 = vsel %vm385, %v1935, -inf
    %1939 = vmax.xlane.f32.xlu0 %v1938
    %v1940 = vpop.xlane.xlu0 %1939
    %v1941 = vsub.f32 %v1935, %v1940
    %v1942 = vmul.f32 %v1941, 1.442695
    %v1943 = vpow.pop %v1942
    %v1944 = vsel %vm385, %v1943, 0.0
    %1945 = vadd.xlane.f32.xlu0 %v1944
    %v1946 = vpop.xlane.xlu0 %1945
    %v1947 = vrcp.pop %v1946
    %v1948 = vmul.f32 %v1943, %v1947
    %v1950 = vsel %vm397, %v1948, 0
    %1952 = vmatprep.subr.mxu0 0.0
    %1953 = vmatpush1.msra.mxu0 %v116
    %1954 = vmatprep.subr.mxu0 0.0
    %1955 = vmatpush1.msra.mxu0 %v117
    %1956 = vmatprep.subr.mxu0 0.0
    %1957 = vmatpush1.msra.mxu0 0.0
    %1958 = vmatprep.subr.mxu0 0.0
    %1959 = vmatpush1.msra.mxu0 0.0
    %1960 = vmatprep.subr.mxu0 0.0
    %1961 = vmatpush1.msra.mxu0 0.0
    %1962 = vmatprep.subr.mxu0 0.0
    %1963 = vmatpush1.msra.mxu0 0.0
    %1964 = vmatprep.subr.mxu0 0.0
    %1965 = vmatpush1.msra.mxu0 0.0
    %1966 = vmatprep.subr.mxu0 0.0
    %1967 = vmatpush1.msra.mxu0 0.0
    %1968 = vmatprep.subr.mxu0 0.0
    %1969 = vmatpush1.msra.mxu0 0.0
    %1970 = vmatprep.subr.mxu0 0.0
    %1971 = vmatpush1.msra.mxu0 0.0
    %1972 = vmatprep.subr.mxu0 0.0
    %1973 = vmatpush1.msra.mxu0 0.0
    %1974 = vmatprep.subr.mxu0 0.0
    %1975 = vmatpush1.msra.mxu0 0.0
    %1976 = vmatprep.subr.mxu0 0.0
    %1977 = vmatpush1.msra.mxu0 0.0
    %1978 = vmatprep.subr.mxu0 0.0
    %1979 = vmatpush1.msra.mxu0 0.0
    %1980 = vmatprep.subr.mxu0 0.0
    %1981 = vmatpush1.msra.mxu0 0.0
    %1982 = vmatprep.subr.mxu0 0.0
    %1983 = vmatpush1.msra.mxu0 0.0
    %1984 = vmatprep.subr.mxu0 0.0
    %1985 = vmatpush1.msra.mxu0 0.0
    %1986 = vmatprep.subr.mxu0 0.0
    %1987 = vmatpush1.msra.mxu0 0.0
    %1988 = vmatprep.subr.mxu0 0.0
    %1989 = vmatpush1.msra.mxu0 0.0
    %1990 = vmatprep.subr.mxu0 0.0
    %1991 = vmatpush1.msra.mxu0 0.0
    %1992 = vmatprep.subr.mxu0 0.0
    %1993 = vmatpush1.msra.mxu0 0.0
    %1994 = vmatprep.subr.mxu0 0.0
    %1995 = vmatpush1.msra.mxu0 0.0
    %1996 = vmatprep.subr.mxu0 0.0
    %1997 = vmatpush1.msra.mxu0 0.0
    %1998 = vmatprep.subr.mxu0 0.0
    %1999 = vmatpush1.msra.mxu0 0.0
    %2000 = vmatprep.subr.mxu0 0.0
    %2001 = vmatpush1.msra.mxu0 0.0
    %2002 = vmatprep.subr.mxu0 0.0
    %2003 = vmatpush1.msra.mxu0 0.0
    %2004 = vmatprep.subr.mxu0 0.0
    %2005 = vmatpush1.msra.mxu0 0.0
    %2006 = vmatprep.subr.mxu0 0.0
    %2007 = vmatpush1.msra.mxu0 0.0
    %2008 = vmatprep.subr.mxu0 0.0
    %2009 = vmatpush1.msra.mxu0 0.0
    %2010 = vmatprep.subr.mxu0 0.0
    %2011 = vmatpush1.msra.mxu0 0.0
    %2012 = vmatprep.subr.mxu0 0.0
    %2013 = vmatpush1.msra.mxu0 0.0
    %2014 = vmatprep.subr.mxu0 0.0
    %2015 = vmatpush1.msra.mxu0 0.0
    %2016 = vmatprep.mubr.f32.mxu0 0.0
    %2017 = vmatmul.mubr.f32.gmra.mrb[0].mxu0 %v1950
    %v2018 = vpop.f32.mrb[0].mxu0
    %v2019 = vadd.f32 0.0, %v2018
    %v2020 = vpop.f32.mrb[0].mxu0
    %2021 = vdwg.mxu0
    %2022 = vmatprep.subr.mxu0 0.0
    %2023 = vmatpush1.msra.mxu0 %v122
    %2024 = vmatprep.subr.mxu0 0.0
    %2025 = vmatpush1.msra.mxu0 %v123
    %2026 = vmatprep.subr.mxu0 0.0
    %2027 = vmatpush1.msra.mxu0 %v124
    %2028 = vmatprep.subr.mxu0 0.0
    %2029 = vmatpush1.msra.mxu0 %v125
    %2030 = vmatprep.subr.mxu0 0.0
    %2031 = vmatpush1.msra.mxu0 0.0
    %2032 = vmatprep.subr.mxu0 0.0
    %2033 = vmatpush1.msra.mxu0 0.0
    %2034 = vmatprep.subr.mxu0 0.0
    %2035 = vmatpush1.msra.mxu0 0.0
    %2036 = vmatprep.subr.mxu0 0.0
    %2037 = vmatpush1.msra.mxu0 0.0
    %2038 = vmatprep.subr.mxu0 0.0
    %2039 = vmatpush1.msra.mxu0 0.0
    %2040 = vmatprep.subr.mxu0 0.0
    %2041 = vmatpush1.msra.mxu0 0.0
    %2042 = vmatprep.subr.mxu0 0.0
    %2043 = vmatpush1.msra.mxu0 0.0
    %2044 = vmatprep.subr.mxu0 0.0
    %2045 = vmatpush1.msra.mxu0 0.0
    %2046 = vmatprep.subr.mxu0 0.0
    %2047 = vmatpush1.msra.mxu0 0.0
    %2048 = vmatprep.subr.mxu0 0.0
    %2049 = vmatpush1.msra.mxu0 0.0
    %2050 = vmatprep.subr.mxu0 0.0
    %2051 = vmatpush1.msra.mxu0 0.0
    %2052 = vmatprep.subr.mxu0 0.0
    %2053 = vmatpush1.msra.mxu0 0.0
    %2054 = vmatprep.subr.mxu0 0.0
    %2055 = vmatpush1.msra.mxu0 0.0
    %2056 = vmatprep.subr.mxu0 0.0
    %2057 = vmatpush1.msra.mxu0 0.0
    %2058 = vmatprep.subr.mxu0 0.0
    %2059 = vmatpush1.msra.mxu0 0.0
    %2060 = vmatprep.subr.mxu0 0.0
    %2061 = vmatpush1.msra.mxu0 0.0
    %2062 = vmatprep.subr.mxu0 0.0
    %2063 = vmatpush1.msra.mxu0 0.0
    %2064 = vmatprep.subr.mxu0 0.0
    %2065 = vmatpush1.msra.mxu0 0.0
    %2066 = vmatprep.subr.mxu0 0.0
    %2067 = vmatpush1.msra.mxu0 0.0
    %2068 = vmatprep.subr.mxu0 0.0
    %2069 = vmatpush1.msra.mxu0 0.0
    %2070 = vmatprep.subr.mxu0 0.0
    %2071 = vmatpush1.msra.mxu0 0.0
    %2072 = vmatprep.subr.mxu0 0.0
    %2073 = vmatpush1.msra.mxu0 0.0
    %2074 = vmatprep.subr.mxu0 0.0
    %2075 = vmatpush1.msra.mxu0 0.0
    %2076 = vmatprep.subr.mxu0 0.0
    %2077 = vmatpush1.msra.mxu0 0.0
    %2078 = vmatprep.subr.mxu0 0.0
    %2079 = vmatpush1.msra.mxu0 0.0
    %2080 = vmatprep.subr.mxu0 0.0
    %2081 = vmatpush1.msra.mxu0 0.0
    %2082 = vmatprep.subr.mxu0 0.0
    %2083 = vmatpush1.msra.mxu0 0.0
    %2084 = vmatprep.subr.mxu0 0.0
    %2085 = vmatpush1.msra.mxu0 0.0
    %2086 = vmatprep.mubr.f32.mxu0 0.0
    %2087 = vmatmul.mubr.f32.gmra.mrb[0].mxu0 %v1866
    %v2088 = vpop.f32.mrb[0].mxu0
    %v2089 = vadd.f32 0.0, %v2088
    %v2090 = vpop.f32.mrb[0].mxu0
    %2091 = vdwg.mxu0
    %v2093 = vsel %vm130, %v2019, 0
    %2095 = vmatprep.subr.mxu0 0.0
    %2096 = vmatpush1.msra.mxu0 %v118
    %2097 = vmatprep.subr.mxu0 0.0
    %2098 = vmatpush1.msra.mxu0 %v119
    %2099 = vmatprep.subr.mxu0 0.0
    %2100 = vmatpush1.msra.mxu0 %v120
    %2101 = vmatprep.subr.mxu0 0.0
    %2102 = vmatpush1.msra.mxu0 %v121
    %2103 = vmatprep.subr.mxu0 0.0
    %2104 = vmatpush1.msra.mxu0 0.0
    %2105 = vmatprep.subr.mxu0 0.0
    %2106 = vmatpush1.msra.mxu0 0.0
    %2107 = vmatprep.subr.mxu0 0.0
    %2108 = vmatpush1.msra.mxu0 0.0
    %2109 = vmatprep.subr.mxu0 0.0
    %2110 = vmatpush1.msra.mxu0 0.0
    %2111 = vmatprep.subr.mxu0 0.0
    %2112 = vmatpush1.msra.mxu0 0.0
    %2113 = vmatprep.subr.mxu0 0.0
    %2114 = vmatpush1.msra.mxu0 0.0
    %2115 = vmatprep.subr.mxu0 0.0
    %2116 = vmatpush1.msra.mxu0 0.0
    %2117 = vmatprep.subr.mxu0 0.0
    %2118 = vmatpush1.msra.mxu0 0.0
    %2119 = vmatprep.subr.mxu0 0.0
    %2120 = vmatpush1.msra.mxu0 0.0
    %2121 = vmatprep.subr.mxu0 0.0
    %2122 = vmatpush1.msra.mxu0 0.0
    %2123 = vmatprep.subr.mxu0 0.0
    %2124 = vmatpush1.msra.mxu0 0.0
    %2125 = vmatprep.subr.mxu0 0.0
    %2126 = vmatpush1.msra.mxu0 0.0
    %2127 = vmatprep.subr.mxu0 0.0
    %2128 = vmatpush1.msra.mxu0 0.0
    %2129 = vmatprep.subr.mxu0 0.0
    %2130 = vmatpush1.msra.mxu0 0.0
    %2131 = vmatprep.subr.mxu0 0.0
    %2132 = vmatpush1.msra.mxu0 0.0
    %2133 = vmatprep.subr.mxu0 0.0
    %2134 = vmatpush1.msra.mxu0 0.0
    %2135 = vmatprep.subr.mxu0 0.0
    %2136 = vmatpush1.msra.mxu0 0.0
    %2137 = vmatprep.subr.mxu0 0.0
    %2138 = vmatpush1.msra.mxu0 0.0
    %2139 = vmatprep.subr.mxu0 0.0
    %2140 = vmatpush1.msra.mxu0 0.0
    %2141 = vmatprep.subr.mxu0 0.0
    %2142 = vmatpush1.msra.mxu0 0.0
    %2143 = vmatprep.subr.mxu0 0.0
    %2144 = vmatpush1.msra.mxu0 0.0
    %2145 = vmatprep.subr.mxu0 0.0
    %2146 = vmatpush1.msra.mxu0 0.0
    %2147 = vmatprep.subr.mxu0 0.0
    %2148 = vmatpush1.msra.mxu0 0.0
    %2149 = vmatprep.subr.mxu0 0.0
    %2150 = vmatpush1.msra.mxu0 0.0
    %2151 = vmatprep.subr.mxu0 0.0
    %2152 = vmatpush1.msra.mxu0 0.0
    %2153 = vmatprep.subr.mxu0 0.0
    %2154 = vmatpush1.msra.mxu0 0.0
    %2155 = vmatprep.subr.mxu0 0.0
    %2156 = vmatpush1.msra.mxu0 0.0
    %2157 = vmatprep.subr.mxu0 0.0
    %2158 = vmatpush1.msra.mxu0 0.0
    %2159 = vmatprep.mubr.f32.mxu0 0.0
    %2160 = vmatmul.mubr.f32.gmra.mrb[0].mxu0 %v2093
    %v2161 = vpop.f32.mrb[0].mxu0
    %v2162 = vadd.f32 %v2089, %v2161
    %v2163 = vpop.f32.mrb[0].mxu0
    %2164 = vdwg.mxu0
    %v2165 = vadd.f32 %v2162, %v126
    %v2166 = vsel %vm615, %v2165, -inf
    %2167 = vmax.xlane.f32.xlu0 %v2166
    %v2168 = vpop.xlane.xlu0 %2167
    %v2169 = vsub.f32 %v2165, %v2168
    %v2170 = vmul.f32 %v2169, 1.442695
    %v2171 = vpow.pop %v2170
    %v2172 = vsel %vm615, %v2171, 0.0
    %2173 = vadd.xlane.f32.xlu0 %v2172
    %v2174 = vpop.xlane.xlu0 %2173
    %v2175 = vlog2.pop %v2174
    %v2176 = vmul.f32 %v2175, 0.6931472
    %v2177 = vsub.f32 %v2169, %v2176
    %2178 = vrot.lane.b32.xlu0 %v1862, 96
    %v2179 = vpop.permute.xlu0 %2178
    %2182 = vrot.lane.b32.xlu0 %v1856, 64
    %v2183 = vpop.permute.xlu0 %2182
    %v2185 = vsel %vm635, %v2177, %v2179
    %v2186 = vsel %vm637, %v2185, %v2183
    %v2187 = vsel %vm397, %v1948, 0.0
    %v2190 = vcombine.low %v2186, %v2187
    %v2192 = vunpack.c.l.s4 1966171168
    %v2193 = vunpack.c.0.s8 %v2192
    %v2194 = vlaneseq
    %v2195 = vshrl.u32 %v2194, 7
    %v2196 = vsub.s32 %v2193, %v2195
    %v2197 = vrot.slane %v2190, %v2196
    %v2199 = vunpack.c.l.s4 1966171168
    %v2200 = vunpack.c.0.s8 %v2199
    %v2201 = vlaneseq
    %v2202 = vshrl.u32 %v2201, 7
    %v2203 = vsub.s32 %v2200, %v2202
    %v2204 = vrot.slane %v2197, %v2203
    %s2206 = scalar_lea.vmem [#allocation11], 3
    %2207 = vst.msk [vmem:[%s2206] ss:$8 sm:$0x3] %vm661, %v2204
    %2208 = vst.msk [vmem:[%s2206] ss:$8 sm:$0x0] %vm661, %v2204
    %v2209 = vld [vmem:[#allocation2 + $0x4] sm:$0x1]
    %2210 = vmatprep.subr.mxu0 0.0
    %2211 = vmatpush1.msra.mxu0 %v107
    %2212 = vmatprep.subr.mxu0 0.0
    %2213 = vmatpush1.msra.mxu0 %v108
    %2214 = vmatprep.subr.mxu0 0.0
    %2215 = vmatpush1.msra.mxu0 %v109
    %2216 = vmatprep.subr.mxu0 0.0
    %2217 = vmatpush1.msra.mxu0 %v110
    %2218 = vmatprep.subr.mxu0 0.0
    %2219 = vmatpush1.msra.mxu0 0.0
    %2220 = vmatprep.subr.mxu0 0.0
    %2221 = vmatpush1.msra.mxu0 0.0
    %2222 = vmatprep.subr.mxu0 0.0
    %2223 = vmatpush1.msra.mxu0 0.0
    %2224 = vmatprep.subr.mxu0 0.0
    %2225 = vmatpush1.msra.mxu0 0.0
    %2226 = vmatprep.subr.mxu0 0.0
    %2227 = vmatpush1.msra.mxu0 0.0
    %2228 = vmatprep.subr.mxu0 0.0
    %2229 = vmatpush1.msra.mxu0 0.0
    %2230 = vmatprep.subr.mxu0 0.0
    %2231 = vmatpush1.msra.mxu0 0.0
    %2232 = vmatprep.subr.mxu0 0.0
    %2233 = vmatpush1.msra.mxu0 0.0
    %2234 = vmatprep.subr.mxu0 0.0
    %2235 = vmatpush1.msra.mxu0 0.0
    %2236 = vmatprep.subr.mxu0 0.0
    %2237 = vmatpush1.msra.mxu0 0.0
    %2238 = vmatprep.subr.mxu0 0.0
    %2239 = vmatpush1.msra.mxu0 0.0
    %2240 = vmatprep.subr.mxu0 0.0
    %2241 = vmatpush1.msra.mxu0 0.0
    %2242 = vmatprep.subr.mxu0 0.0
    %2243 = vmatpush1.msra.mxu0 0.0
    %2244 = vmatprep.subr.mxu0 0.0
    %2245 = vmatpush1.msra.mxu0 0.0
    %2246 = vmatprep.subr.mxu0 0.0
    %2247 = vmatpush1.msra.mxu0 0.0
    %2248 = vmatprep.subr.mxu0 0.0
    %2249 = vmatpush1.msra.mxu0 0.0
    %2250 = vmatprep.subr.mxu0 0.0
    %2251 = vmatpush1.msra.mxu0 0.0
    %2252 = vmatprep.subr.mxu0 0.0
    %2253 = vmatpush1.msra.mxu0 0.0
    %2254 = vmatprep.subr.mxu0 0.0
    %2255 = vmatpush1.msra.mxu0 0.0
    %2256 = vmatprep.subr.mxu0 0.0
    %2257 = vmatpush1.msra.mxu0 0.0
    %2258 = vmatprep.subr.mxu0 0.0
    %2259 = vmatpush1.msra.mxu0 0.0
    %2260 = vmatprep.subr.mxu0 0.0
    %2261 = vmatpush1.msra.mxu0 0.0
    %2262 = vmatprep.subr.mxu0 0.0
    %2263 = vmatpush1.msra.mxu0 0.0
    %2264 = vmatprep.subr.mxu0 0.0
    %2265 = vmatpush1.msra.mxu0 0.0
    %2266 = vmatprep.subr.mxu0 0.0
    %2267 = vmatpush1.msra.mxu0 0.0
    %2268 = vmatprep.subr.mxu0 0.0
    %2269 = vmatpush1.msra.mxu0 0.0
    %2270 = vmatprep.subr.mxu0 0.0
    %2271 = vmatpush1.msra.mxu0 0.0
    %2272 = vmatprep.subr.mxu0 0.0
    %2273 = vmatpush1.msra.mxu0 0.0
    %2274 = vmatprep.mubr.f32.mxu0 0.0
    %2275 = vmatmul.mubr.f32.gmra.mrb[0].mxu0 %v1866
    %v2276 = vpop.f32.mrb[0].mxu0
    %v2277 = vadd.f32 0.0, %v2276
    %v2278 = vpop.f32.mrb[0].mxu0
    %2279 = vdwg.mxu0
    %v2281 = vsel %vm130, %v2209, 0
    %2283 = vmatprep.subr.mxu0 0.0
    %2284 = vmatpush1.msra.mxu0 %v103
    %2285 = vmatprep.subr.mxu0 0.0
    %2286 = vmatpush1.msra.mxu0 %v104
    %2287 = vmatprep.subr.mxu0 0.0
    %2288 = vmatpush1.msra.mxu0 %v105
    %2289 = vmatprep.subr.mxu0 0.0
    %2290 = vmatpush1.msra.mxu0 %v106
    %2291 = vmatprep.subr.mxu0 0.0
    %2292 = vmatpush1.msra.mxu0 0.0
    %2293 = vmatprep.subr.mxu0 0.0
    %2294 = vmatpush1.msra.mxu0 0.0
    %2295 = vmatprep.subr.mxu0 0.0
    %2296 = vmatpush1.msra.mxu0 0.0
    %2297 = vmatprep.subr.mxu0 0.0
    %2298 = vmatpush1.msra.mxu0 0.0
    %2299 = vmatprep.subr.mxu0 0.0
    %2300 = vmatpush1.msra.mxu0 0.0
    %2301 = vmatprep.subr.mxu0 0.0
    %2302 = vmatpush1.msra.mxu0 0.0
    %2303 = vmatprep.subr.mxu0 0.0
    %2304 = vmatpush1.msra.mxu0 0.0
    %2305 = vmatprep.subr.mxu0 0.0
    %2306 = vmatpush1.msra.mxu0 0.0
    %2307 = vmatprep.subr.mxu0 0.0
    %2308 = vmatpush1.msra.mxu0 0.0
    %2309 = vmatprep.subr.mxu0 0.0
    %2310 = vmatpush1.msra.mxu0 0.0
    %2311 = vmatprep.subr.mxu0 0.0
    %2312 = vmatpush1.msra.mxu0 0.0
    %2313 = vmatprep.subr.mxu0 0.0
    %2314 = vmatpush1.msra.mxu0 0.0
    %2315 = vmatprep.subr.mxu0 0.0
    %2316 = vmatpush1.msra.mxu0 0.0
    %2317 = vmatprep.subr.mxu0 0.0
    %2318 = vmatpush1.msra.mxu0 0.0
    %2319 = vmatprep.subr.mxu0 0.0
    %2320 = vmatpush1.msra.mxu0 0.0
    %2321 = vmatprep.subr.mxu0 0.0
    %2322 = vmatpush1.msra.mxu0 0.0
    %2323 = vmatprep.subr.mxu0 0.0
    %2324 = vmatpush1.msra.mxu0 0.0
    %2325 = vmatprep.subr.mxu0 0.0
    %2326 = vmatpush1.msra.mxu0 0.0
    %2327 = vmatprep.subr.mxu0 0.0
    %2328 = vmatpush1.msra.mxu0 0.0
    %2329 = vmatprep.subr.mxu0 0.0
    %2330 = vmatpush1.msra.mxu0 0.0
    %2331 = vmatprep.subr.mxu0 0.0
    %2332 = vmatpush1.msra.mxu0 0.0
    %2333 = vmatprep.subr.mxu0 0.0
    %2334 = vmatpush1.msra.mxu0 0.0
    %2335 = vmatprep.subr.mxu0 0.0
    %2336 = vmatpush1.msra.mxu0 0.0
    %2337 = vmatprep.subr.mxu0 0.0
    %2338 = vmatpush1.msra.mxu0 0.0
    %2339 = vmatprep.subr.mxu0 0.0
    %2340 = vmatpush1.msra.mxu0 0.0
    %2341 = vmatprep.subr.mxu0 0.0
    %2342 = vmatpush1.msra.mxu0 0.0
    %2343 = vmatprep.subr.mxu0 0.0
    %2344 = vmatpush1.msra.mxu0 0.0
    %2345 = vmatprep.subr.mxu0 0.0
    %2346 = vmatpush1.msra.mxu0 0.0
    %2347 = vmatprep.mubr.f32.mxu0 0.0
    %2348 = vmatmul.mubr.f32.gmra.mrb[0].mxu0 %v2281
    %v2349 = vpop.f32.mrb[0].mxu0
    %v2350 = vadd.f32 %v2277, %v2349
    %v2351 = vpop.f32.mrb[0].mxu0
    %2352 = vdwg.mxu0
    %v2353 = vadd.f32 %v2350, %v111
    %v2354 = vxor.u32 %v2353, 2147483648
    %v2355 = vmul.f32 %v2354, 1.442695
    %v2356 = vpow.pop %v2355
    %v2357 = vadd.f32 %v2356, 1.0
    %v2358 = vrcp.pop %v2357
    %v2359 = vmul.f32 1.0, %v2358
    %v2360 = vtanh.pop %v2353
    %v2361 = vmul.f32 %v2359, %v1856
    %2363 = vrot.lane.b32.xlu0 %v2360, 64
    %v2364 = vpop.permute.xlu0 %2363
    %v2366 = vmul.f32 %v2359, %v2364
    %2368 = vrot.lane.b32.xlu0 %v2366, 32
    %v2369 = vpop.permute.xlu0 %2368
    %v2371 = vadd.f32 %v2361, %v2369
    %v2372 = vtanh.pop %v2371
    %2374 = vrot.lane.b32.xlu0 %v2372, 64
    %v2375 = vpop.permute.xlu0 %2374
    %v2377 = vmul.f32 %v2359, %v2375
    %2379 = vrot.lane.b32.xlu0 %v2377, 32
    %v2380 = vpop.permute.xlu0 %2379
    %v2381 = vsel %vm130, %v2380, 0
    %2383 = vmatprep.subr.mxu0 0.0
    %2384 = vmatpush1.msra.mxu0 %v112
    %2385 = vmatprep.subr.mxu0 0.0
    %2386 = vmatpush1.msra.mxu0 %v113
    %2387 = vmatprep.subr.mxu0 0.0
    %2388 = vmatpush1.msra.mxu0 %v114
    %2389 = vmatprep.subr.mxu0 0.0
    %2390 = vmatpush1.msra.mxu0 %v115
    %2391 = vmatprep.subr.mxu0 0.0
    %2392 = vmatpush1.msra.mxu0 0.0
    %2393 = vmatprep.subr.mxu0 0.0
    %2394 = vmatpush1.msra.mxu0 0.0
    %2395 = vmatprep.subr.mxu0 0.0
    %2396 = vmatpush1.msra.mxu0 0.0
    %2397 = vmatprep.subr.mxu0 0.0
    %2398 = vmatpush1.msra.mxu0 0.0
    %2399 = vmatprep.subr.mxu0 0.0
    %2400 = vmatpush1.msra.mxu0 0.0
    %2401 = vmatprep.subr.mxu0 0.0
    %2402 = vmatpush1.msra.mxu0 0.0
    %2403 = vmatprep.subr.mxu0 0.0
    %2404 = vmatpush1.msra.mxu0 0.0
    %2405 = vmatprep.subr.mxu0 0.0
    %2406 = vmatpush1.msra.mxu0 0.0
    %2407 = vmatprep.subr.mxu0 0.0
    %2408 = vmatpush1.msra.mxu0 0.0
    %2409 = vmatprep.subr.mxu0 0.0
    %2410 = vmatpush1.msra.mxu0 0.0
    %2411 = vmatprep.subr.mxu0 0.0
    %2412 = vmatpush1.msra.mxu0 0.0
    %2413 = vmatprep.subr.mxu0 0.0
    %2414 = vmatpush1.msra.mxu0 0.0
    %2415 = vmatprep.subr.mxu0 0.0
    %2416 = vmatpush1.msra.mxu0 0.0
    %2417 = vmatprep.subr.mxu0 0.0
    %2418 = vmatpush1.msra.mxu0 0.0
    %2419 = vmatprep.subr.mxu0 0.0
    %2420 = vmatpush1.msra.mxu0 0.0
    %2421 = vmatprep.subr.mxu0 0.0
    %2422 = vmatpush1.msra.mxu0 0.0
    %2423 = vmatprep.subr.mxu0 0.0
    %2424 = vmatpush1.msra.mxu0 0.0
    %2425 = vmatprep.subr.mxu0 0.0
    %2426 = vmatpush1.msra.mxu0 0.0
    %2427 = vmatprep.subr.mxu0 0.0
    %2428 = vmatpush1.msra.mxu0 0.0
    %2429 = vmatprep.subr.mxu0 0.0
    %2430 = vmatpush1.msra.mxu0 0.0
    %2431 = vmatprep.subr.mxu0 0.0
    %2432 = vmatpush1.msra.mxu0 0.0
    %2433 = vmatprep.subr.mxu0 0.0
    %2434 = vmatpush1.msra.mxu0 0.0
    %2435 = vmatprep.subr.mxu0 0.0
    %2436 = vmatpush1.msra.mxu0 0.0
    %2437 = vmatprep.subr.mxu0 0.0
    %2438 = vmatpush1.msra.mxu0 0.0
    %2439 = vmatprep.subr.mxu0 0.0
    %2440 = vmatpush1.msra.mxu0 0.0
    %2441 = vmatprep.subr.mxu0 0.0
    %2442 = vmatpush1.msra.mxu0 0.0
    %2443 = vmatprep.subr.mxu0 0.0
    %2444 = vmatpush1.msra.mxu0 0.0
    %2445 = vmatprep.subr.mxu0 0.0
    %2446 = vmatpush1.msra.mxu0 0.0
    %2447 = vmatprep.mubr.f32.mxu0 0.0
    %2448 = vmatmul.mubr.f32.gmra.mrb[0].mxu0 %v2381
    %v2449 = vpop.f32.mrb[0].mxu0
    %v2450 = vadd.f32 0.0, %v2449
    %v2451 = vpop.f32.mrb[0].mxu0
    %2452 = vdwg.mxu0
    %v2453 = vsel %vm385, %v2450, -inf
    %2454 = vmax.xlane.f32.xlu0 %v2453
    %v2455 = vpop.xlane.xlu0 %2454
    %v2456 = vsub.f32 %v2450, %v2455
    %v2457 = vmul.f32 %v2456, 1.442695
    %v2458 = vpow.pop %v2457
    %v2459 = vsel %vm385, %v2458, 0.0
    %2460 = vadd.xlane.f32.xlu0 %v2459
    %v2461 = vpop.xlane.xlu0 %2460
    %v2462 = vrcp.pop %v2461
    %v2463 = vmul.f32 %v2458, %v2462
    %v2465 = vsel %vm397, %v2463, 0
    %2467 = vmatprep.subr.mxu0 0.0
    %2468 = vmatpush1.msra.mxu0 %v116
    %2469 = vmatprep.subr.mxu0 0.0
    %2470 = vmatpush1.msra.mxu0 %v117
    %2471 = vmatprep.subr.mxu0 0.0
    %2472 = vmatpush1.msra.mxu0 0.0
    %2473 = vmatprep.subr.mxu0 0.0
    %2474 = vmatpush1.msra.mxu0 0.0
    %2475 = vmatprep.subr.mxu0 0.0
    %2476 = vmatpush1.msra.mxu0 0.0
    %2477 = vmatprep.subr.mxu0 0.0
    %2478 = vmatpush1.msra.mxu0 0.0
    %2479 = vmatprep.subr.mxu0 0.0
    %2480 = vmatpush1.msra.mxu0 0.0
    %2481 = vmatprep.subr.mxu0 0.0
    %2482 = vmatpush1.msra.mxu0 0.0
    %2483 = vmatprep.subr.mxu0 0.0
    %2484 = vmatpush1.msra.mxu0 0.0
    %2485 = vmatprep.subr.mxu0 0.0
    %2486 = vmatpush1.msra.mxu0 0.0
    %2487 = vmatprep.subr.mxu0 0.0
    %2488 = vmatpush1.msra.mxu0 0.0
    %2489 = vmatprep.subr.mxu0 0.0
    %2490 = vmatpush1.msra.mxu0 0.0
    %2491 = vmatprep.subr.mxu0 0.0
    %2492 = vmatpush1.msra.mxu0 0.0
    %2493 = vmatprep.subr.mxu0 0.0
    %2494 = vmatpush1.msra.mxu0 0.0
    %2495 = vmatprep.subr.mxu0 0.0
    %2496 = vmatpush1.msra.mxu0 0.0
    %2497 = vmatprep.subr.mxu0 0.0
    %2498 = vmatpush1.msra.mxu0 0.0
    %2499 = vmatprep.subr.mxu0 0.0
    %2500 = vmatpush1.msra.mxu0 0.0
    %2501 = vmatprep.subr.mxu0 0.0
    %2502 = vmatpush1.msra.mxu0 0.0
    %2503 = vmatprep.subr.mxu0 0.0
    %2504 = vmatpush1.msra.mxu0 0.0
    %2505 = vmatprep.subr.mxu0 0.0
    %2506 = vmatpush1.msra.mxu0 0.0
    %2507 = vmatprep.subr.mxu0 0.0
    %2508 = vmatpush1.msra.mxu0 0.0
    %2509 = vmatprep.subr.mxu0 0.0
    %2510 = vmatpush1.msra.mxu0 0.0
    %2511 = vmatprep.subr.mxu0 0.0
    %2512 = vmatpush1.msra.mxu0 0.0
    %2513 = vmatprep.subr.mxu0 0.0
    %2514 = vmatpush1.msra.mxu0 0.0
    %2515 = vmatprep.subr.mxu0 0.0
    %2516 = vmatpush1.msra.mxu0 0.0
    %2517 = vmatprep.subr.mxu0 0.0
    %2518 = vmatpush1.msra.mxu0 0.0
    %2519 = vmatprep.subr.mxu0 0.0
    %2520 = vmatpush1.msra.mxu0 0.0
    %2521 = vmatprep.subr.mxu0 0.0
    %2522 = vmatpush1.msra.mxu0 0.0
    %2523 = vmatprep.subr.mxu0 0.0
    %2524 = vmatpush1.msra.mxu0 0.0
    %2525 = vmatprep.subr.mxu0 0.0
    %2526 = vmatpush1.msra.mxu0 0.0
    %2527 = vmatprep.subr.mxu0 0.0
    %2528 = vmatpush1.msra.mxu0 0.0
    %2529 = vmatprep.subr.mxu0 0.0
    %2530 = vmatpush1.msra.mxu0 0.0
    %2531 = vmatprep.mubr.f32.mxu0 0.0
    %2532 = vmatmul.mubr.f32.gmra.mrb[0].mxu0 %v2465
    %v2533 = vpop.f32.mrb[0].mxu0
    %v2534 = vadd.f32 0.0, %v2533
    %v2535 = vpop.f32.mrb[0].mxu0
    %2536 = vdwg.mxu0
    %2537 = vmatprep.subr.mxu0 0.0
    %2538 = vmatpush1.msra.mxu0 %v122
    %2539 = vmatprep.subr.mxu0 0.0
    %2540 = vmatpush1.msra.mxu0 %v123
    %2541 = vmatprep.subr.mxu0 0.0
    %2542 = vmatpush1.msra.mxu0 %v124
    %2543 = vmatprep.subr.mxu0 0.0
    %2544 = vmatpush1.msra.mxu0 %v125
    %2545 = vmatprep.subr.mxu0 0.0
    %2546 = vmatpush1.msra.mxu0 0.0
    %2547 = vmatprep.subr.mxu0 0.0
    %2548 = vmatpush1.msra.mxu0 0.0
    %2549 = vmatprep.subr.mxu0 0.0
    %2550 = vmatpush1.msra.mxu0 0.0
    %2551 = vmatprep.subr.mxu0 0.0
    %2552 = vmatpush1.msra.mxu0 0.0
    %2553 = vmatprep.subr.mxu0 0.0
    %2554 = vmatpush1.msra.mxu0 0.0
    %2555 = vmatprep.subr.mxu0 0.0
    %2556 = vmatpush1.msra.mxu0 0.0
    %2557 = vmatprep.subr.mxu0 0.0
    %2558 = vmatpush1.msra.mxu0 0.0
    %2559 = vmatprep.subr.mxu0 0.0
    %2560 = vmatpush1.msra.mxu0 0.0
    %2561 = vmatprep.subr.mxu0 0.0
    %2562 = vmatpush1.msra.mxu0 0.0
    %2563 = vmatprep.subr.mxu0 0.0
    %2564 = vmatpush1.msra.mxu0 0.0
    %2565 = vmatprep.subr.mxu0 0.0
    %2566 = vmatpush1.msra.mxu0 0.0
    %2567 = vmatprep.subr.mxu0 0.0
    %2568 = vmatpush1.msra.mxu0 0.0
    %2569 = vmatprep.subr.mxu0 0.0
    %2570 = vmatpush1.msra.mxu0 0.0
    %2571 = vmatprep.subr.mxu0 0.0
    %2572 = vmatpush1.msra.mxu0 0.0
    %2573 = vmatprep.subr.mxu0 0.0
    %2574 = vmatpush1.msra.mxu0 0.0
    %2575 = vmatprep.subr.mxu0 0.0
    %2576 = vmatpush1.msra.mxu0 0.0
    %2577 = vmatprep.subr.mxu0 0.0
    %2578 = vmatpush1.msra.mxu0 0.0
    %2579 = vmatprep.subr.mxu0 0.0
    %2580 = vmatpush1.msra.mxu0 0.0
    %2581 = vmatprep.subr.mxu0 0.0
    %2582 = vmatpush1.msra.mxu0 0.0
    %2583 = vmatprep.subr.mxu0 0.0
    %2584 = vmatpush1.msra.mxu0 0.0
    %2585 = vmatprep.subr.mxu0 0.0
    %2586 = vmatpush1.msra.mxu0 0.0
    %2587 = vmatprep.subr.mxu0 0.0
    %2588 = vmatpush1.msra.mxu0 0.0
    %2589 = vmatprep.subr.mxu0 0.0
    %2590 = vmatpush1.msra.mxu0 0.0
    %2591 = vmatprep.subr.mxu0 0.0
    %2592 = vmatpush1.msra.mxu0 0.0
    %2593 = vmatprep.subr.mxu0 0.0
    %2594 = vmatpush1.msra.mxu0 0.0
    %2595 = vmatprep.subr.mxu0 0.0
    %2596 = vmatpush1.msra.mxu0 0.0
    %2597 = vmatprep.subr.mxu0 0.0
    %2598 = vmatpush1.msra.mxu0 0.0
    %2599 = vmatprep.subr.mxu0 0.0
    %2600 = vmatpush1.msra.mxu0 0.0
    %2601 = vmatprep.mubr.f32.mxu0 0.0
    %2602 = vmatmul.mubr.f32.gmra.mrb[0].mxu0 %v2381
    %v2603 = vpop.f32.mrb[0].mxu0
    %v2604 = vadd.f32 0.0, %v2603
    %v2605 = vpop.f32.mrb[0].mxu0
    %2606 = vdwg.mxu0
    %v2608 = vsel %vm130, %v2534, 0
    %2610 = vmatprep.subr.mxu0 0.0
    %2611 = vmatpush1.msra.mxu0 %v118
    %2612 = vmatprep.subr.mxu0 0.0
    %2613 = vmatpush1.msra.mxu0 %v119
    %2614 = vmatprep.subr.mxu0 0.0
    %2615 = vmatpush1.msra.mxu0 %v120
    %2616 = vmatprep.subr.mxu0 0.0
    %2617 = vmatpush1.msra.mxu0 %v121
    %2618 = vmatprep.subr.mxu0 0.0
    %2619 = vmatpush1.msra.mxu0 0.0
    %2620 = vmatprep.subr.mxu0 0.0
    %2621 = vmatpush1.msra.mxu0 0.0
    %2622 = vmatprep.subr.mxu0 0.0
    %2623 = vmatpush1.msra.mxu0 0.0
    %2624 = vmatprep.subr.mxu0 0.0
    %2625 = vmatpush1.msra.mxu0 0.0
    %2626 = vmatprep.subr.mxu0 0.0
    %2627 = vmatpush1.msra.mxu0 0.0
    %2628 = vmatprep.subr.mxu0 0.0
    %2629 = vmatpush1.msra.mxu0 0.0
    %2630 = vmatprep.subr.mxu0 0.0
    %2631 = vmatpush1.msra.mxu0 0.0
    %2632 = vmatprep.subr.mxu0 0.0
    %2633 = vmatpush1.msra.mxu0 0.0
    %2634 = vmatprep.subr.mxu0 0.0
    %2635 = vmatpush1.msra.mxu0 0.0
    %2636 = vmatprep.subr.mxu0 0.0
    %2637 = vmatpush1.msra.mxu0 0.0
    %2638 = vmatprep.subr.mxu0 0.0
    %2639 = vmatpush1.msra.mxu0 0.0
    %2640 = vmatprep.subr.mxu0 0.0
    %2641 = vmatpush1.msra.mxu0 0.0
    %2642 = vmatprep.subr.mxu0 0.0
    %2643 = vmatpush1.msra.mxu0 0.0
    %2644 = vmatprep.subr.mxu0 0.0
    %2645 = vmatpush1.msra.mxu0 0.0
    %2646 = vmatprep.subr.mxu0 0.0
    %2647 = vmatpush1.msra.mxu0 0.0
    %2648 = vmatprep.subr.mxu0 0.0
    %2649 = vmatpush1.msra.mxu0 0.0
    %2650 = vmatprep.subr.mxu0 0.0
    %2651 = vmatpush1.msra.mxu0 0.0
    %2652 = vmatprep.subr.mxu0 0.0
    %2653 = vmatpush1.msra.mxu0 0.0
    %2654 = vmatprep.subr.mxu0 0.0
    %2655 = vmatpush1.msra.mxu0 0.0
    %2656 = vmatprep.subr.mxu0 0.0
    %2657 = vmatpush1.msra.mxu0 0.0
    %2658 = vmatprep.subr.mxu0 0.0
    %2659 = vmatpush1.msra.mxu0 0.0
    %2660 = vmatprep.subr.mxu0 0.0
    %2661 = vmatpush1.msra.mxu0 0.0
    %2662 = vmatprep.subr.mxu0 0.0
    %2663 = vmatpush1.msra.mxu0 0.0
    %2664 = vmatprep.subr.mxu0 0.0
    %2665 = vmatpush1.msra.mxu0 0.0
    %2666 = vmatprep.subr.mxu0 0.0
    %2667 = vmatpush1.msra.mxu0 0.0
    %2668 = vmatprep.subr.mxu0 0.0
    %2669 = vmatpush1.msra.mxu0 0.0
    %2670 = vmatprep.subr.mxu0 0.0
    %2671 = vmatpush1.msra.mxu0 0.0
    %2672 = vmatprep.subr.mxu0 0.0
    %2673 = vmatpush1.msra.mxu0 0.0
    %2674 = vmatprep.mubr.f32.mxu0 0.0
    %2675 = vmatmul.mubr.f32.gmra.mrb[0].mxu0 %v2608
    %v2676 = vpop.f32.mrb[0].mxu0
    %v2677 = vadd.f32 %v2604, %v2676
    %v2678 = vpop.f32.mrb[0].mxu0
    %2679 = vdwg.mxu0
    %v2680 = vadd.f32 %v2677, %v126
    %v2681 = vsel %vm615, %v2680, -inf
    %2682 = vmax.xlane.f32.xlu0 %v2681
    %v2683 = vpop.xlane.xlu0 %2682
    %v2684 = vsub.f32 %v2680, %v2683
    %v2685 = vmul.f32 %v2684, 1.442695
    %v2686 = vpow.pop %v2685
    %v2687 = vsel %vm615, %v2686, 0.0
    %2688 = vadd.xlane.f32.xlu0 %v2687
    %v2689 = vpop.xlane.xlu0 %2688
    %v2690 = vlog2.pop %v2689
    %v2691 = vmul.f32 %v2690, 0.6931472
    %v2692 = vsub.f32 %v2684, %v2691
    %2693 = vrot.lane.b32.xlu0 %v2377, 96
    %v2694 = vpop.permute.xlu0 %2693
    %2697 = vrot.lane.b32.xlu0 %v2371, 64
    %v2698 = vpop.permute.xlu0 %2697
    %v2700 = vsel %vm635, %v2692, %v2694
    %v2701 = vsel %vm637, %v2700, %v2698
    %v2702 = vsel %vm397, %v2463, 0.0
    %v2705 = vcombine.low %v2701, %v2702
    %v2707 = vunpack.c.l.s4 1966171168
    %v2708 = vunpack.c.0.s8 %v2707
    %v2709 = vlaneseq
    %v2710 = vshrl.u32 %v2709, 7
    %v2711 = vsub.s32 %v2708, %v2710
    %v2712 = vrot.slane %v2705, %v2711
    %v2714 = vunpack.c.l.s4 1966171168
    %v2715 = vunpack.c.0.s8 %v2714
    %v2716 = vlaneseq
    %v2717 = vshrl.u32 %v2716, 7
    %v2718 = vsub.s32 %v2715, %v2717
    %v2719 = vrot.slane %v2712, %v2718
    %s2721 = scalar_lea.vmem [#allocation11], 4
    %2722 = vst.msk [vmem:[%s2721] ss:$8 sm:$0x3] %vm661, %v2719
    %2723 = vst.msk [vmem:[%s2721] ss:$8 sm:$0x0] %vm661, %v2719
    %v2724 = vld [vmem:[#allocation2 + $0x5] sm:$0x1]
    %2725 = vmatprep.subr.mxu0 0.0
    %2726 = vmatpush1.msra.mxu0 %v107
    %2727 = vmatprep.subr.mxu0 0.0
    %2728 = vmatpush1.msra.mxu0 %v108
    %2729 = vmatprep.subr.mxu0 0.0
    %2730 = vmatpush1.msra.mxu0 %v109
    %2731 = vmatprep.subr.mxu0 0.0
    %2732 = vmatpush1.msra.mxu0 %v110
    %2733 = vmatprep.subr.mxu0 0.0
    %2734 = vmatpush1.msra.mxu0 0.0
    %2735 = vmatprep.subr.mxu0 0.0
    %2736 = vmatpush1.msra.mxu0 0.0
    %2737 = vmatprep.subr.mxu0 0.0
    %2738 = vmatpush1.msra.mxu0 0.0
    %2739 = vmatprep.subr.mxu0 0.0
    %2740 = vmatpush1.msra.mxu0 0.0
    %2741 = vmatprep.subr.mxu0 0.0
    %2742 = vmatpush1.msra.mxu0 0.0
    %2743 = vmatprep.subr.mxu0 0.0
    %2744 = vmatpush1.msra.mxu0 0.0
    %2745 = vmatprep.subr.mxu0 0.0
    %2746 = vmatpush1.msra.mxu0 0.0
    %2747 = vmatprep.subr.mxu0 0.0
    %2748 = vmatpush1.msra.mxu0 0.0
    %2749 = vmatprep.subr.mxu0 0.0
    %2750 = vmatpush1.msra.mxu0 0.0
    %2751 = vmatprep.subr.mxu0 0.0
    %2752 = vmatpush1.msra.mxu0 0.0
    %2753 = vmatprep.subr.mxu0 0.0
    %2754 = vmatpush1.msra.mxu0 0.0
    %2755 = vmatprep.subr.mxu0 0.0
    %2756 = vmatpush1.msra.mxu0 0.0
    %2757 = vmatprep.subr.mxu0 0.0
    %2758 = vmatpush1.msra.mxu0 0.0
    %2759 = vmatprep.subr.mxu0 0.0
    %2760 = vmatpush1.msra.mxu0 0.0
    %2761 = vmatprep.subr.mxu0 0.0
    %2762 = vmatpush1.msra.mxu0 0.0
    %2763 = vmatprep.subr.mxu0 0.0
    %2764 = vmatpush1.msra.mxu0 0.0
    %2765 = vmatprep.subr.mxu0 0.0
    %2766 = vmatpush1.msra.mxu0 0.0
    %2767 = vmatprep.subr.mxu0 0.0
    %2768 = vmatpush1.msra.mxu0 0.0
    %2769 = vmatprep.subr.mxu0 0.0
    %2770 = vmatpush1.msra.mxu0 0.0
    %2771 = vmatprep.subr.mxu0 0.0
    %2772 = vmatpush1.msra.mxu0 0.0
    %2773 = vmatprep.subr.mxu0 0.0
    %2774 = vmatpush1.msra.mxu0 0.0
    %2775 = vmatprep.subr.mxu0 0.0
    %2776 = vmatpush1.msra.mxu0 0.0
    %2777 = vmatprep.subr.mxu0 0.0
    %2778 = vmatpush1.msra.mxu0 0.0
    %2779 = vmatprep.subr.mxu0 0.0
    %2780 = vmatpush1.msra.mxu0 0.0
    %2781 = vmatprep.subr.mxu0 0.0
    %2782 = vmatpush1.msra.mxu0 0.0
    %2783 = vmatprep.subr.mxu0 0.0
    %2784 = vmatpush1.msra.mxu0 0.0
    %2785 = vmatprep.subr.mxu0 0.0
    %2786 = vmatpush1.msra.mxu0 0.0
    %2787 = vmatprep.subr.mxu0 0.0
    %2788 = vmatpush1.msra.mxu0 0.0
    %2789 = vmatprep.mubr.f32.mxu0 0.0
    %2790 = vmatmul.mubr.f32.gmra.mrb[0].mxu0 %v2381
    %v2791 = vpop.f32.mrb[0].mxu0
    %v2792 = vadd.f32 0.0, %v2791
    %v2793 = vpop.f32.mrb[0].mxu0
    %2794 = vdwg.mxu0
    %v2796 = vsel %vm130, %v2724, 0
    %2798 = vmatprep.subr.mxu0 0.0
    %2799 = vmatpush1.msra.mxu0 %v103
    %2800 = vmatprep.subr.mxu0 0.0
    %2801 = vmatpush1.msra.mxu0 %v104
    %2802 = vmatprep.subr.mxu0 0.0
    %2803 = vmatpush1.msra.mxu0 %v105
    %2804 = vmatprep.subr.mxu0 0.0
    %2805 = vmatpush1.msra.mxu0 %v106
    %2806 = vmatprep.subr.mxu0 0.0
    %2807 = vmatpush1.msra.mxu0 0.0
    %2808 = vmatprep.subr.mxu0 0.0
    %2809 = vmatpush1.msra.mxu0 0.0
    %2810 = vmatprep.subr.mxu0 0.0
    %2811 = vmatpush1.msra.mxu0 0.0
    %2812 = vmatprep.subr.mxu0 0.0
    %2813 = vmatpush1.msra.mxu0 0.0
    %2814 = vmatprep.subr.mxu0 0.0
    %2815 = vmatpush1.msra.mxu0 0.0
    %2816 = vmatprep.subr.mxu0 0.0
    %2817 = vmatpush1.msra.mxu0 0.0
    %2818 = vmatprep.subr.mxu0 0.0
    %2819 = vmatpush1.msra.mxu0 0.0
    %2820 = vmatprep.subr.mxu0 0.0
    %2821 = vmatpush1.msra.mxu0 0.0
    %2822 = vmatprep.subr.mxu0 0.0
    %2823 = vmatpush1.msra.mxu0 0.0
    %2824 = vmatprep.subr.mxu0 0.0
    %2825 = vmatpush1.msra.mxu0 0.0
    %2826 = vmatprep.subr.mxu0 0.0
    %2827 = vmatpush1.msra.mxu0 0.0
    %2828 = vmatprep.subr.mxu0 0.0
    %2829 = vmatpush1.msra.mxu0 0.0
    %2830 = vmatprep.subr.mxu0 0.0
    %2831 = vmatpush1.msra.mxu0 0.0
    %2832 = vmatprep.subr.mxu0 0.0
    %2833 = vmatpush1.msra.mxu0 0.0
    %2834 = vmatprep.subr.mxu0 0.0
    %2835 = vmatpush1.msra.mxu0 0.0
    %2836 = vmatprep.subr.mxu0 0.0
    %2837 = vmatpush1.msra.mxu0 0.0
    %2838 = vmatprep.subr.mxu0 0.0
    %2839 = vmatpush1.msra.mxu0 0.0
    %2840 = vmatprep.subr.mxu0 0.0
    %2841 = vmatpush1.msra.mxu0 0.0
    %2842 = vmatprep.subr.mxu0 0.0
    %2843 = vmatpush1.msra.mxu0 0.0
    %2844 = vmatprep.subr.mxu0 0.0
    %2845 = vmatpush1.msra.mxu0 0.0
    %2846 = vmatprep.subr.mxu0 0.0
    %2847 = vmatpush1.msra.mxu0 0.0
    %2848 = vmatprep.subr.mxu0 0.0
    %2849 = vmatpush1.msra.mxu0 0.0
    %2850 = vmatprep.subr.mxu0 0.0
    %2851 = vmatpush1.msra.mxu0 0.0
    %2852 = vmatprep.subr.mxu0 0.0
    %2853 = vmatpush1.msra.mxu0 0.0
    %2854 = vmatprep.subr.mxu0 0.0
    %2855 = vmatpush1.msra.mxu0 0.0
    %2856 = vmatprep.subr.mxu0 0.0
    %2857 = vmatpush1.msra.mxu0 0.0
    %2858 = vmatprep.subr.mxu0 0.0
    %2859 = vmatpush1.msra.mxu0 0.0
    %2860 = vmatprep.subr.mxu0 0.0
    %2861 = vmatpush1.msra.mxu0 0.0
    %2862 = vmatprep.mubr.f32.mxu0 0.0
    %2863 = vmatmul.mubr.f32.gmra.mrb[0].mxu0 %v2796
    %v2864 = vpop.f32.mrb[0].mxu0
    %v2865 = vadd.f32 %v2792, %v2864
    %v2866 = vpop.f32.mrb[0].mxu0
    %2867 = vdwg.mxu0
    %v2868 = vadd.f32 %v2865, %v111
    %v2869 = vxor.u32 %v2868, 2147483648
    %v2870 = vmul.f32 %v2869, 1.442695
    %v2871 = vpow.pop %v2870
    %v2872 = vadd.f32 %v2871, 1.0
    %v2873 = vrcp.pop %v2872
    %v2874 = vmul.f32 1.0, %v2873
    %v2875 = vtanh.pop %v2868
    %v2876 = vmul.f32 %v2874, %v2371
    %2878 = vrot.lane.b32.xlu0 %v2875, 64
    %v2879 = vpop.permute.xlu0 %2878
    %v2881 = vmul.f32 %v2874, %v2879
    %2883 = vrot.lane.b32.xlu0 %v2881, 32
    %v2884 = vpop.permute.xlu0 %2883
    %v2886 = vadd.f32 %v2876, %v2884
    %v2887 = vtanh.pop %v2886
    %2889 = vrot.lane.b32.xlu0 %v2887, 64
    %v2890 = vpop.permute.xlu0 %2889
    %v2892 = vmul.f32 %v2874, %v2890
    %2894 = vrot.lane.b32.xlu0 %v2892, 32
    %v2895 = vpop.permute.xlu0 %2894
    %v2896 = vsel %vm130, %v2895, 0
    %2898 = vmatprep.subr.mxu0 0.0
    %2899 = vmatpush1.msra.mxu0 %v112
    %2900 = vmatprep.subr.mxu0 0.0
    %2901 = vmatpush1.msra.mxu0 %v113
    %2902 = vmatprep.subr.mxu0 0.0
    %2903 = vmatpush1.msra.mxu0 %v114
    %2904 = vmatprep.subr.mxu0 0.0
    %2905 = vmatpush1.msra.mxu0 %v115
    %2906 = vmatprep.subr.mxu0 0.0
    %2907 = vmatpush1.msra.mxu0 0.0
    %2908 = vmatprep.subr.mxu0 0.0
    %2909 = vmatpush1.msra.mxu0 0.0
    %2910 = vmatprep.subr.mxu0 0.0
    %2911 = vmatpush1.msra.mxu0 0.0
    %2912 = vmatprep.subr.mxu0 0.0
    %2913 = vmatpush1.msra.mxu0 0.0
    %2914 = vmatprep.subr.mxu0 0.0
    %2915 = vmatpush1.msra.mxu0 0.0
    %2916 = vmatprep.subr.mxu0 0.0
    %2917 = vmatpush1.msra.mxu0 0.0
    %2918 = vmatprep.subr.mxu0 0.0
    %2919 = vmatpush1.msra.mxu0 0.0
    %2920 = vmatprep.subr.mxu0 0.0
    %2921 = vmatpush1.msra.mxu0 0.0
    %2922 = vmatprep.subr.mxu0 0.0
    %2923 = vmatpush1.msra.mxu0 0.0
    %2924 = vmatprep.subr.mxu0 0.0
    %2925 = vmatpush1.msra.mxu0 0.0
    %2926 = vmatprep.subr.mxu0 0.0
    %2927 = vmatpush1.msra.mxu0 0.0
    %2928 = vmatprep.subr.mxu0 0.0
    %2929 = vmatpush1.msra.mxu0 0.0
    %2930 = vmatprep.subr.mxu0 0.0
    %2931 = vmatpush1.msra.mxu0 0.0
    %2932 = vmatprep.subr.mxu0 0.0
    %2933 = vmatpush1.msra.mxu0 0.0
    %2934 = vmatprep.subr.mxu0 0.0
    %2935 = vmatpush1.msra.mxu0 0.0
    %2936 = vmatprep.subr.mxu0 0.0
    %2937 = vmatpush1.msra.mxu0 0.0
    %2938 = vmatprep.subr.mxu0 0.0
    %2939 = vmatpush1.msra.mxu0 0.0
    %2940 = vmatprep.subr.mxu0 0.0
    %2941 = vmatpush1.msra.mxu0 0.0
    %2942 = vmatprep.subr.mxu0 0.0
    %2943 = vmatpush1.msra.mxu0 0.0
    %2944 = vmatprep.subr.mxu0 0.0
    %2945 = vmatpush1.msra.mxu0 0.0
    %2946 = vmatprep.subr.mxu0 0.0
    %2947 = vmatpush1.msra.mxu0 0.0
    %2948 = vmatprep.subr.mxu0 0.0
    %2949 = vmatpush1.msra.mxu0 0.0
    %2950 = vmatprep.subr.mxu0 0.0
    %2951 = vmatpush1.msra.mxu0 0.0
    %2952 = vmatprep.subr.mxu0 0.0
    %2953 = vmatpush1.msra.mxu0 0.0
    %2954 = vmatprep.subr.mxu0 0.0
    %2955 = vmatpush1.msra.mxu0 0.0
    %2956 = vmatprep.subr.mxu0 0.0
    %2957 = vmatpush1.msra.mxu0 0.0
    %2958 = vmatprep.subr.mxu0 0.0
    %2959 = vmatpush1.msra.mxu0 0.0
    %2960 = vmatprep.subr.mxu0 0.0
    %2961 = vmatpush1.msra.mxu0 0.0
    %2962 = vmatprep.mubr.f32.mxu0 0.0
    %2963 = vmatmul.mubr.f32.gmra.mrb[0].mxu0 %v2896
    %v2964 = vpop.f32.mrb[0].mxu0
    %v2965 = vadd.f32 0.0, %v2964
    %v2966 = vpop.f32.mrb[0].mxu0
    %2967 = vdwg.mxu0
    %v2968 = vsel %vm385, %v2965, -inf
    %2969 = vmax.xlane.f32.xlu0 %v2968
    %v2970 = vpop.xlane.xlu0 %2969
    %v2971 = vsub.f32 %v2965, %v2970
    %v2972 = vmul.f32 %v2971, 1.442695
    %v2973 = vpow.pop %v2972
    %v2974 = vsel %vm385, %v2973, 0.0
    %2975 = vadd.xlane.f32.xlu0 %v2974
    %v2976 = vpop.xlane.xlu0 %2975
    %v2977 = vrcp.pop %v2976
    %v2978 = vmul.f32 %v2973, %v2977
    %v2980 = vsel %vm397, %v2978, 0
    %2982 = vmatprep.subr.mxu0 0.0
    %2983 = vmatpush1.msra.mxu0 %v116
    %2984 = vmatprep.subr.mxu0 0.0
    %2985 = vmatpush1.msra.mxu0 %v117
    %2986 = vmatprep.subr.mxu0 0.0
    %2987 = vmatpush1.msra.mxu0 0.0
    %2988 = vmatprep.subr.mxu0 0.0
    %2989 = vmatpush1.msra.mxu0 0.0
    %2990 = vmatprep.subr.mxu0 0.0
    %2991 = vmatpush1.msra.mxu0 0.0
    %2992 = vmatprep.subr.mxu0 0.0
    %2993 = vmatpush1.msra.mxu0 0.0
    %2994 = vmatprep.subr.mxu0 0.0
    %2995 = vmatpush1.msra.mxu0 0.0
    %2996 = vmatprep.subr.mxu0 0.0
    %2997 = vmatpush1.msra.mxu0 0.0
    %2998 = vmatprep.subr.mxu0 0.0
    %2999 = vmatpush1.msra.mxu0 0.0
    %3000 = vmatprep.subr.mxu0 0.0
    %3001 = vmatpush1.msra.mxu0 0.0
    %3002 = vmatprep.subr.mxu0 0.0
    %3003 = vmatpush1.msra.mxu0 0.0
    %3004 = vmatprep.subr.mxu0 0.0
    %3005 = vmatpush1.msra.mxu0 0.0
    %3006 = vmatprep.subr.mxu0 0.0
    %3007 = vmatpush1.msra.mxu0 0.0
    %3008 = vmatprep.subr.mxu0 0.0
    %3009 = vmatpush1.msra.mxu0 0.0
    %3010 = vmatprep.subr.mxu0 0.0
    %3011 = vmatpush1.msra.mxu0 0.0
    %3012 = vmatprep.subr.mxu0 0.0
    %3013 = vmatpush1.msra.mxu0 0.0
    %3014 = vmatprep.subr.mxu0 0.0
    %3015 = vmatpush1.msra.mxu0 0.0
    %3016 = vmatprep.subr.mxu0 0.0
    %3017 = vmatpush1.msra.mxu0 0.0
    %3018 = vmatprep.subr.mxu0 0.0
    %3019 = vmatpush1.msra.mxu0 0.0
    %3020 = vmatprep.subr.mxu0 0.0
    %3021 = vmatpush1.msra.mxu0 0.0
    %3022 = vmatprep.subr.mxu0 0.0
    %3023 = vmatpush1.msra.mxu0 0.0
    %3024 = vmatprep.subr.mxu0 0.0
    %3025 = vmatpush1.msra.mxu0 0.0
    %3026 = vmatprep.subr.mxu0 0.0
    %3027 = vmatpush1.msra.mxu0 0.0
    %3028 = vmatprep.subr.mxu0 0.0
    %3029 = vmatpush1.msra.mxu0 0.0
    %3030 = vmatprep.subr.mxu0 0.0
    %3031 = vmatpush1.msra.mxu0 0.0
    %3032 = vmatprep.subr.mxu0 0.0
    %3033 = vmatpush1.msra.mxu0 0.0
    %3034 = vmatprep.subr.mxu0 0.0
    %3035 = vmatpush1.msra.mxu0 0.0
    %3036 = vmatprep.subr.mxu0 0.0
    %3037 = vmatpush1.msra.mxu0 0.0
    %3038 = vmatprep.subr.mxu0 0.0
    %3039 = vmatpush1.msra.mxu0 0.0
    %3040 = vmatprep.subr.mxu0 0.0
    %3041 = vmatpush1.msra.mxu0 0.0
    %3042 = vmatprep.subr.mxu0 0.0
    %3043 = vmatpush1.msra.mxu0 0.0
    %3044 = vmatprep.subr.mxu0 0.0
    %3045 = vmatpush1.msra.mxu0 0.0
    %3046 = vmatprep.mubr.f32.mxu0 0.0
    %3047 = vmatmul.mubr.f32.gmra.mrb[0].mxu0 %v2980
    %v3048 = vpop.f32.mrb[0].mxu0
    %v3049 = vadd.f32 0.0, %v3048
    %v3050 = vpop.f32.mrb[0].mxu0
    %3051 = vdwg.mxu0
    %3052 = vmatprep.subr.mxu0 0.0
    %3053 = vmatpush1.msra.mxu0 %v122
    %3054 = vmatprep.subr.mxu0 0.0
    %3055 = vmatpush1.msra.mxu0 %v123
    %3056 = vmatprep.subr.mxu0 0.0
    %3057 = vmatpush1.msra.mxu0 %v124
    %3058 = vmatprep.subr.mxu0 0.0
    %3059 = vmatpush1.msra.mxu0 %v125
    %3060 = vmatprep.subr.mxu0 0.0
    %3061 = vmatpush1.msra.mxu0 0.0
    %3062 = vmatprep.subr.mxu0 0.0
    %3063 = vmatpush1.msra.mxu0 0.0
    %3064 = vmatprep.subr.mxu0 0.0
    %3065 = vmatpush1.msra.mxu0 0.0
    %3066 = vmatprep.subr.mxu0 0.0
    %3067 = vmatpush1.msra.mxu0 0.0
    %3068 = vmatprep.subr.mxu0 0.0
    %3069 = vmatpush1.msra.mxu0 0.0
    %3070 = vmatprep.subr.mxu0 0.0
    %3071 = vmatpush1.msra.mxu0 0.0
    %3072 = vmatprep.subr.mxu0 0.0
    %3073 = vmatpush1.msra.mxu0 0.0
    %3074 = vmatprep.subr.mxu0 0.0
    %3075 = vmatpush1.msra.mxu0 0.0
    %3076 = vmatprep.subr.mxu0 0.0
    %3077 = vmatpush1.msra.mxu0 0.0
    %3078 = vmatprep.subr.mxu0 0.0
    %3079 = vmatpush1.msra.mxu0 0.0
    %3080 = vmatprep.subr.mxu0 0.0
    %3081 = vmatpush1.msra.mxu0 0.0
    %3082 = vmatprep.subr.mxu0 0.0
    %3083 = vmatpush1.msra.mxu0 0.0
    %3084 = vmatprep.subr.mxu0 0.0
    %3085 = vmatpush1.msra.mxu0 0.0
    %3086 = vmatprep.subr.mxu0 0.0
    %3087 = vmatpush1.msra.mxu0 0.0
    %3088 = vmatprep.subr.mxu0 0.0
    %3089 = vmatpush1.msra.mxu0 0.0
    %3090 = vmatprep.subr.mxu0 0.0
    %3091 = vmatpush1.msra.mxu0 0.0
    %3092 = vmatprep.subr.mxu0 0.0
    %3093 = vmatpush1.msra.mxu0 0.0
    %3094 = vmatprep.subr.mxu0 0.0
    %3095 = vmatpush1.msra.mxu0 0.0
    %3096 = vmatprep.subr.mxu0 0.0
    %3097 = vmatpush1.msra.mxu0 0.0
    %3098 = vmatprep.subr.mxu0 0.0
    %3099 = vmatpush1.msra.mxu0 0.0
    %3100 = vmatprep.subr.mxu0 0.0
    %3101 = vmatpush1.msra.mxu0 0.0
    %3102 = vmatprep.subr.mxu0 0.0
    %3103 = vmatpush1.msra.mxu0 0.0
    %3104 = vmatprep.subr.mxu0 0.0
    %3105 = vmatpush1.msra.mxu0 0.0
    %3106 = vmatprep.subr.mxu0 0.0
    %3107 = vmatpush1.msra.mxu0 0.0
    %3108 = vmatprep.subr.mxu0 0.0
    %3109 = vmatpush1.msra.mxu0 0.0
    %3110 = vmatprep.subr.mxu0 0.0
    %3111 = vmatpush1.msra.mxu0 0.0
    %3112 = vmatprep.subr.mxu0 0.0
    %3113 = vmatpush1.msra.mxu0 0.0
    %3114 = vmatprep.subr.mxu0 0.0
    %3115 = vmatpush1.msra.mxu0 0.0
    %3116 = vmatprep.mubr.f32.mxu0 0.0
    %3117 = vmatmul.mubr.f32.gmra.mrb[0].mxu0 %v2896
    %v3118 = vpop.f32.mrb[0].mxu0
    %v3119 = vadd.f32 0.0, %v3118
    %v3120 = vpop.f32.mrb[0].mxu0
    %3121 = vdwg.mxu0
    %v3123 = vsel %vm130, %v3049, 0
    %3125 = vmatprep.subr.mxu0 0.0
    %3126 = vmatpush1.msra.mxu0 %v118
    %3127 = vmatprep.subr.mxu0 0.0
    %3128 = vmatpush1.msra.mxu0 %v119
    %3129 = vmatprep.subr.mxu0 0.0
    %3130 = vmatpush1.msra.mxu0 %v120
    %3131 = vmatprep.subr.mxu0 0.0
    %3132 = vmatpush1.msra.mxu0 %v121
    %3133 = vmatprep.subr.mxu0 0.0
    %3134 = vmatpush1.msra.mxu0 0.0
    %3135 = vmatprep.subr.mxu0 0.0
    %3136 = vmatpush1.msra.mxu0 0.0
    %3137 = vmatprep.subr.mxu0 0.0
    %3138 = vmatpush1.msra.mxu0 0.0
    %3139 = vmatprep.subr.mxu0 0.0
    %3140 = vmatpush1.msra.mxu0 0.0
    %3141 = vmatprep.subr.mxu0 0.0
    %3142 = vmatpush1.msra.mxu0 0.0
    %3143 = vmatprep.subr.mxu0 0.0
    %3144 = vmatpush1.msra.mxu0 0.0
    %3145 = vmatprep.subr.mxu0 0.0
    %3146 = vmatpush1.msra.mxu0 0.0
    %3147 = vmatprep.subr.mxu0 0.0
    %3148 = vmatpush1.msra.mxu0 0.0
    %3149 = vmatprep.subr.mxu0 0.0
    %3150 = vmatpush1.msra.mxu0 0.0
    %3151 = vmatprep.subr.mxu0 0.0
    %3152 = vmatpush1.msra.mxu0 0.0
    %3153 = vmatprep.subr.mxu0 0.0
    %3154 = vmatpush1.msra.mxu0 0.0
    %3155 = vmatprep.subr.mxu0 0.0
    %3156 = vmatpush1.msra.mxu0 0.0
    %3157 = vmatprep.subr.mxu0 0.0
    %3158 = vmatpush1.msra.mxu0 0.0
    %3159 = vmatprep.subr.mxu0 0.0
    %3160 = vmatpush1.msra.mxu0 0.0
    %3161 = vmatprep.subr.mxu0 0.0
    %3162 = vmatpush1.msra.mxu0 0.0
    %3163 = vmatprep.subr.mxu0 0.0
    %3164 = vmatpush1.msra.mxu0 0.0
    %3165 = vmatprep.subr.mxu0 0.0
    %3166 = vmatpush1.msra.mxu0 0.0
    %3167 = vmatprep.subr.mxu0 0.0
    %3168 = vmatpush1.msra.mxu0 0.0
    %3169 = vmatprep.subr.mxu0 0.0
    %3170 = vmatpush1.msra.mxu0 0.0
    %3171 = vmatprep.subr.mxu0 0.0
    %3172 = vmatpush1.msra.mxu0 0.0
    %3173 = vmatprep.subr.mxu0 0.0
    %3174 = vmatpush1.msra.mxu0 0.0
    %3175 = vmatprep.subr.mxu0 0.0
    %3176 = vmatpush1.msra.mxu0 0.0
    %3177 = vmatprep.subr.mxu0 0.0
    %3178 = vmatpush1.msra.mxu0 0.0
    %3179 = vmatprep.subr.mxu0 0.0
    %3180 = vmatpush1.msra.mxu0 0.0
    %3181 = vmatprep.subr.mxu0 0.0
    %3182 = vmatpush1.msra.mxu0 0.0
    %3183 = vmatprep.subr.mxu0 0.0
    %3184 = vmatpush1.msra.mxu0 0.0
    %3185 = vmatprep.subr.mxu0 0.0
    %3186 = vmatpush1.msra.mxu0 0.0
    %3187 = vmatprep.subr.mxu0 0.0
    %3188 = vmatpush1.msra.mxu0 0.0
    %3189 = vmatprep.mubr.f32.mxu0 0.0
    %3190 = vmatmul.mubr.f32.gmra.mrb[0].mxu0 %v3123
    %v3191 = vpop.f32.mrb[0].mxu0
    %v3192 = vadd.f32 %v3119, %v3191
    %v3193 = vpop.f32.mrb[0].mxu0
    %3194 = vdwg.mxu0
    %v3195 = vadd.f32 %v3192, %v126
    %v3196 = vsel %vm615, %v3195, -inf
    %3197 = vmax.xlane.f32.xlu0 %v3196
    %v3198 = vpop.xlane.xlu0 %3197
    %v3199 = vsub.f32 %v3195, %v3198
    %v3200 = vmul.f32 %v3199, 1.442695
    %v3201 = vpow.pop %v3200
    %v3202 = vsel %vm615, %v3201, 0.0
    %3203 = vadd.xlane.f32.xlu0 %v3202
    %v3204 = vpop.xlane.xlu0 %3203
    %v3205 = vlog2.pop %v3204
    %v3206 = vmul.f32 %v3205, 0.6931472
    %v3207 = vsub.f32 %v3199, %v3206
    %3208 = vrot.lane.b32.xlu0 %v2892, 96
    %v3209 = vpop.permute.xlu0 %3208
    %3212 = vrot.lane.b32.xlu0 %v2886, 64
    %v3213 = vpop.permute.xlu0 %3212
    %v3215 = vsel %vm635, %v3207, %v3209
    %v3216 = vsel %vm637, %v3215, %v3213
    %v3217 = vsel %vm397, %v2978, 0.0
    %v3220 = vcombine.low %v3216, %v3217
    %v3222 = vunpack.c.l.s4 1966171168
    %v3223 = vunpack.c.0.s8 %v3222
    %v3224 = vlaneseq
    %v3225 = vshrl.u32 %v3224, 7
    %v3226 = vsub.s32 %v3223, %v3225
    %v3227 = vrot.slane %v3220, %v3226
    %v3229 = vunpack.c.l.s4 1966171168
    %v3230 = vunpack.c.0.s8 %v3229
    %v3231 = vlaneseq
    %v3232 = vshrl.u32 %v3231, 7
    %v3233 = vsub.s32 %v3230, %v3232
    %v3234 = vrot.slane %v3227, %v3233
    %s3236 = scalar_lea.vmem [#allocation11], 5
    %3237 = vst.msk [vmem:[%s3236] ss:$8 sm:$0x3] %vm661, %v3234
    %3238 = vst.msk [vmem:[%s3236] ss:$8 sm:$0x0] %vm661, %v3234
    %v3239 = vld [vmem:[#allocation2 + $0x6] sm:$0x1]
    %3240 = vmatprep.subr.mxu0 0.0
    %3241 = vmatpush1.msra.mxu0 %v107
    %3242 = vmatprep.subr.mxu0 0.0
    %3243 = vmatpush1.msra.mxu0 %v108
    %3244 = vmatprep.subr.mxu0 0.0
    %3245 = vmatpush1.msra.mxu0 %v109
    %3246 = vmatprep.subr.mxu0 0.0
    %3247 = vmatpush1.msra.mxu0 %v110
    %3248 = vmatprep.subr.mxu0 0.0
    %3249 = vmatpush1.msra.mxu0 0.0
    %3250 = vmatprep.subr.mxu0 0.0
    %3251 = vmatpush1.msra.mxu0 0.0
    %3252 = vmatprep.subr.mxu0 0.0
    %3253 = vmatpush1.msra.mxu0 0.0
    %3254 = vmatprep.subr.mxu0 0.0
    %3255 = vmatpush1.msra.mxu0 0.0
    %3256 = vmatprep.subr.mxu0 0.0
    %3257 = vmatpush1.msra.mxu0 0.0
    %3258 = vmatprep.subr.mxu0 0.0
    %3259 = vmatpush1.msra.mxu0 0.0
    %3260 = vmatprep.subr.mxu0 0.0
    %3261 = vmatpush1.msra.mxu0 0.0
    %3262 = vmatprep.subr.mxu0 0.0
    %3263 = vmatpush1.msra.mxu0 0.0
    %3264 = vmatprep.subr.mxu0 0.0
    %3265 = vmatpush1.msra.mxu0 0.0
    %3266 = vmatprep.subr.mxu0 0.0
    %3267 = vmatpush1.msra.mxu0 0.0
    %3268 = vmatprep.subr.mxu0 0.0
    %3269 = vmatpush1.msra.mxu0 0.0
    %3270 = vmatprep.subr.mxu0 0.0
    %3271 = vmatpush1.msra.mxu0 0.0
    %3272 = vmatprep.subr.mxu0 0.0
    %3273 = vmatpush1.msra.mxu0 0.0
    %3274 = vmatprep.subr.mxu0 0.0
    %3275 = vmatpush1.msra.mxu0 0.0
    %3276 = vmatprep.subr.mxu0 0.0
    %3277 = vmatpush1.msra.mxu0 0.0
    %3278 = vmatprep.subr.mxu0 0.0
    %3279 = vmatpush1.msra.mxu0 0.0
    %3280 = vmatprep.subr.mxu0 0.0
    %3281 = vmatpush1.msra.mxu0 0.0
    %3282 = vmatprep.subr.mxu0 0.0
    %3283 = vmatpush1.msra.mxu0 0.0
    %3284 = vmatprep.subr.mxu0 0.0
    %3285 = vmatpush1.msra.mxu0 0.0
    %3286 = vmatprep.subr.mxu0 0.0
    %3287 = vmatpush1.msra.mxu0 0.0
    %3288 = vmatprep.subr.mxu0 0.0
    %3289 = vmatpush1.msra.mxu0 0.0
    %3290 = vmatprep.subr.mxu0 0.0
    %3291 = vmatpush1.msra.mxu0 0.0
    %3292 = vmatprep.subr.mxu0 0.0
    %3293 = vmatpush1.msra.mxu0 0.0
    %3294 = vmatprep.subr.mxu0 0.0
    %3295 = vmatpush1.msra.mxu0 0.0
    %3296 = vmatprep.subr.mxu0 0.0
    %3297 = vmatpush1.msra.mxu0 0.0
    %3298 = vmatprep.subr.mxu0 0.0
    %3299 = vmatpush1.msra.mxu0 0.0
    %3300 = vmatprep.subr.mxu0 0.0
    %3301 = vmatpush1.msra.mxu0 0.0
    %3302 = vmatprep.subr.mxu0 0.0
    %3303 = vmatpush1.msra.mxu0 0.0
    %3304 = vmatprep.mubr.f32.mxu0 0.0
    %3305 = vmatmul.mubr.f32.gmra.mrb[0].mxu0 %v2896
    %v3306 = vpop.f32.mrb[0].mxu0
    %v3307 = vadd.f32 0.0, %v3306
    %v3308 = vpop.f32.mrb[0].mxu0
    %3309 = vdwg.mxu0
    %v3311 = vsel %vm130, %v3239, 0
    %3313 = vmatprep.subr.mxu0 0.0
    %3314 = vmatpush1.msra.mxu0 %v103
    %3315 = vmatprep.subr.mxu0 0.0
    %3316 = vmatpush1.msra.mxu0 %v104
    %3317 = vmatprep.subr.mxu0 0.0
    %3318 = vmatpush1.msra.mxu0 %v105
    %3319 = vmatprep.subr.mxu0 0.0
    %3320 = vmatpush1.msra.mxu0 %v106
    %3321 = vmatprep.subr.mxu0 0.0
    %3322 = vmatpush1.msra.mxu0 0.0
    %3323 = vmatprep.subr.mxu0 0.0
    %3324 = vmatpush1.msra.mxu0 0.0
    %3325 = vmatprep.subr.mxu0 0.0
    %3326 = vmatpush1.msra.mxu0 0.0
    %3327 = vmatprep.subr.mxu0 0.0
    %3328 = vmatpush1.msra.mxu0 0.0
    %3329 = vmatprep.subr.mxu0 0.0
    %3330 = vmatpush1.msra.mxu0 0.0
    %3331 = vmatprep.subr.mxu0 0.0
    %3332 = vmatpush1.msra.mxu0 0.0
    %3333 = vmatprep.subr.mxu0 0.0
    %3334 = vmatpush1.msra.mxu0 0.0
    %3335 = vmatprep.subr.mxu0 0.0
    %3336 = vmatpush1.msra.mxu0 0.0
    %3337 = vmatprep.subr.mxu0 0.0
    %3338 = vmatpush1.msra.mxu0 0.0
    %3339 = vmatprep.subr.mxu0 0.0
    %3340 = vmatpush1.msra.mxu0 0.0
    %3341 = vmatprep.subr.mxu0 0.0
    %3342 = vmatpush1.msra.mxu0 0.0
    %3343 = vmatprep.subr.mxu0 0.0
    %3344 = vmatpush1.msra.mxu0 0.0
    %3345 = vmatprep.subr.mxu0 0.0
    %3346 = vmatpush1.msra.mxu0 0.0
    %3347 = vmatprep.subr.mxu0 0.0
    %3348 = vmatpush1.msra.mxu0 0.0
    %3349 = vmatprep.subr.mxu0 0.0
    %3350 = vmatpush1.msra.mxu0 0.0
    %3351 = vmatprep.subr.mxu0 0.0
    %3352 = vmatpush1.msra.mxu0 0.0
    %3353 = vmatprep.subr.mxu0 0.0
    %3354 = vmatpush1.msra.mxu0 0.0
    %3355 = vmatprep.subr.mxu0 0.0
    %3356 = vmatpush1.msra.mxu0 0.0
    %3357 = vmatprep.subr.mxu0 0.0
    %3358 = vmatpush1.msra.mxu0 0.0
    %3359 = vmatprep.subr.mxu0 0.0
    %3360 = vmatpush1.msra.mxu0 0.0
    %3361 = vmatprep.subr.mxu0 0.0
    %3362 = vmatpush1.msra.mxu0 0.0
    %3363 = vmatprep.subr.mxu0 0.0
    %3364 = vmatpush1.msra.mxu0 0.0
    %3365 = vmatprep.subr.mxu0 0.0
    %3366 = vmatpush1.msra.mxu0 0.0
    %3367 = vmatprep.subr.mxu0 0.0
    %3368 = vmatpush1.msra.mxu0 0.0
    %3369 = vmatprep.subr.mxu0 0.0
    %3370 = vmatpush1.msra.mxu0 0.0
    %3371 = vmatprep.subr.mxu0 0.0
    %3372 = vmatpush1.msra.mxu0 0.0
    %3373 = vmatprep.subr.mxu0 0.0
    %3374 = vmatpush1.msra.mxu0 0.0
    %3375 = vmatprep.subr.mxu0 0.0
    %3376 = vmatpush1.msra.mxu0 0.0
    %3377 = vmatprep.mubr.f32.mxu0 0.0
    %3378 = vmatmul.mubr.f32.gmra.mrb[0].mxu0 %v3311
    %v3379 = vpop.f32.mrb[0].mxu0
    %v3380 = vadd.f32 %v3307, %v3379
    %v3381 = vpop.f32.mrb[0].mxu0
    %3382 = vdwg.mxu0
    %v3383 = vadd.f32 %v3380, %v111
    %v3384 = vxor.u32 %v3383, 2147483648
    %v3385 = vmul.f32 %v3384, 1.442695
    %v3386 = vpow.pop %v3385
    %v3387 = vadd.f32 %v3386, 1.0
    %v3388 = vrcp.pop %v3387
    %v3389 = vmul.f32 1.0, %v3388
    %v3390 = vtanh.pop %v3383
    %v3391 = vmul.f32 %v3389, %v2886
    %3393 = vrot.lane.b32.xlu0 %v3390, 64
    %v3394 = vpop.permute.xlu0 %3393
    %v3396 = vmul.f32 %v3389, %v3394
    %3398 = vrot.lane.b32.xlu0 %v3396, 32
    %v3399 = vpop.permute.xlu0 %3398
    %v3401 = vadd.f32 %v3391, %v3399
    %v3402 = vtanh.pop %v3401
    %3404 = vrot.lane.b32.xlu0 %v3402, 64
    %v3405 = vpop.permute.xlu0 %3404
    %v3407 = vmul.f32 %v3389, %v3405
    %3409 = vrot.lane.b32.xlu0 %v3407, 32
    %v3410 = vpop.permute.xlu0 %3409
    %v3411 = vsel %vm130, %v3410, 0
    %3413 = vmatprep.subr.mxu0 0.0
    %3414 = vmatpush1.msra.mxu0 %v112
    %3415 = vmatprep.subr.mxu0 0.0
    %3416 = vmatpush1.msra.mxu0 %v113
    %3417 = vmatprep.subr.mxu0 0.0
    %3418 = vmatpush1.msra.mxu0 %v114
    %3419 = vmatprep.subr.mxu0 0.0
    %3420 = vmatpush1.msra.mxu0 %v115
    %3421 = vmatprep.subr.mxu0 0.0
    %3422 = vmatpush1.msra.mxu0 0.0
    %3423 = vmatprep.subr.mxu0 0.0
    %3424 = vmatpush1.msra.mxu0 0.0
    %3425 = vmatprep.subr.mxu0 0.0
    %3426 = vmatpush1.msra.mxu0 0.0
    %3427 = vmatprep.subr.mxu0 0.0
    %3428 = vmatpush1.msra.mxu0 0.0
    %3429 = vmatprep.subr.mxu0 0.0
    %3430 = vmatpush1.msra.mxu0 0.0
    %3431 = vmatprep.subr.mxu0 0.0
    %3432 = vmatpush1.msra.mxu0 0.0
    %3433 = vmatprep.subr.mxu0 0.0
    %3434 = vmatpush1.msra.mxu0 0.0
    %3435 = vmatprep.subr.mxu0 0.0
    %3436 = vmatpush1.msra.mxu0 0.0
    %3437 = vmatprep.subr.mxu0 0.0
    %3438 = vmatpush1.msra.mxu0 0.0
    %3439 = vmatprep.subr.mxu0 0.0
    %3440 = vmatpush1.msra.mxu0 0.0
    %3441 = vmatprep.subr.mxu0 0.0
    %3442 = vmatpush1.msra.mxu0 0.0
    %3443 = vmatprep.subr.mxu0 0.0
    %3444 = vmatpush1.msra.mxu0 0.0
    %3445 = vmatprep.subr.mxu0 0.0
    %3446 = vmatpush1.msra.mxu0 0.0
    %3447 = vmatprep.subr.mxu0 0.0
    %3448 = vmatpush1.msra.mxu0 0.0
    %3449 = vmatprep.subr.mxu0 0.0
    %3450 = vmatpush1.msra.mxu0 0.0
    %3451 = vmatprep.subr.mxu0 0.0
    %3452 = vmatpush1.msra.mxu0 0.0
    %3453 = vmatprep.subr.mxu0 0.0
    %3454 = vmatpush1.msra.mxu0 0.0
    %3455 = vmatprep.subr.mxu0 0.0
    %3456 = vmatpush1.msra.mxu0 0.0
    %3457 = vmatprep.subr.mxu0 0.0
    %3458 = vmatpush1.msra.mxu0 0.0
    %3459 = vmatprep.subr.mxu0 0.0
    %3460 = vmatpush1.msra.mxu0 0.0
    %3461 = vmatprep.subr.mxu0 0.0
    %3462 = vmatpush1.msra.mxu0 0.0
    %3463 = vmatprep.subr.mxu0 0.0
    %3464 = vmatpush1.msra.mxu0 0.0
    %3465 = vmatprep.subr.mxu0 0.0
    %3466 = vmatpush1.msra.mxu0 0.0
    %3467 = vmatprep.subr.mxu0 0.0
    %3468 = vmatpush1.msra.mxu0 0.0
    %3469 = vmatprep.subr.mxu0 0.0
    %3470 = vmatpush1.msra.mxu0 0.0
    %3471 = vmatprep.subr.mxu0 0.0
    %3472 = vmatpush1.msra.mxu0 0.0
    %3473 = vmatprep.subr.mxu0 0.0
    %3474 = vmatpush1.msra.mxu0 0.0
    %3475 = vmatprep.subr.mxu0 0.0
    %3476 = vmatpush1.msra.mxu0 0.0
    %3477 = vmatprep.mubr.f32.mxu0 0.0
    %3478 = vmatmul.mubr.f32.gmra.mrb[0].mxu0 %v3411
    %v3479 = vpop.f32.mrb[0].mxu0
    %v3480 = vadd.f32 0.0, %v3479
    %v3481 = vpop.f32.mrb[0].mxu0
    %3482 = vdwg.mxu0
    %v3483 = vsel %vm385, %v3480, -inf
    %3484 = vmax.xlane.f32.xlu0 %v3483
    %v3485 = vpop.xlane.xlu0 %3484
    %v3486 = vsub.f32 %v3480, %v3485
    %v3487 = vmul.f32 %v3486, 1.442695
    %v3488 = vpow.pop %v3487
    %v3489 = vsel %vm385, %v3488, 0.0
    %3490 = vadd.xlane.f32.xlu0 %v3489
    %v3491 = vpop.xlane.xlu0 %3490
    %v3492 = vrcp.pop %v3491
    %v3493 = vmul.f32 %v3488, %v3492
    %v3495 = vsel %vm397, %v3493, 0
    %3497 = vmatprep.subr.mxu0 0.0
    %3498 = vmatpush1.msra.mxu0 %v116
    %3499 = vmatprep.subr.mxu0 0.0
    %3500 = vmatpush1.msra.mxu0 %v117
    %3501 = vmatprep.subr.mxu0 0.0
    %3502 = vmatpush1.msra.mxu0 0.0
    %3503 = vmatprep.subr.mxu0 0.0
    %3504 = vmatpush1.msra.mxu0 0.0
    %3505 = vmatprep.subr.mxu0 0.0
    %3506 = vmatpush1.msra.mxu0 0.0
    %3507 = vmatprep.subr.mxu0 0.0
    %3508 = vmatpush1.msra.mxu0 0.0
    %3509 = vmatprep.subr.mxu0 0.0
    %3510 = vmatpush1.msra.mxu0 0.0
    %3511 = vmatprep.subr.mxu0 0.0
    %3512 = vmatpush1.msra.mxu0 0.0
    %3513 = vmatprep.subr.mxu0 0.0
    %3514 = vmatpush1.msra.mxu0 0.0
    %3515 = vmatprep.subr.mxu0 0.0
    %3516 = vmatpush1.msra.mxu0 0.0
    %3517 = vmatprep.subr.mxu0 0.0
    %3518 = vmatpush1.msra.mxu0 0.0
    %3519 = vmatprep.subr.mxu0 0.0
    %3520 = vmatpush1.msra.mxu0 0.0
    %3521 = vmatprep.subr.mxu0 0.0
    %3522 = vmatpush1.msra.mxu0 0.0
    %3523 = vmatprep.subr.mxu0 0.0
    %3524 = vmatpush1.msra.mxu0 0.0
    %3525 = vmatprep.subr.mxu0 0.0
    %3526 = vmatpush1.msra.mxu0 0.0
    %3527 = vmatprep.subr.mxu0 0.0
    %3528 = vmatpush1.msra.mxu0 0.0
    %3529 = vmatprep.subr.mxu0 0.0
    %3530 = vmatpush1.msra.mxu0 0.0
    %3531 = vmatprep.subr.mxu0 0.0
    %3532 = vmatpush1.msra.mxu0 0.0
    %3533 = vmatprep.subr.mxu0 0.0
    %3534 = vmatpush1.msra.mxu0 0.0
    %3535 = vmatprep.subr.mxu0 0.0
    %3536 = vmatpush1.msra.mxu0 0.0
    %3537 = vmatprep.subr.mxu0 0.0
    %3538 = vmatpush1.msra.mxu0 0.0
    %3539 = vmatprep.subr.mxu0 0.0
    %3540 = vmatpush1.msra.mxu0 0.0
    %3541 = vmatprep.subr.mxu0 0.0
    %3542 = vmatpush1.msra.mxu0 0.0
    %3543 = vmatprep.subr.mxu0 0.0
    %3544 = vmatpush1.msra.mxu0 0.0
    %3545 = vmatprep.subr.mxu0 0.0
    %3546 = vmatpush1.msra.mxu0 0.0
    %3547 = vmatprep.subr.mxu0 0.0
    %3548 = vmatpush1.msra.mxu0 0.0
    %3549 = vmatprep.subr.mxu0 0.0
    %3550 = vmatpush1.msra.mxu0 0.0
    %3551 = vmatprep.subr.mxu0 0.0
    %3552 = vmatpush1.msra.mxu0 0.0
    %3553 = vmatprep.subr.mxu0 0.0
    %3554 = vmatpush1.msra.mxu0 0.0
    %3555 = vmatprep.subr.mxu0 0.0
    %3556 = vmatpush1.msra.mxu0 0.0
    %3557 = vmatprep.subr.mxu0 0.0
    %3558 = vmatpush1.msra.mxu0 0.0
    %3559 = vmatprep.subr.mxu0 0.0
    %3560 = vmatpush1.msra.mxu0 0.0
    %3561 = vmatprep.mubr.f32.mxu0 0.0
    %3562 = vmatmul.mubr.f32.gmra.mrb[0].mxu0 %v3495
    %v3563 = vpop.f32.mrb[0].mxu0
    %v3564 = vadd.f32 0.0, %v3563
    %v3565 = vpop.f32.mrb[0].mxu0
    %3566 = vdwg.mxu0
    %3567 = vmatprep.subr.mxu0 0.0
    %3568 = vmatpush1.msra.mxu0 %v122
    %3569 = vmatprep.subr.mxu0 0.0
    %3570 = vmatpush1.msra.mxu0 %v123
    %3571 = vmatprep.subr.mxu0 0.0
    %3572 = vmatpush1.msra.mxu0 %v124
    %3573 = vmatprep.subr.mxu0 0.0
    %3574 = vmatpush1.msra.mxu0 %v125
    %3575 = vmatprep.subr.mxu0 0.0
    %3576 = vmatpush1.msra.mxu0 0.0
    %3577 = vmatprep.subr.mxu0 0.0
    %3578 = vmatpush1.msra.mxu0 0.0
    %3579 = vmatprep.subr.mxu0 0.0
    %3580 = vmatpush1.msra.mxu0 0.0
    %3581 = vmatprep.subr.mxu0 0.0
    %3582 = vmatpush1.msra.mxu0 0.0
    %3583 = vmatprep.subr.mxu0 0.0
    %3584 = vmatpush1.msra.mxu0 0.0
    %3585 = vmatprep.subr.mxu0 0.0
    %3586 = vmatpush1.msra.mxu0 0.0
    %3587 = vmatprep.subr.mxu0 0.0
    %3588 = vmatpush1.msra.mxu0 0.0
    %3589 = vmatprep.subr.mxu0 0.0
    %3590 = vmatpush1.msra.mxu0 0.0
    %3591 = vmatprep.subr.mxu0 0.0
    %3592 = vmatpush1.msra.mxu0 0.0
    %3593 = vmatprep.subr.mxu0 0.0
    %3594 = vmatpush1.msra.mxu0 0.0
    %3595 = vmatprep.subr.mxu0 0.0
    %3596 = vmatpush1.msra.mxu0 0.0
    %3597 = vmatprep.subr.mxu0 0.0
    %3598 = vmatpush1.msra.mxu0 0.0
    %3599 = vmatprep.subr.mxu0 0.0
    %3600 = vmatpush1.msra.mxu0 0.0
    %3601 = vmatprep.subr.mxu0 0.0
    %3602 = vmatpush1.msra.mxu0 0.0
    %3603 = vmatprep.subr.mxu0 0.0
    %3604 = vmatpush1.msra.mxu0 0.0
    %3605 = vmatprep.subr.mxu0 0.0
    %3606 = vmatpush1.msra.mxu0 0.0
    %3607 = vmatprep.subr.mxu0 0.0
    %3608 = vmatpush1.msra.mxu0 0.0
    %3609 = vmatprep.subr.mxu0 0.0
    %3610 = vmatpush1.msra.mxu0 0.0
    %3611 = vmatprep.subr.mxu0 0.0
    %3612 = vmatpush1.msra.mxu0 0.0
    %3613 = vmatprep.subr.mxu0 0.0
    %3614 = vmatpush1.msra.mxu0 0.0
    %3615 = vmatprep.subr.mxu0 0.0
    %3616 = vmatpush1.msra.mxu0 0.0
    %3617 = vmatprep.subr.mxu0 0.0
    %3618 = vmatpush1.msra.mxu0 0.0
    %3619 = vmatprep.subr.mxu0 0.0
    %3620 = vmatpush1.msra.mxu0 0.0
    %3621 = vmatprep.subr.mxu0 0.0
    %3622 = vmatpush1.msra.mxu0 0.0
    %3623 = vmatprep.subr.mxu0 0.0
    %3624 = vmatpush1.msra.mxu0 0.0
    %3625 = vmatprep.subr.mxu0 0.0
    %3626 = vmatpush1.msra.mxu0 0.0
    %3627 = vmatprep.subr.mxu0 0.0
    %3628 = vmatpush1.msra.mxu0 0.0
    %3629 = vmatprep.subr.mxu0 0.0
    %3630 = vmatpush1.msra.mxu0 0.0
    %3631 = vmatprep.mubr.f32.mxu0 0.0
    %3632 = vmatmul.mubr.f32.gmra.mrb[0].mxu0 %v3411
    %v3633 = vpop.f32.mrb[0].mxu0
    %v3634 = vadd.f32 0.0, %v3633
    %v3635 = vpop.f32.mrb[0].mxu0
    %3636 = vdwg.mxu0
    %v3638 = vsel %vm130, %v3564, 0
    %3640 = vmatprep.subr.mxu0 0.0
    %3641 = vmatpush1.msra.mxu0 %v118
    %3642 = vmatprep.subr.mxu0 0.0
    %3643 = vmatpush1.msra.mxu0 %v119
    %3644 = vmatprep.subr.mxu0 0.0
    %3645 = vmatpush1.msra.mxu0 %v120
    %3646 = vmatprep.subr.mxu0 0.0
    %3647 = vmatpush1.msra.mxu0 %v121
    %3648 = vmatprep.subr.mxu0 0.0
    %3649 = vmatpush1.msra.mxu0 0.0
    %3650 = vmatprep.subr.mxu0 0.0
    %3651 = vmatpush1.msra.mxu0 0.0
    %3652 = vmatprep.subr.mxu0 0.0
    %3653 = vmatpush1.msra.mxu0 0.0
    %3654 = vmatprep.subr.mxu0 0.0
    %3655 = vmatpush1.msra.mxu0 0.0
    %3656 = vmatprep.subr.mxu0 0.0
    %3657 = vmatpush1.msra.mxu0 0.0
    %3658 = vmatprep.subr.mxu0 0.0
    %3659 = vmatpush1.msra.mxu0 0.0
    %3660 = vmatprep.subr.mxu0 0.0
    %3661 = vmatpush1.msra.mxu0 0.0
    %3662 = vmatprep.subr.mxu0 0.0
    %3663 = vmatpush1.msra.mxu0 0.0
    %3664 = vmatprep.subr.mxu0 0.0
    %3665 = vmatpush1.msra.mxu0 0.0
    %3666 = vmatprep.subr.mxu0 0.0
    %3667 = vmatpush1.msra.mxu0 0.0
    %3668 = vmatprep.subr.mxu0 0.0
    %3669 = vmatpush1.msra.mxu0 0.0
    %3670 = vmatprep.subr.mxu0 0.0
    %3671 = vmatpush1.msra.mxu0 0.0
    %3672 = vmatprep.subr.mxu0 0.0
    %3673 = vmatpush1.msra.mxu0 0.0
    %3674 = vmatprep.subr.mxu0 0.0
    %3675 = vmatpush1.msra.mxu0 0.0
    %3676 = vmatprep.subr.mxu0 0.0
    %3677 = vmatpush1.msra.mxu0 0.0
    %3678 = vmatprep.subr.mxu0 0.0
    %3679 = vmatpush1.msra.mxu0 0.0
    %3680 = vmatprep.subr.mxu0 0.0
    %3681 = vmatpush1.msra.mxu0 0.0
    %3682 = vmatprep.subr.mxu0 0.0
    %3683 = vmatpush1.msra.mxu0 0.0
    %3684 = vmatprep.subr.mxu0 0.0
    %3685 = vmatpush1.msra.mxu0 0.0
    %3686 = vmatprep.subr.mxu0 0.0
    %3687 = vmatpush1.msra.mxu0 0.0
    %3688 = vmatprep.subr.mxu0 0.0
    %3689 = vmatpush1.msra.mxu0 0.0
    %3690 = vmatprep.subr.mxu0 0.0
    %3691 = vmatpush1.msra.mxu0 0.0
    %3692 = vmatprep.subr.mxu0 0.0
    %3693 = vmatpush1.msra.mxu0 0.0
    %3694 = vmatprep.subr.mxu0 0.0
    %3695 = vmatpush1.msra.mxu0 0.0
    %3696 = vmatprep.subr.mxu0 0.0
    %3697 = vmatpush1.msra.mxu0 0.0
    %3698 = vmatprep.subr.mxu0 0.0
    %3699 = vmatpush1.msra.mxu0 0.0
    %3700 = vmatprep.subr.mxu0 0.0
    %3701 = vmatpush1.msra.mxu0 0.0
    %3702 = vmatprep.subr.mxu0 0.0
    %3703 = vmatpush1.msra.mxu0 0.0
    %3704 = vmatprep.mubr.f32.mxu0 0.0
    %3705 = vmatmul.mubr.f32.gmra.mrb[0].mxu0 %v3638
    %v3706 = vpop.f32.mrb[0].mxu0
    %v3707 = vadd.f32 %v3634, %v3706
    %v3708 = vpop.f32.mrb[0].mxu0
    %3709 = vdwg.mxu0
    %v3710 = vadd.f32 %v3707, %v126
    %v3711 = vsel %vm615, %v3710, -inf
    %3712 = vmax.xlane.f32.xlu0 %v3711
    %v3713 = vpop.xlane.xlu0 %3712
    %v3714 = vsub.f32 %v3710, %v3713
    %v3715 = vmul.f32 %v3714, 1.442695
    %v3716 = vpow.pop %v3715
    %v3717 = vsel %vm615, %v3716, 0.0
    %3718 = vadd.xlane.f32.xlu0 %v3717
    %v3719 = vpop.xlane.xlu0 %3718
    %v3720 = vlog2.pop %v3719
    %v3721 = vmul.f32 %v3720, 0.6931472
    %v3722 = vsub.f32 %v3714, %v3721
    %3723 = vrot.lane.b32.xlu0 %v3407, 96
    %v3724 = vpop.permute.xlu0 %3723
    %3727 = vrot.lane.b32.xlu0 %v3401, 64
    %v3728 = vpop.permute.xlu0 %3727
    %v3730 = vsel %vm635, %v3722, %v3724
    %v3731 = vsel %vm637, %v3730, %v3728
    %v3732 = vsel %vm397, %v3493, 0.0
    %v3735 = vcombine.low %v3731, %v3732
    %v3737 = vunpack.c.l.s4 1966171168
    %v3738 = vunpack.c.0.s8 %v3737
    %v3739 = vlaneseq
    %v3740 = vshrl.u32 %v3739, 7
    %v3741 = vsub.s32 %v3738, %v3740
    %v3742 = vrot.slane %v3735, %v3741
    %v3744 = vunpack.c.l.s4 1966171168
    %v3745 = vunpack.c.0.s8 %v3744
    %v3746 = vlaneseq
    %v3747 = vshrl.u32 %v3746, 7
    %v3748 = vsub.s32 %v3745, %v3747
    %v3749 = vrot.slane %v3742, %v3748
    %s3751 = scalar_lea.vmem [#allocation11], 6
    %3752 = vst.msk [vmem:[%s3751] ss:$8 sm:$0x3] %vm661, %v3749
    %3753 = vst.msk [vmem:[%s3751] ss:$8 sm:$0x0] %vm661, %v3749
    %v3754 = vld [vmem:[#allocation2 + $0x7] sm:$0x1]
    %3755 = vmatprep.subr.mxu0 0.0
    %3756 = vmatpush1.msra.mxu0 %v107
    %3757 = vmatprep.subr.mxu0 0.0
    %3758 = vmatpush1.msra.mxu0 %v108
    %3759 = vmatprep.subr.mxu0 0.0
    %3760 = vmatpush1.msra.mxu0 %v109
    %3761 = vmatprep.subr.mxu0 0.0
    %3762 = vmatpush1.msra.mxu0 %v110
    %3763 = vmatprep.subr.mxu0 0.0
    %3764 = vmatpush1.msra.mxu0 0.0
    %3765 = vmatprep.subr.mxu0 0.0
    %3766 = vmatpush1.msra.mxu0 0.0
    %3767 = vmatprep.subr.mxu0 0.0
    %3768 = vmatpush1.msra.mxu0 0.0
    %3769 = vmatprep.subr.mxu0 0.0
    %3770 = vmatpush1.msra.mxu0 0.0
    %3771 = vmatprep.subr.mxu0 0.0
    %3772 = vmatpush1.msra.mxu0 0.0
    %3773 = vmatprep.subr.mxu0 0.0
    %3774 = vmatpush1.msra.mxu0 0.0
    %3775 = vmatprep.subr.mxu0 0.0
    %3776 = vmatpush1.msra.mxu0 0.0
    %3777 = vmatprep.subr.mxu0 0.0
    %3778 = vmatpush1.msra.mxu0 0.0
    %3779 = vmatprep.subr.mxu0 0.0
    %3780 = vmatpush1.msra.mxu0 0.0
    %3781 = vmatprep.subr.mxu0 0.0
    %3782 = vmatpush1.msra.mxu0 0.0
    %3783 = vmatprep.subr.mxu0 0.0
    %3784 = vmatpush1.msra.mxu0 0.0
    %3785 = vmatprep.subr.mxu0 0.0
    %3786 = vmatpush1.msra.mxu0 0.0
    %3787 = vmatprep.subr.mxu0 0.0
    %3788 = vmatpush1.msra.mxu0 0.0
    %3789 = vmatprep.subr.mxu0 0.0
    %3790 = vmatpush1.msra.mxu0 0.0
    %3791 = vmatprep.subr.mxu0 0.0
    %3792 = vmatpush1.msra.mxu0 0.0
    %3793 = vmatprep.subr.mxu0 0.0
    %3794 = vmatpush1.msra.mxu0 0.0
    %3795 = vmatprep.subr.mxu0 0.0
    %3796 = vmatpush1.msra.mxu0 0.0
    %3797 = vmatprep.subr.mxu0 0.0
    %3798 = vmatpush1.msra.mxu0 0.0
    %3799 = vmatprep.subr.mxu0 0.0
    %3800 = vmatpush1.msra.mxu0 0.0
    %3801 = vmatprep.subr.mxu0 0.0
    %3802 = vmatpush1.msra.mxu0 0.0
    %3803 = vmatprep.subr.mxu0 0.0
    %3804 = vmatpush1.msra.mxu0 0.0
    %3805 = vmatprep.subr.mxu0 0.0
    %3806 = vmatpush1.msra.mxu0 0.0
    %3807 = vmatprep.subr.mxu0 0.0
    %3808 = vmatpush1.msra.mxu0 0.0
    %3809 = vmatprep.subr.mxu0 0.0
    %3810 = vmatpush1.msra.mxu0 0.0
    %3811 = vmatprep.subr.mxu0 0.0
    %3812 = vmatpush1.msra.mxu0 0.0
    %3813 = vmatprep.subr.mxu0 0.0
    %3814 = vmatpush1.msra.mxu0 0.0
    %3815 = vmatprep.subr.mxu0 0.0
    %3816 = vmatpush1.msra.mxu0 0.0
    %3817 = vmatprep.subr.mxu0 0.0
    %3818 = vmatpush1.msra.mxu0 0.0
    %3819 = vmatprep.mubr.f32.mxu0 0.0
    %3820 = vmatmul.mubr.f32.gmra.mrb[0].mxu0 %v3411
    %v3821 = vpop.f32.mrb[0].mxu0
    %v3822 = vadd.f32 0.0, %v3821
    %v3823 = vpop.f32.mrb[0].mxu0
    %3824 = vdwg.mxu0
    %v3826 = vsel %vm130, %v3754, 0
    %3828 = vmatprep.subr.mxu0 0.0
    %3829 = vmatpush1.msra.mxu0 %v103
    %3830 = vmatprep.subr.mxu0 0.0
    %3831 = vmatpush1.msra.mxu0 %v104
    %3832 = vmatprep.subr.mxu0 0.0
    %3833 = vmatpush1.msra.mxu0 %v105
    %3834 = vmatprep.subr.mxu0 0.0
    %3835 = vmatpush1.msra.mxu0 %v106
    %3836 = vmatprep.subr.mxu0 0.0
    %3837 = vmatpush1.msra.mxu0 0.0
    %3838 = vmatprep.subr.mxu0 0.0
    %3839 = vmatpush1.msra.mxu0 0.0
    %3840 = vmatprep.subr.mxu0 0.0
    %3841 = vmatpush1.msra.mxu0 0.0
    %3842 = vmatprep.subr.mxu0 0.0
    %3843 = vmatpush1.msra.mxu0 0.0
    %3844 = vmatprep.subr.mxu0 0.0
    %3845 = vmatpush1.msra.mxu0 0.0
    %3846 = vmatprep.subr.mxu0 0.0
    %3847 = vmatpush1.msra.mxu0 0.0
    %3848 = vmatprep.subr.mxu0 0.0
    %3849 = vmatpush1.msra.mxu0 0.0
    %3850 = vmatprep.subr.mxu0 0.0
    %3851 = vmatpush1.msra.mxu0 0.0
    %3852 = vmatprep.subr.mxu0 0.0
    %3853 = vmatpush1.msra.mxu0 0.0
    %3854 = vmatprep.subr.mxu0 0.0
    %3855 = vmatpush1.msra.mxu0 0.0
    %3856 = vmatprep.subr.mxu0 0.0
    %3857 = vmatpush1.msra.mxu0 0.0
    %3858 = vmatprep.subr.mxu0 0.0
    %3859 = vmatpush1.msra.mxu0 0.0
    %3860 = vmatprep.subr.mxu0 0.0
    %3861 = vmatpush1.msra.mxu0 0.0
    %3862 = vmatprep.subr.mxu0 0.0
    %3863 = vmatpush1.msra.mxu0 0.0
    %3864 = vmatprep.subr.mxu0 0.0
    %3865 = vmatpush1.msra.mxu0 0.0
    %3866 = vmatprep.subr.mxu0 0.0
    %3867 = vmatpush1.msra.mxu0 0.0
    %3868 = vmatprep.subr.mxu0 0.0
    %3869 = vmatpush1.msra.mxu0 0.0
    %3870 = vmatprep.subr.mxu0 0.0
    %3871 = vmatpush1.msra.mxu0 0.0
    %3872 = vmatprep.subr.mxu0 0.0
    %3873 = vmatpush1.msra.mxu0 0.0
    %3874 = vmatprep.subr.mxu0 0.0
    %3875 = vmatpush1.msra.mxu0 0.0
    %3876 = vmatprep.subr.mxu0 0.0
    %3877 = vmatpush1.msra.mxu0 0.0
    %3878 = vmatprep.subr.mxu0 0.0
    %3879 = vmatpush1.msra.mxu0 0.0
    %3880 = vmatprep.subr.mxu0 0.0
    %3881 = vmatpush1.msra.mxu0 0.0
    %3882 = vmatprep.subr.mxu0 0.0
    %3883 = vmatpush1.msra.mxu0 0.0
    %3884 = vmatprep.subr.mxu0 0.0
    %3885 = vmatpush1.msra.mxu0 0.0
    %3886 = vmatprep.subr.mxu0 0.0
    %3887 = vmatpush1.msra.mxu0 0.0
    %3888 = vmatprep.subr.mxu0 0.0
    %3889 = vmatpush1.msra.mxu0 0.0
    %3890 = vmatprep.subr.mxu0 0.0
    %3891 = vmatpush1.msra.mxu0 0.0
    %3892 = vmatprep.mubr.f32.mxu0 0.0
    %3893 = vmatmul.mubr.f32.gmra.mrb[0].mxu0 %v3826
    %v3894 = vpop.f32.mrb[0].mxu0
    %v3895 = vadd.f32 %v3822, %v3894
    %v3896 = vpop.f32.mrb[0].mxu0
    %3897 = vdwg.mxu0
    %v3898 = vadd.f32 %v3895, %v111
    %v3899 = vxor.u32 %v3898, 2147483648
    %v3900 = vmul.f32 %v3899, 1.442695
    %v3901 = vpow.pop %v3900
    %v3902 = vadd.f32 %v3901, 1.0
    %v3903 = vrcp.pop %v3902
    %v3904 = vmul.f32 1.0, %v3903
    %v3905 = vtanh.pop %v3898
    %v3906 = vmul.f32 %v3904, %v3401
    %3908 = vrot.lane.b32.xlu0 %v3905, 64
    %v3909 = vpop.permute.xlu0 %3908
    %v3911 = vmul.f32 %v3904, %v3909
    %3913 = vrot.lane.b32.xlu0 %v3911, 32
    %v3914 = vpop.permute.xlu0 %3913
    %v3916 = vadd.f32 %v3906, %v3914
    %v3917 = vtanh.pop %v3916
    %3919 = vrot.lane.b32.xlu0 %v3917, 64
    %v3920 = vpop.permute.xlu0 %3919
    %v3922 = vmul.f32 %v3904, %v3920
    %3924 = vrot.lane.b32.xlu0 %v3922, 32
    %v3925 = vpop.permute.xlu0 %3924
    %v3926 = vsel %vm130, %v3925, 0
    %3928 = vmatprep.subr.mxu0 0.0
    %3929 = vmatpush1.msra.mxu0 %v112
    %3930 = vmatprep.subr.mxu0 0.0
    %3931 = vmatpush1.msra.mxu0 %v113
    %3932 = vmatprep.subr.mxu0 0.0
    %3933 = vmatpush1.msra.mxu0 %v114
    %3934 = vmatprep.subr.mxu0 0.0
    %3935 = vmatpush1.msra.mxu0 %v115
    %3936 = vmatprep.subr.mxu0 0.0
    %3937 = vmatpush1.msra.mxu0 0.0
    %3938 = vmatprep.subr.mxu0 0.0
    %3939 = vmatpush1.msra.mxu0 0.0
    %3940 = vmatprep.subr.mxu0 0.0
    %3941 = vmatpush1.msra.mxu0 0.0
    %3942 = vmatprep.subr.mxu0 0.0
    %3943 = vmatpush1.msra.mxu0 0.0
    %3944 = vmatprep.subr.mxu0 0.0
    %3945 = vmatpush1.msra.mxu0 0.0
    %3946 = vmatprep.subr.mxu0 0.0
    %3947 = vmatpush1.msra.mxu0 0.0
    %3948 = vmatprep.subr.mxu0 0.0
    %3949 = vmatpush1.msra.mxu0 0.0
    %3950 = vmatprep.subr.mxu0 0.0
    %3951 = vmatpush1.msra.mxu0 0.0
    %3952 = vmatprep.subr.mxu0 0.0
    %3953 = vmatpush1.msra.mxu0 0.0
    %3954 = vmatprep.subr.mxu0 0.0
    %3955 = vmatpush1.msra.mxu0 0.0
    %3956 = vmatprep.subr.mxu0 0.0
    %3957 = vmatpush1.msra.mxu0 0.0
    %3958 = vmatprep.subr.mxu0 0.0
    %3959 = vmatpush1.msra.mxu0 0.0
    %3960 = vmatprep.subr.mxu0 0.0
    %3961 = vmatpush1.msra.mxu0 0.0
    %3962 = vmatprep.subr.mxu0 0.0
    %3963 = vmatpush1.msra.mxu0 0.0
    %3964 = vmatprep.subr.mxu0 0.0
    %3965 = vmatpush1.msra.mxu0 0.0
    %3966 = vmatprep.subr.mxu0 0.0
    %3967 = vmatpush1.msra.mxu0 0.0
    %3968 = vmatprep.subr.mxu0 0.0
    %3969 = vmatpush1.msra.mxu0 0.0
    %3970 = vmatprep.subr.mxu0 0.0
    %3971 = vmatpush1.msra.mxu0 0.0
    %3972 = vmatprep.subr.mxu0 0.0
    %3973 = vmatpush1.msra.mxu0 0.0
    %3974 = vmatprep.subr.mxu0 0.0
    %3975 = vmatpush1.msra.mxu0 0.0
    %3976 = vmatprep.subr.mxu0 0.0
    %3977 = vmatpush1.msra.mxu0 0.0
    %3978 = vmatprep.subr.mxu0 0.0
    %3979 = vmatpush1.msra.mxu0 0.0
    %3980 = vmatprep.subr.mxu0 0.0
    %3981 = vmatpush1.msra.mxu0 0.0
    %3982 = vmatprep.subr.mxu0 0.0
    %3983 = vmatpush1.msra.mxu0 0.0
    %3984 = vmatprep.subr.mxu0 0.0
    %3985 = vmatpush1.msra.mxu0 0.0
    %3986 = vmatprep.subr.mxu0 0.0
    %3987 = vmatpush1.msra.mxu0 0.0
    %3988 = vmatprep.subr.mxu0 0.0
    %3989 = vmatpush1.msra.mxu0 0.0
    %3990 = vmatprep.subr.mxu0 0.0
    %3991 = vmatpush1.msra.mxu0 0.0
    %3992 = vmatprep.mubr.f32.mxu0 0.0
    %3993 = vmatmul.mubr.f32.gmra.mrb[0].mxu0 %v3926
    %v3994 = vpop.f32.mrb[0].mxu0
    %v3995 = vadd.f32 0.0, %v3994
    %v3996 = vpop.f32.mrb[0].mxu0
    %3997 = vdwg.mxu0
    %v3998 = vsel %vm385, %v3995, -inf
    %3999 = vmax.xlane.f32.xlu0 %v3998
    %v4000 = vpop.xlane.xlu0 %3999
    %v4001 = vsub.f32 %v3995, %v4000
    %v4002 = vmul.f32 %v4001, 1.442695
    %v4003 = vpow.pop %v4002
    %v4004 = vsel %vm385, %v4003, 0.0
    %4005 = vadd.xlane.f32.xlu0 %v4004
    %v4006 = vpop.xlane.xlu0 %4005
    %v4007 = vrcp.pop %v4006
    %v4008 = vmul.f32 %v4003, %v4007
    %v4010 = vsel %vm397, %v4008, 0
    %4012 = vmatprep.subr.mxu0 0.0
    %4013 = vmatpush1.msra.mxu0 %v116
    %4014 = vmatprep.subr.mxu0 0.0
    %4015 = vmatpush1.msra.mxu0 %v117
    %4016 = vmatprep.subr.mxu0 0.0
    %4017 = vmatpush1.msra.mxu0 0.0
    %4018 = vmatprep.subr.mxu0 0.0
    %4019 = vmatpush1.msra.mxu0 0.0
    %4020 = vmatprep.subr.mxu0 0.0
    %4021 = vmatpush1.msra.mxu0 0.0
    %4022 = vmatprep.subr.mxu0 0.0
    %4023 = vmatpush1.msra.mxu0 0.0
    %4024 = vmatprep.subr.mxu0 0.0
    %4025 = vmatpush1.msra.mxu0 0.0
    %4026 = vmatprep.subr.mxu0 0.0
    %4027 = vmatpush1.msra.mxu0 0.0
    %4028 = vmatprep.subr.mxu0 0.0
    %4029 = vmatpush1.msra.mxu0 0.0
    %4030 = vmatprep.subr.mxu0 0.0
    %4031 = vmatpush1.msra.mxu0 0.0
    %4032 = vmatprep.subr.mxu0 0.0
    %4033 = vmatpush1.msra.mxu0 0.0
    %4034 = vmatprep.subr.mxu0 0.0
    %4035 = vmatpush1.msra.mxu0 0.0
    %4036 = vmatprep.subr.mxu0 0.0
    %4037 = vmatpush1.msra.mxu0 0.0
    %4038 = vmatprep.subr.mxu0 0.0
    %4039 = vmatpush1.msra.mxu0 0.0
    %4040 = vmatprep.subr.mxu0 0.0
    %4041 = vmatpush1.msra.mxu0 0.0
    %4042 = vmatprep.subr.mxu0 0.0
    %4043 = vmatpush1.msra.mxu0 0.0
    %4044 = vmatprep.subr.mxu0 0.0
    %4045 = vmatpush1.msra.mxu0 0.0
    %4046 = vmatprep.subr.mxu0 0.0
    %4047 = vmatpush1.msra.mxu0 0.0
    %4048 = vmatprep.subr.mxu0 0.0
    %4049 = vmatpush1.msra.mxu0 0.0
    %4050 = vmatprep.subr.mxu0 0.0
    %4051 = vmatpush1.msra.mxu0 0.0
    %4052 = vmatprep.subr.mxu0 0.0
    %4053 = vmatpush1.msra.mxu0 0.0
    %4054 = vmatprep.subr.mxu0 0.0
    %4055 = vmatpush1.msra.mxu0 0.0
    %4056 = vmatprep.subr.mxu0 0.0
    %4057 = vmatpush1.msra.mxu0 0.0
    %4058 = vmatprep.subr.mxu0 0.0
    %4059 = vmatpush1.msra.mxu0 0.0
    %4060 = vmatprep.subr.mxu0 0.0
    %4061 = vmatpush1.msra.mxu0 0.0
    %4062 = vmatprep.subr.mxu0 0.0
    %4063 = vmatpush1.msra.mxu0 0.0
    %4064 = vmatprep.subr.mxu0 0.0
    %4065 = vmatpush1.msra.mxu0 0.0
    %4066 = vmatprep.subr.mxu0 0.0
    %4067 = vmatpush1.msra.mxu0 0.0
    %4068 = vmatprep.subr.mxu0 0.0
    %4069 = vmatpush1.msra.mxu0 0.0
    %4070 = vmatprep.subr.mxu0 0.0
    %4071 = vmatpush1.msra.mxu0 0.0
    %4072 = vmatprep.subr.mxu0 0.0
    %4073 = vmatpush1.msra.mxu0 0.0
    %4074 = vmatprep.subr.mxu0 0.0
    %4075 = vmatpush1.msra.mxu0 0.0
    %4076 = vmatprep.mubr.f32.mxu0 0.0
    %4077 = vmatmul.mubr.f32.gmra.mrb[0].mxu0 %v4010
    %v4078 = vpop.f32.mrb[0].mxu0
    %v4079 = vadd.f32 0.0, %v4078
    %v4080 = vpop.f32.mrb[0].mxu0
    %4081 = vdwg.mxu0
    %4082 = vmatprep.subr.mxu0 0.0
    %4083 = vmatpush1.msra.mxu0 %v122
    %4084 = vmatprep.subr.mxu0 0.0
    %4085 = vmatpush1.msra.mxu0 %v123
    %4086 = vmatprep.subr.mxu0 0.0
    %4087 = vmatpush1.msra.mxu0 %v124
    %4088 = vmatprep.subr.mxu0 0.0
    %4089 = vmatpush1.msra.mxu0 %v125
    %4090 = vmatprep.subr.mxu0 0.0
    %4091 = vmatpush1.msra.mxu0 0.0
    %4092 = vmatprep.subr.mxu0 0.0
    %4093 = vmatpush1.msra.mxu0 0.0
    %4094 = vmatprep.subr.mxu0 0.0
    %4095 = vmatpush1.msra.mxu0 0.0
    %4096 = vmatprep.subr.mxu0 0.0
    %4097 = vmatpush1.msra.mxu0 0.0
    %4098 = vmatprep.subr.mxu0 0.0
    %4099 = vmatpush1.msra.mxu0 0.0
    %4100 = vmatprep.subr.mxu0 0.0
    %4101 = vmatpush1.msra.mxu0 0.0
    %4102 = vmatprep.subr.mxu0 0.0
    %4103 = vmatpush1.msra.mxu0 0.0
    %4104 = vmatprep.subr.mxu0 0.0
    %4105 = vmatpush1.msra.mxu0 0.0
    %4106 = vmatprep.subr.mxu0 0.0
    %4107 = vmatpush1.msra.mxu0 0.0
    %4108 = vmatprep.subr.mxu0 0.0
    %4109 = vmatpush1.msra.mxu0 0.0
    %4110 = vmatprep.subr.mxu0 0.0
    %4111 = vmatpush1.msra.mxu0 0.0
    %4112 = vmatprep.subr.mxu0 0.0
    %4113 = vmatpush1.msra.mxu0 0.0
    %4114 = vmatprep.subr.mxu0 0.0
    %4115 = vmatpush1.msra.mxu0 0.0
    %4116 = vmatprep.subr.mxu0 0.0
    %4117 = vmatpush1.msra.mxu0 0.0
    %4118 = vmatprep.subr.mxu0 0.0
    %4119 = vmatpush1.msra.mxu0 0.0
    %4120 = vmatprep.subr.mxu0 0.0
    %4121 = vmatpush1.msra.mxu0 0.0
    %4122 = vmatprep.subr.mxu0 0.0
    %4123 = vmatpush1.msra.mxu0 0.0
    %4124 = vmatprep.subr.mxu0 0.0
    %4125 = vmatpush1.msra.mxu0 0.0
    %4126 = vmatprep.subr.mxu0 0.0
    %4127 = vmatpush1.msra.mxu0 0.0
    %4128 = vmatprep.subr.mxu0 0.0
    %4129 = vmatpush1.msra.mxu0 0.0
    %4130 = vmatprep.subr.mxu0 0.0
    %4131 = vmatpush1.msra.mxu0 0.0
    %4132 = vmatprep.subr.mxu0 0.0
    %4133 = vmatpush1.msra.mxu0 0.0
    %4134 = vmatprep.subr.mxu0 0.0
    %4135 = vmatpush1.msra.mxu0 0.0
    %4136 = vmatprep.subr.mxu0 0.0
    %4137 = vmatpush1.msra.mxu0 0.0
    %4138 = vmatprep.subr.mxu0 0.0
    %4139 = vmatpush1.msra.mxu0 0.0
    %4140 = vmatprep.subr.mxu0 0.0
    %4141 = vmatpush1.msra.mxu0 0.0
    %4142 = vmatprep.subr.mxu0 0.0
    %4143 = vmatpush1.msra.mxu0 0.0
    %4144 = vmatprep.subr.mxu0 0.0
    %4145 = vmatpush1.msra.mxu0 0.0
    %4146 = vmatprep.mubr.f32.mxu0 0.0
    %4147 = vmatmul.mubr.f32.gmra.mrb[0].mxu0 %v3926
    %v4148 = vpop.f32.mrb[0].mxu0
    %v4149 = vadd.f32 0.0, %v4148
    %v4150 = vpop.f32.mrb[0].mxu0
    %4151 = vdwg.mxu0
    %v4153 = vsel %vm130, %v4079, 0
    %4155 = vmatprep.subr.mxu0 0.0
    %4156 = vmatpush1.msra.mxu0 %v118
    %4157 = vmatprep.subr.mxu0 0.0
    %4158 = vmatpush1.msra.mxu0 %v119
    %4159 = vmatprep.subr.mxu0 0.0
    %4160 = vmatpush1.msra.mxu0 %v120
    %4161 = vmatprep.subr.mxu0 0.0
    %4162 = vmatpush1.msra.mxu0 %v121
    %4163 = vmatprep.subr.mxu0 0.0
    %4164 = vmatpush1.msra.mxu0 0.0
    %4165 = vmatprep.subr.mxu0 0.0
    %4166 = vmatpush1.msra.mxu0 0.0
    %4167 = vmatprep.subr.mxu0 0.0
    %4168 = vmatpush1.msra.mxu0 0.0
    %4169 = vmatprep.subr.mxu0 0.0
    %4170 = vmatpush1.msra.mxu0 0.0
    %4171 = vmatprep.subr.mxu0 0.0
    %4172 = vmatpush1.msra.mxu0 0.0
    %4173 = vmatprep.subr.mxu0 0.0
    %4174 = vmatpush1.msra.mxu0 0.0
    %4175 = vmatprep.subr.mxu0 0.0
    %4176 = vmatpush1.msra.mxu0 0.0
    %4177 = vmatprep.subr.mxu0 0.0
    %4178 = vmatpush1.msra.mxu0 0.0
    %4179 = vmatprep.subr.mxu0 0.0
    %4180 = vmatpush1.msra.mxu0 0.0
    %4181 = vmatprep.subr.mxu0 0.0
    %4182 = vmatpush1.msra.mxu0 0.0
    %4183 = vmatprep.subr.mxu0 0.0
    %4184 = vmatpush1.msra.mxu0 0.0
    %4185 = vmatprep.subr.mxu0 0.0
    %4186 = vmatpush1.msra.mxu0 0.0
    %4187 = vmatprep.subr.mxu0 0.0
    %4188 = vmatpush1.msra.mxu0 0.0
    %4189 = vmatprep.subr.mxu0 0.0
    %4190 = vmatpush1.msra.mxu0 0.0
    %4191 = vmatprep.subr.mxu0 0.0
    %4192 = vmatpush1.msra.mxu0 0.0
    %4193 = vmatprep.subr.mxu0 0.0
    %4194 = vmatpush1.msra.mxu0 0.0
    %4195 = vmatprep.subr.mxu0 0.0
    %4196 = vmatpush1.msra.mxu0 0.0
    %4197 = vmatprep.subr.mxu0 0.0
    %4198 = vmatpush1.msra.mxu0 0.0
    %4199 = vmatprep.subr.mxu0 0.0
    %4200 = vmatpush1.msra.mxu0 0.0
    %4201 = vmatprep.subr.mxu0 0.0
    %4202 = vmatpush1.msra.mxu0 0.0
    %4203 = vmatprep.subr.mxu0 0.0
    %4204 = vmatpush1.msra.mxu0 0.0
    %4205 = vmatprep.subr.mxu0 0.0
    %4206 = vmatpush1.msra.mxu0 0.0
    %4207 = vmatprep.subr.mxu0 0.0
    %4208 = vmatpush1.msra.mxu0 0.0
    %4209 = vmatprep.subr.mxu0 0.0
    %4210 = vmatpush1.msra.mxu0 0.0
    %4211 = vmatprep.subr.mxu0 0.0
    %4212 = vmatpush1.msra.mxu0 0.0
    %4213 = vmatprep.subr.mxu0 0.0
    %4214 = vmatpush1.msra.mxu0 0.0
    %4215 = vmatprep.subr.mxu0 0.0
    %4216 = vmatpush1.msra.mxu0 0.0
    %4217 = vmatprep.subr.mxu0 0.0
    %4218 = vmatpush1.msra.mxu0 0.0
    %4219 = vmatprep.mubr.f32.mxu0 0.0
    %4220 = vmatmul.mubr.f32.gmra.mrb[0].mxu0 %v4153
    %v4221 = vpop.f32.mrb[0].mxu0
    %v4222 = vadd.f32 %v4149, %v4221
    %v4223 = vpop.f32.mrb[0].mxu0
    %4224 = vdwg.mxu0
    %v4225 = vadd.f32 %v4222, %v126
    %v4226 = vsel %vm615, %v4225, -inf
    %4227 = vmax.xlane.f32.xlu0 %v4226
    %v4228 = vpop.xlane.xlu0 %4227
    %v4229 = vsub.f32 %v4225, %v4228
    %v4230 = vmul.f32 %v4229, 1.442695
    %v4231 = vpow.pop %v4230
    %v4232 = vsel %vm615, %v4231, 0.0
    %4233 = vadd.xlane.f32.xlu0 %v4232
    %v4234 = vpop.xlane.xlu0 %4233
    %v4235 = vlog2.pop %v4234
    %v4236 = vmul.f32 %v4235, 0.6931472
    %v4237 = vsub.f32 %v4229, %v4236
    %4238 = vrot.lane.b32.xlu0 %v3922, 96
    %v4239 = vpop.permute.xlu0 %4238
    %4242 = vrot.lane.b32.xlu0 %v3916, 64
    %v4243 = vpop.permute.xlu0 %4242
    %v4245 = vsel %vm635, %v4237, %v4239
    %v4246 = vsel %vm637, %v4245, %v4243
    %v4247 = vsel %vm397, %v4008, 0.0
    %v4250 = vcombine.low %v4246, %v4247
    %v4252 = vunpack.c.l.s4 1966171168
    %v4253 = vunpack.c.0.s8 %v4252
    %v4254 = vlaneseq
    %v4255 = vshrl.u32 %v4254, 7
    %v4256 = vsub.s32 %v4253, %v4255
    %v4257 = vrot.slane %v4250, %v4256
    %v4259 = vunpack.c.l.s4 1966171168
    %v4260 = vunpack.c.0.s8 %v4259
    %v4261 = vlaneseq
    %v4262 = vshrl.u32 %v4261, 7
    %v4263 = vsub.s32 %v4260, %v4262
    %v4264 = vrot.slane %v4257, %v4263
    %s4266 = scalar_lea.vmem [#allocation11], 7
    %4267 = vst.msk [vmem:[%s4266] ss:$8 sm:$0x3] %vm661, %v4264
    %4268 = vst.msk [vmem:[%s4266] ss:$8 sm:$0x0] %vm661, %v4264
    // Predicated region
    $region66: #{tpu_custom_call.1} parent=1 // pred_check
      _
    $region67: #{tpu_custom_call.1} parent=1 // pred_check_branch
      %4270 = sbr.rel (0) target = $region69
    $region68: #{tpu_custom_call.1} parent=1 // pred_region
      %s4272 = ssub.s32 256, 256
      %4273 = vsyncadd [#allocation4], %s4272
      %s4275 = sshll.u32 [#allocation11], 4
      %s4276 = int_to_ptr.vmem [resolvable:$true] %s4275
      %4278 = dma.vmem_to_hbm [thread:$0]  %s4276, 256, %s11, [#allocation4]
    $region69: #{tpu_custom_call.1} parent=1 // pred_fallthru
      _
    // Predicated region
    $region70: #{tpu_custom_call.1} parent=1 // pred_check
      _
    $region71: #{tpu_custom_call.1} parent=1 // pred_check_branch
      %4280 = sbr.rel (0) target = $region73
    $region72: #{tpu_custom_call.1} parent=1 // pred_region
      %4281 = dma.done [#allocation4], 256
    $region73: #{tpu_custom_call.1} parent=1 // pred_fallthru
      _
    %4282 = vsyncpa [#allocation3], 1
    %4283 = vsyncpa [#allocation6], 1
    %4284 = vsyncpa [#allocation9], 1
    %4285 = vsyncpa [#allocation4], 1

</llo_original>
